<compile_context>
chip_gen: v7x
topology: tpu7x:2x2x1
jax: 0.10.0
libtpu: 0.0.40
codegen_flags: <defaults>
</compile_context>

<pallas_src>
import functools

import numpy as np
import jax
import jax.numpy as jnp
from jax import lax
from jax.experimental import pallas as pl
from jax.experimental.pallas import tpu as pltpu

HYPER = dict(width=16, ker_wid=3, stride=1, dilation=1, padding=0, pool=2)
LANE = 128  # TPU lane width; channel-like dims are zero-padded to this.


def _round_up(x, m):
    return (x + m - 1) // m * m


# ------------------------------ static plan ---------------------------------

def build_plan(hyper, batch_tile):
    # Only the configuration LeafNet actually uses is supported.
    assert hyper['stride'] == 1 and hyper['dilation'] == 1, 'only stride=dilation=1'
    assert hyper['padding'] == 0, 'only padding=0'
    assert hyper['pool'] == 2, 'only 2x2 max pooling'
    K, W0, Bc = hyper['ker_wid'], hyper['width'], batch_tile
    H1 = W0 - K + 1            # conv1 output width              (14)
    P1 = H1 // 2               # pool1 output width              (7)
    H2 = P1 - K + 1            # conv2 output width              (5)
    P2 = H2 // 2               # pool2 output width              (2)
    nS = P2 * P2               # pooled2 spatial positions       (4)
    assert H1 >= 2 and H2 >= 2 and P1 > K - 1 and P2 >= 1
    # pool windows / conv2 taps must stay inside one image (floor-mode pooling)
    assert 2 * (P1 - 1) + 1 <= H1 - 1
    assert 2 * (P2 - 1) + 1 + (K - 1) <= P1 - 1

    F1 = LANE                                               # conv1 im2col lanes
    # rows of the pool1 pairwise-max slab (also s1 contraction depth)
    L1 = _round_up((Bc - 1) * H1 * H1 + 2 * (P1 - 1) * (H1 + 1) + 1, 128)
    # rows of the conv1-output slab / host im2col slab
    R1 = _round_up(max(Bc * H1 * H1, L1 + H1 + 1), 16)
    # rows of the pool2 pairwise-max slab (also s2 contraction depth)
    L2 = _round_up((Bc - 1) * P1 * P1 + 2 * (P2 - 1) * (P1 + 1) + 1, 128)
    # rows of the conv2-output slab
    R2 = _round_up(L2 + P1 + 1, 16)
    # rows of the pooled1 slab (conv2 input grid), covers all tap reads
    NP1 = _round_up(max(Bc * P1 * P1, R2 + (K - 1) * (P1 + 1)), 16)
    Bp = max(8, _round_up(Bc, 8))                            # fc / output rows

    # every row the kernel reads exists, every selected row holds real data
    assert R1 >= L1 + H1 + 1 and R1 >= Bc * H1 * H1
    assert 2 * (P1 - 1) * (H1 + 1) + H1 + 1 <= H1 * H1
    assert NP1 >= R2 + (K - 1) * (P1 + 1) and NP1 >= Bc * P1 * P1
    assert R2 >= L2 + P1 + 1
    assert (Bc - 1) * P1 * P1 + 2 * (P2 - 1) * (P1 + 1) < L2

    return dict(Bc=Bc, Bp=Bp, K=K, W0=W0, H1=H1, P1=P1, H2=H2, P2=P2, nS=nS,
                F1=F1, L1=L1, R1=R1, L2=L2, R2=R2, NP1=NP1)


def _build_s1(plan):
    # (NP1, L1): row b*P1^2 + i*P1 + j picks pairwise-max row (b, 2i, 2j) of the
    # conv1 (H1 x H1) grid; padding rows stay zero.
    s1 = np.zeros((plan['NP1'], plan['L1']), np.float32)
    Bc, H1, P1 = plan['Bc'], plan['H1'], plan['P1']
    for b in range(Bc):
        for i in range(P1):
            for j in range(P1):
                s1[b * P1 * P1 + i * P1 + j,
                   b * H1 * H1 + 2 * i * H1 + 2 * j] = 1.0
    return s1


def _build_s2(plan):
    # (nS*Bp, L2): row s*Bp + b picks pairwise-max row (b, 2*i3, 2*j3) of the
    # conv2 (P1 x P1) grid, where s = i3*P2 + j3; padding rows stay zero.
    Bc, Bp, P1, P2, L2 = plan['Bc'], plan['Bp'], plan['P1'], plan['P2'], plan['L2']
    s2 = np.zeros((P2 * P2 * Bp, L2), np.float32)
    for s in range(P2 * P2):
        i3, j3 = divmod(s, P2)
        for b in range(Bc):
            s2[s * Bp + b, b * P1 * P1 + 2 * i3 * P1 + 2 * j3] = 1.0
    return s2


# ------------------------- one-time parameter prep ---------------------------

def prepare_params(params, hyper, batch_tile):
    plan = build_plan(hyper, batch_tile)
    C, K, nS, F1 = LANE, plan['K'], plan['nS'], plan['F1']
    cin = params['conv1_w'].shape[1]
    c1 = params['conv1_w'].shape[0]
    c2 = params['conv2_w'].shape[0]
    d1 = params['fc1_w'].shape[0]
    d2 = params['fc2_w'].shape[0]
    d3 = params['fc3_w'].shape[0]
    assert params['fc1_w'].shape[1] == c2 * nS, 'in_size mismatch with pool plan'
    assert cin * K * K <= F1 and max(c1, c2, d1, d2, d3) <= C
    plan['n_out'] = d3
    plan['cin'] = cin

    bf16 = jnp.bfloat16

    def pad_bias(b):
        return jnp.pad(b, (0, C - b.shape[0])).reshape(1, C).astype(jnp.float32)

    def pack_fc(w):   # (out, in) -> (C, C) = padded w.T, bf16
        o_, i_ = w.shape
        return jnp.pad(w.T, ((0, C - i_), (0, C - o_))).astype(bf16)

    # conv1 as a single im2col matmul weight: rows f = (kh*K + kw)*cin + ci
    w1 = jnp.transpose(params['conv1_w'], (2, 3, 1, 0)).reshape(K * K * cin, c1)
    w1 = jnp.pad(w1, ((0, F1 - K * K * cin), (0, C - c1))).astype(bf16)

    # conv2 taps stacked along the contraction: tap t lives in rows [t*C,(t+1)*C)
    w2 = jnp.transpose(params['conv2_w'], (2, 3, 1, 0))           # (K,K,c1,c2)
    w2 = jnp.pad(w2, ((0, 0), (0, 0), (0, C - c1), (0, C - c2)))
    w2 = w2.reshape(K * K * C, C).astype(bf16)

    # fc1 split per pooled spatial position s (folds the NCHW flatten):
    # torch flat index = c*nS + s, so fw1[s*C + c, n] = fc1_w[n, c*nS + s].
    t = params['fc1_w'].reshape(d1, c2, nS)                       # (n, c, s)
    t = jnp.transpose(t, (2, 1, 0))                               # (s, c, n)
    t = jnp.pad(t, ((0, 0), (0, C - c2), (0, C - d1)))
    fw1 = t.reshape(nS * C, C).astype(bf16)

    prep = dict(
        w1=w1, b1=pad_bias(params['conv1_b']),
        w2=w2, b2=pad_bias(params['conv2_b']),
        fw1=fw1, fb1=pad_bias(params['fc1_b']),
        fw2=pack_fc(params['fc2_w']), fb2=pad_bias(params['fc2_b']),
        fw3=pack_fc(params['fc3_w']), fb3=pad_bias(params['fc3_b']),
        s1=jnp.asarray(_build_s1(plan), dtype=bf16),   # 0/1 -> exact in bf16
        s2=jnp.asarray(_build_s2(plan), dtype=bf16),
    )
    return prep, plan


# ------------------------------- fused kernel --------------------------------

def leafnet_kernel(x_ref, w1_ref, b1_ref, s1_ref, w2_ref, b2_ref, s2_ref,
                   fw1_ref, fb1_ref, fw2_ref, fb2_ref, fw3_ref, fb3_ref,
                   o_ref, y1_s, p1_s, y2_s, *, plan):
    f32, bf16 = jnp.float32, jnp.bfloat16
    C = LANE
    K, H1, P1 = plan['K'], plan['H1'], plan['P1']
    L1, L2, R2 = plan['L1'], plan['L2'], plan['R2']
    Bp, nS = plan['Bp'], plan['nS']

    # ---- conv1 + bias + relu: ONE MXU matmul (host-side im2col, bf16) ----
    y1 = jnp.dot(x_ref[...], w1_ref[...], preferred_element_type=f32)
    y1_s[...] = jnp.maximum(y1 + b1_ref[...], 0.0)

    # ---- 2x2 maxpool (1): pairwise max of 4 shifted reads + a 0/1 selection
    #      matmul that packs pooled values onto the (Bc, P1, P1) grid. ----
    u1 = jnp.maximum(
        jnp.maximum(y1_s[pl.ds(0, L1), :], y1_s[pl.ds(1, L1), :]),
        jnp.maximum(y1_s[pl.ds(H1, L1), :], y1_s[pl.ds(H1 + 1, L1), :]))
    p1_s[...] = jnp.dot(s1_ref[...], u1.astype(bf16), preferred_element_type=f32)

    # ---- conv2 + bias + relu: im2col-free; taps packed pairwise to 256-deep
    #      contractions (v6e/v7x MXU) on two independent accumulator chains
    #      (overlaps MRF pops on v5e/v6e). ----
    def tap(t):
        off = (t // K) * P1 + (t % K)
        return p1_s[pl.ds(off, R2), :].astype(bf16)

    acc0 = None
    acc1 = None
    n_taps = K * K
    for pair in range(n_taps // 2):
        t = 2 * pair
        lhs = jnp.concatenate([tap(t), tap(t + 1)], axis=-1)        # (R2, 2*C)
        d = jnp.dot(lhs, w2_ref[pl.ds(t * C, 2 * C), :],
                    preferred_element_type=f32)
        if pair % 2 == 0:
            acc0 = d if acc0 is None else acc0 + d
        else:
            acc1 = d if acc1 is None else acc1 + d
    if n_taps % 2:
        t = n_taps - 1
        d = jnp.dot(tap(t), w2_ref[pl.ds(t * C, C), :],
                    preferred_element_type=f32)
        acc0 = d if acc0 is None else acc0 + d
    y2 = acc0 if acc1 is None else acc0 + acc1
    y2_s[...] = jnp.maximum(y2 + b2_ref[...], 0.0)

    # ---- 2x2 maxpool (2) + NCHW flatten + fc1: one selection matmul, then one
    #      dot per pooled spatial position against the pre-split fc1 weights,
    #      on two accumulators. ----
    u2 = jnp.maximum(
        jnp.maximum(y2_s[pl.ds(0, L2), :], y2_s[pl.ds(1, L2), :]),
        jnp.maximum(y2_s[pl.ds(P1, L2), :], y2_s[pl.ds(P1 + 1, L2), :]))
    v = jnp.dot(s2_ref[...], u2.astype(bf16), preferred_element_type=f32)
    h0 = None
    h1 = None
    for s in range(nS):
        d = jnp.dot(v[s * Bp:(s + 1) * Bp, :].astype(bf16),
                    fw1_ref[pl.ds(s * C, C), :], preferred_element_type=f32)
        if s % 2 == 0:
            h0 = d if h0 is None else h0 + d
        else:
            h1 = d if h1 is None else h1 + d
    h = h0 if h1 is None else h0 + h1
    h = jnp.maximum(h + fb1_ref[...], 0.0)
    h = jnp.maximum(jnp.dot(h.astype(bf16), fw2_ref[...],
                            preferred_element_type=f32) + fb2_ref[...], 0.0)
    o_ref[...] = (jnp.dot(h.astype(bf16), fw3_ref[...],
                          preferred_element_type=f32) + fb3_ref[...])


# ------------------------------- forward glue --------------------------------

def leafnet_forward(x_nchw, prep, plan):
    Bc, Bp = plan['Bc'], plan['Bp']
    K, W0, H1, F1, R1 = plan['K'], plan['W0'], plan['H1'], plan['F1'], plan['R1']
    cin = plan['cin']
    B = x_nchw.shape[0]
    assert x_nchw.shape[1:] == (cin, W0, W0)
    nc = -(-B // Bc)                       # batch chunks (grid steps)
    nB = nc * Bc

    # Host-side im2col for conv1 (feature index f = (kh*K + kw)*cin + ci),
    # padded to F1 lanes and R1 rows per chunk, stored in bf16.
    x = x_nchw.astype(jnp.float32)
    if nB > B:
        x = jnp.pad(x, ((0, nB - B), (0, 0), (0, 0), (0, 0)))
    taps = [x[:, :, kh:kh + H1, kw:kw + H1] for kh in range(K) for kw in range(K)]
    p = jnp.transpose(jnp.stack(taps, axis=1), (0, 3, 4, 1, 2))   # (nB,H1,H1,KK,cin)
    x1 = p.reshape(nB, H1 * H1, K * K * cin)
    x1 = jnp.pad(x1, ((0, 0), (0, 0), (0, F1 - K * K * cin)))
    x1 = x1.reshape(nc, Bc * H1 * H1, F1)
    x1 = jnp.pad(x1, ((0, 0), (0, R1 - Bc * H1 * H1), (0, 0)))
    x1 = x1.reshape(nc * R1, F1).astype(jnp.bfloat16)

    inputs = (x1, prep['w1'], prep['b1'], prep['s1'], prep['w2'], prep['b2'],
              prep['s2'], prep['fw1'], prep['fb1'], prep['fw2'], prep['fb2'],
              prep['fw3'], prep['fb3'])
    # x streams per grid step; all weights / selection matrices stay resident.
    in_specs = ([pl.BlockSpec((R1, F1), lambda i: (i, 0))] +
                [pl.BlockSpec(a.shape, lambda i: (0, 0)) for a in inputs[1:]])

    out = pl.pallas_call(
        functools.partial(leafnet_kernel, plan=plan),
        out_shape=jax.ShapeDtypeStruct((nc * Bp, LANE), jnp.float32),
        grid=(nc,),
        in_specs=in_specs,
        out_specs=pl.BlockSpec((Bp, LANE), lambda i: (i, 0)),
        scratch_shapes=[pltpu.VMEM((plan['R1'], LANE), jnp.float32),
                        pltpu.VMEM((plan['NP1'], LANE), jnp.float32),
                        pltpu.VMEM((plan['R2'], LANE), jnp.float32)],
        compiler_params=pltpu.CompilerParams(
            dimension_semantics=("parallel",)),
    )(*inputs)

    out = out.reshape(nc, Bp, LANE)[:, :Bc, :plan['n_out']]
    out = out.reshape(nc * Bc, plan['n_out'])[:B]
    # torch's x.squeeze(1) is a no-op here (dim 1 has size 8).
    return out


# ----------------------------- pure-JAX reference ----------------------------

def ref_forward(x, params, hyper):
    p = hyper['pool']
    dn = ('NCHW', 'OIHW', 'NCHW')

    def conv(y, w, b):
        y = lax.conv_general_dilated(y, w, (1, 1), 'VALID', dimension_numbers=dn)
        return jnp.maximum(y + b[None, :, None, None], 0.0)

    def pool(y):
        return lax.reduce_window(y, -jnp.inf, lax.max,
                                 (1, 1, p, p), (1, 1, p, p), 'VALID')

    y = pool(conv(x, params['conv1_w'], params['conv1_b']))
    y = pool(conv(y, params['conv2_w'], params['conv2_b']))
    y = y.reshape(y.shape[0], -1)
    y = jnp.maximum(y @ params['fc1_w'].T + params['fc1_b'], 0.0)
    y = jnp.maximum(y @ params['fc2_w'].T + params['fc2_b'], 0.0)
    return y @ params['fc3_w'].T + params['fc3_b']


# ----------------------------------- main -------------------------------------

if __name__ == "__main__":
    hyper = HYPER
    width, K = hyper['width'], hyper['ker_wid']
    channel_1, channel_2 = 10, 20

    # replicate LeafNet.__init__ width arithmetic
    w = width
    for _ in range(2):
        w = (w + hyper['padding'] * 2
             - ((K - 1) * hyper['dilation'] + 1) + 1) // hyper['stride'] // hyper['pool']
    in_size = channel_2 * w * w   # = 80 for width=16, ker_wid=3, pool=2

    key = jax.random.PRNGKey(0)
    ks = jax.random.split(key, 13)
    f32 = jnp.float32
    params = {
        'conv1_w': 0.1 * jax.random.normal(ks[0], (channel_1, 3, K, K), f32),
        'conv1_b': 0.1 * jax.random.normal(ks[1], (channel_1,), f32),
        'conv2_w': 0.1 * jax.random.normal(ks[2], (channel_2, channel_1, K, K), f32),
        'conv2_b': 0.1 * jax.random.normal(ks[3], (channel_2,), f32),
        'fc1_w': 0.1 * jax.random.normal(ks[4], (64, in_size), f32),
        'fc1_b': 0.1 * jax.random.normal(ks[5], (64,), f32),
        'fc2_w': 0.1 * jax.random.normal(ks[6], (32, 64), f32),
        'fc2_b': 0.1 * jax.random.normal(ks[7], (32,), f32),
        'fc3_w': 0.1 * jax.random.normal(ks[8], (8, 32), f32),
        'fc3_b': 0.1 * jax.random.normal(ks[9], (8,), f32),
    }

    batch = 2
    x = jax.random.normal(ks[10], (batch, 3, width, width), f32)   # NCHW

    prep, plan = prepare_params(params, hyper, batch_tile=batch)   # one-time prep
    fwd = jax.jit(lambda xx: leafnet_forward(xx, prep, plan))

    out = jax.block_until_ready(fwd(x))
    ref = jax.block_until_ready(ref_forward(x, params, hyper))

    assert out.shape == (batch, 8), out.shape
    # bf16 MXU operands (f32 accumulation) -> slightly looser tolerance than f32.
    assert jnp.allclose(out, ref, atol=3e-2, rtol=3e-2), (out, ref)

    print("KERNEL_OK")
</pallas_src>

<mosaic_0001>
module attributes {stable_mosaic.version = 11 : i64} {
  func.func @leafnet_kernel(%arg0: i32, %arg1: memref<400x128xbf16, #tpu.memory_space<vmem>>, %arg2: memref<128x128xbf16, #tpu.memory_space<vmem>>, %arg3: memref<1x128xf32, #tpu.memory_space<vmem>>, %arg4: memref<160x384xbf16, #tpu.memory_space<vmem>>, %arg5: memref<1152x128xbf16, #tpu.memory_space<vmem>>, %arg6: memref<1x128xf32, #tpu.memory_space<vmem>>, %arg7: memref<32x128xbf16, #tpu.memory_space<vmem>>, %arg8: memref<512x128xbf16, #tpu.memory_space<vmem>>, %arg9: memref<1x128xf32, #tpu.memory_space<vmem>>, %arg10: memref<128x128xbf16, #tpu.memory_space<vmem>>, %arg11: memref<1x128xf32, #tpu.memory_space<vmem>>, %arg12: memref<128x128xbf16, #tpu.memory_space<vmem>>, %arg13: memref<1x128xf32, #tpu.memory_space<vmem>>, %arg14: memref<8x128xf32, #tpu.memory_space<vmem>>, %arg15: memref<400x128xf32, #tpu.memory_space<vmem>>, %arg16: memref<160x128xf32, #tpu.memory_space<vmem>>, %arg17: memref<144x128xf32, #tpu.memory_space<vmem>>) attributes {dimension_semantics = [#tpu.dimension_semantics<parallel>], iteration_bounds = array<i64: 1>, scalar_prefetch = 0 : i64, scratch_operands = 3 : i64, tpu.core_type = #tpu.core_type<tc>, window_params = [{transform_indices = @transform_0, window_bounds = array<i64: 400, 128>}, {pipeline_mode = #tpu.pipeline_mode<synchronous>, transform_indices = @transform_1, window_bounds = array<i64: 128, 128>}, {pipeline_mode = #tpu.pipeline_mode<synchronous>, transform_indices = @transform_2, window_bounds = array<i64: 1, 128>}, {pipeline_mode = #tpu.pipeline_mode<synchronous>, transform_indices = @transform_3, window_bounds = array<i64: 160, 384>}, {pipeline_mode = #tpu.pipeline_mode<synchronous>, transform_indices = @transform_4, window_bounds = array<i64: 1152, 128>}, {pipeline_mode = #tpu.pipeline_mode<synchronous>, transform_indices = @transform_5, window_bounds = array<i64: 1, 128>}, {pipeline_mode = #tpu.pipeline_mode<synchronous>, transform_indices = @transform_6, window_bounds = array<i64: 32, 128>}, {pipeline_mode = #tpu.pipeline_mode<synchronous>, transform_indices = @transform_7, window_bounds = array<i64: 512, 128>}, {pipeline_mode = #tpu.pipeline_mode<synchronous>, transform_indices = @transform_8, window_bounds = array<i64: 1, 128>}, {pipeline_mode = #tpu.pipeline_mode<synchronous>, transform_indices = @transform_9, window_bounds = array<i64: 128, 128>}, {pipeline_mode = #tpu.pipeline_mode<synchronous>, transform_indices = @transform_10, window_bounds = array<i64: 1, 128>}, {pipeline_mode = #tpu.pipeline_mode<synchronous>, transform_indices = @transform_11, window_bounds = array<i64: 128, 128>}, {pipeline_mode = #tpu.pipeline_mode<synchronous>, transform_indices = @transform_12, window_bounds = array<i64: 1, 128>}, {transform_indices = @transform_13, window_bounds = array<i64: 8, 128>}]} {
    %c0 = arith.constant 0 : index
    %c0_0 = arith.constant 0 : index
    %0 = vector.load %arg1[%c0, %c0_0] : memref<400x128xbf16, #tpu.memory_space<vmem>>, vector<400x128xbf16>
    %c0_1 = arith.constant 0 : index
    %c0_2 = arith.constant 0 : index
    %1 = vector.load %arg2[%c0_1, %c0_2] : memref<128x128xbf16, #tpu.memory_space<vmem>>, vector<128x128xbf16>
    %cst = arith.constant dense<0.000000e+00> : vector<400x128xf32>
    %2 = tpu.matmul %0, %1, %cst {dimension_numbers = #tpu.dot_dimension_numbers<[1], [0], [0], [1], [0, 0, 1, 1], [], []>} : vector<400x128xbf16>, vector<128x128xbf16>, vector<400x128xf32> -> vector<400x128xf32>
    %c0_3 = arith.constant 0 : index
    %c0_4 = arith.constant 0 : index
    %3 = vector.load %arg3[%c0_3, %c0_4] : memref<1x128xf32, #tpu.memory_space<vmem>>, vector<1x128xf32>
    %4 = vector.broadcast %3 : vector<1x128xf32> to vector<400x128xf32>
    %5 = arith.addf %2, %4 : vector<400x128xf32>
    %cst_5 = arith.constant 0.000000e+00 : f32
    %6 = vector.broadcast %cst_5 : f32 to vector<400x128xf32>
    %7 = arith.maximumf %5, %6 : vector<400x128xf32>
    %c0_6 = arith.constant 0 : index
    %c0_7 = arith.constant 0 : index
    %8 = vector.load %arg15[%c0_6, %c0_7] : memref<400x128xf32, #tpu.memory_space<vmem>>, vector<400x128xf32>
    tpu.vector_store %arg15[%c0_6, %c0_7], %7 {strides = array<i32>} : memref<400x128xf32, #tpu.memory_space<vmem>>, vector<400x128xf32>,
    %c0_8 = arith.constant 0 : index
    %c0_9 = arith.constant 0 : index
    %9 = vector.load %arg15[%c0_8, %c0_9] : memref<400x128xf32, #tpu.memory_space<vmem>>, vector<384x128xf32>
    %c1 = arith.constant 1 : index
    %c0_10 = arith.constant 0 : index
    %10 = vector.load %arg15[%c1, %c0_10] : memref<400x128xf32, #tpu.memory_space<vmem>>, vector<384x128xf32>
    %11 = arith.maximumf %9, %10 : vector<384x128xf32>
    %c14 = arith.constant 14 : index
    %c0_11 = arith.constant 0 : index
    %12 = vector.load %arg15[%c14, %c0_11] : memref<400x128xf32, #tpu.memory_space<vmem>>, vector<384x128xf32>
    %c15 = arith.constant 15 : index
    %c0_12 = arith.constant 0 : index
    %13 = vector.load %arg15[%c15, %c0_12] : memref<400x128xf32, #tpu.memory_space<vmem>>, vector<384x128xf32>
    %14 = arith.maximumf %12, %13 : vector<384x128xf32>
    %15 = arith.maximumf %11, %14 : vector<384x128xf32>
    %c0_13 = arith.constant 0 : index
    %c0_14 = arith.constant 0 : index
    %16 = vector.load %arg4[%c0_13, %c0_14] : memref<160x384xbf16, #tpu.memory_space<vmem>>, vector<160x384xbf16>
    %17 = arith.truncf %15 : vector<384x128xf32> to vector<384x128xbf16>
    %cst_15 = arith.constant dense<0.000000e+00> : vector<160x128xf32>
    %18 = tpu.matmul %16, %17, %cst_15 {dimension_numbers = #tpu.dot_dimension_numbers<[1], [0], [0], [1], [0, 0, 1, 1], [], []>} : vector<160x384xbf16>, vector<384x128xbf16>, vector<160x128xf32> -> vector<160x128xf32>
    %c0_16 = arith.constant 0 : index
    %c0_17 = arith.constant 0 : index
    %19 = vector.load %arg16[%c0_16, %c0_17] : memref<160x128xf32, #tpu.memory_space<vmem>>, vector<160x128xf32>
    tpu.vector_store %arg16[%c0_16, %c0_17], %18 {strides = array<i32>} : memref<160x128xf32, #tpu.memory_space<vmem>>, vector<160x128xf32>,
    %c0_18 = arith.constant 0 : index
    %c0_19 = arith.constant 0 : index
    %20 = vector.load %arg16[%c0_18, %c0_19] : memref<160x128xf32, #tpu.memory_space<vmem>>, vector<144x128xf32>
    %21 = arith.truncf %20 : vector<144x128xf32> to vector<144x128xbf16>
    %c1_20 = arith.constant 1 : index
    %c0_21 = arith.constant 0 : index
    %22 = vector.load %arg16[%c1_20, %c0_21] : memref<160x128xf32, #tpu.memory_space<vmem>>, vector<144x128xf32>
    %23 = arith.truncf %22 : vector<144x128xf32> to vector<144x128xbf16>
    %24 = tpu.concatenate %21, %23 in 1 : vector<144x128xbf16>, vector<144x128xbf16> -> vector<144x256xbf16>
    %c0_22 = arith.constant 0 : index
    %c0_23 = arith.constant 0 : index
    %25 = vector.load %arg5[%c0_22, %c0_23] : memref<1152x128xbf16, #tpu.memory_space<vmem>>, vector<256x128xbf16>
    %cst_24 = arith.constant dense<0.000000e+00> : vector<144x128xf32>
    %26 = tpu.matmul %24, %25, %cst_24 {dimension_numbers = #tpu.dot_dimension_numbers<[1], [0], [0], [1], [0, 0, 1, 1], [], []>} : vector<144x256xbf16>, vector<256x128xbf16>, vector<144x128xf32> -> vector<144x128xf32>
    %c2 = arith.constant 2 : index
    %c0_25 = arith.constant 0 : index
    %27 = vector.load %arg16[%c2, %c0_25] : memref<160x128xf32, #tpu.memory_space<vmem>>, vector<144x128xf32>
    %28 = arith.truncf %27 : vector<144x128xf32> to vector<144x128xbf16>
    %c7 = arith.constant 7 : index
    %c0_26 = arith.constant 0 : index
    %29 = vector.load %arg16[%c7, %c0_26] : memref<160x128xf32, #tpu.memory_space<vmem>>, vector<144x128xf32>
    %30 = arith.truncf %29 : vector<144x128xf32> to vector<144x128xbf16>
    %31 = tpu.concatenate %28, %30 in 1 : vector<144x128xbf16>, vector<144x128xbf16> -> vector<144x256xbf16>
    %c256 = arith.constant 256 : index
    %c0_27 = arith.constant 0 : index
    %32 = vector.load %arg5[%c256, %c0_27] : memref<1152x128xbf16, #tpu.memory_space<vmem>>, vector<256x128xbf16>
    %cst_28 = arith.constant dense<0.000000e+00> : vector<144x128xf32>
    %33 = tpu.matmul %31, %32, %cst_28 {dimension_numbers = #tpu.dot_dimension_numbers<[1], [0], [0], [1], [0, 0, 1, 1], [], []>} : vector<144x256xbf16>, vector<256x128xbf16>, vector<144x128xf32> -> vector<144x128xf32>
    %c8 = arith.constant 8 : index
    %c0_29 = arith.constant 0 : index
    %34 = vector.load %arg16[%c8, %c0_29] : memref<160x128xf32, #tpu.memory_space<vmem>>, vector<144x128xf32>
    %35 = arith.truncf %34 : vector<144x128xf32> to vector<144x128xbf16>
    %c9 = arith.constant 9 : index
    %c0_30 = arith.constant 0 : index
    %36 = vector.load %arg16[%c9, %c0_30] : memref<160x128xf32, #tpu.memory_space<vmem>>, vector<144x128xf32>
    %37 = arith.truncf %36 : vector<144x128xf32> to vector<144x128xbf16>
    %38 = tpu.concatenate %35, %37 in 1 : vector<144x128xbf16>, vector<144x128xbf16> -> vector<144x256xbf16>
    %c512 = arith.constant 512 : index
    %c0_31 = arith.constant 0 : index
    %39 = vector.load %arg5[%c512, %c0_31] : memref<1152x128xbf16, #tpu.memory_space<vmem>>, vector<256x128xbf16>
    %cst_32 = arith.constant dense<0.000000e+00> : vector<144x128xf32>
    %40 = tpu.matmul %38, %39, %cst_32 {dimension_numbers = #tpu.dot_dimension_numbers<[1], [0], [0], [1], [0, 0, 1, 1], [], []>} : vector<144x256xbf16>, vector<256x128xbf16>, vector<144x128xf32> -> vector<144x128xf32>
    %41 = arith.addf %26, %40 : vector<144x128xf32>
    %c14_33 = arith.constant 14 : index
    %c0_34 = arith.constant 0 : index
    %42 = vector.load %arg16[%c14_33, %c0_34] : memref<160x128xf32, #tpu.memory_space<vmem>>, vector<144x128xf32>
    %43 = arith.truncf %42 : vector<144x128xf32> to vector<144x128xbf16>
    %c15_35 = arith.constant 15 : index
    %c0_36 = arith.constant 0 : index
    %44 = vector.load %arg16[%c15_35, %c0_36] : memref<160x128xf32, #tpu.memory_space<vmem>>, vector<144x128xf32>
    %45 = arith.truncf %44 : vector<144x128xf32> to vector<144x128xbf16>
    %46 = tpu.concatenate %43, %45 in 1 : vector<144x128xbf16>, vector<144x128xbf16> -> vector<144x256xbf16>
    %c768 = arith.constant 768 : index
    %c0_37 = arith.constant 0 : index
    %47 = vector.load %arg5[%c768, %c0_37] : memref<1152x128xbf16, #tpu.memory_space<vmem>>, vector<256x128xbf16>
    %cst_38 = arith.constant dense<0.000000e+00> : vector<144x128xf32>
    %48 = tpu.matmul %46, %47, %cst_38 {dimension_numbers = #tpu.dot_dimension_numbers<[1], [0], [0], [1], [0, 0, 1, 1], [], []>} : vector<144x256xbf16>, vector<256x128xbf16>, vector<144x128xf32> -> vector<144x128xf32>
    %49 = arith.addf %33, %48 : vector<144x128xf32>
    %c16 = arith.constant 16 : index
    %c0_39 = arith.constant 0 : index
    %50 = vector.load %arg16[%c16, %c0_39] : memref<160x128xf32, #tpu.memory_space<vmem>>, vector<144x128xf32>
    %51 = arith.truncf %50 : vector<144x128xf32> to vector<144x128xbf16>
    %c1024 = arith.constant 1024 : index
    %c0_40 = arith.constant 0 : index
    %52 = vector.load %arg5[%c1024, %c0_40] : memref<1152x128xbf16, #tpu.memory_space<vmem>>, vector<128x128xbf16>
    %cst_41 = arith.constant dense<0.000000e+00> : vector<144x128xf32>
    %53 = tpu.matmul %51, %52, %cst_41 {dimension_numbers = #tpu.dot_dimension_numbers<[1], [0], [0], [1], [0, 0, 1, 1], [], []>} : vector<144x128xbf16>, vector<128x128xbf16>, vector<144x128xf32> -> vector<144x128xf32>
    %54 = arith.addf %41, %53 : vector<144x128xf32>
    %55 = arith.addf %54, %49 : vector<144x128xf32>
    %c0_42 = arith.constant 0 : index
    %c0_43 = arith.constant 0 : index
    %56 = vector.load %arg6[%c0_42, %c0_43] : memref<1x128xf32, #tpu.memory_space<vmem>>, vector<1x128xf32>
    %57 = vector.broadcast %56 : vector<1x128xf32> to vector<144x128xf32>
    %58 = arith.addf %55, %57 : vector<144x128xf32>
    %cst_44 = arith.constant 0.000000e+00 : f32
    %59 = vector.broadcast %cst_44 : f32 to vector<144x128xf32>
    %60 = arith.maximumf %58, %59 : vector<144x128xf32>
    %c0_45 = arith.constant 0 : index
    %c0_46 = arith.constant 0 : index
    %61 = vector.load %arg17[%c0_45, %c0_46] : memref<144x128xf32, #tpu.memory_space<vmem>>, vector<144x128xf32>
    tpu.vector_store %arg17[%c0_45, %c0_46], %60 {strides = array<i32>} : memref<144x128xf32, #tpu.memory_space<vmem>>, vector<144x128xf32>,
    %c0_47 = arith.constant 0 : index
    %c0_48 = arith.constant 0 : index
    %62 = vector.load %arg17[%c0_47, %c0_48] : memref<144x128xf32, #tpu.memory_space<vmem>>, vector<128x128xf32>
    %c1_49 = arith.constant 1 : index
    %c0_50 = arith.constant 0 : index
    %63 = vector.load %arg17[%c1_49, %c0_50] : memref<144x128xf32, #tpu.memory_space<vmem>>, vector<128x128xf32>
    %64 = arith.maximumf %62, %63 : vector<128x128xf32>
    %c7_51 = arith.constant 7 : index
    %c0_52 = arith.constant 0 : index
    %65 = vector.load %arg17[%c7_51, %c0_52] : memref<144x128xf32, #tpu.memory_space<vmem>>, vector<128x128xf32>
    %c8_53 = arith.constant 8 : index
    %c0_54 = arith.constant 0 : index
    %66 = vector.load %arg17[%c8_53, %c0_54] : memref<144x128xf32, #tpu.memory_space<vmem>>, vector<128x128xf32>
    %67 = arith.maximumf %65, %66 : vector<128x128xf32>
    %68 = arith.maximumf %64, %67 : vector<128x128xf32>
    %c0_55 = arith.constant 0 : index
    %c0_56 = arith.constant 0 : index
    %69 = vector.load %arg7[%c0_55, %c0_56] : memref<32x128xbf16, #tpu.memory_space<vmem>>, vector<32x128xbf16>
    %70 = arith.truncf %68 : vector<128x128xf32> to vector<128x128xbf16>
    %cst_57 = arith.constant dense<0.000000e+00> : vector<32x128xf32>
    %71 = tpu.matmul %69, %70, %cst_57 {dimension_numbers = #tpu.dot_dimension_numbers<[1], [0], [0], [1], [0, 0, 1, 1], [], []>} : vector<32x128xbf16>, vector<128x128xbf16>, vector<32x128xf32> -> vector<32x128xf32>
    %72 = vector.extract_strided_slice %71 {offsets = [0, 0], sizes = [8, 128], strides = [1, 1]} : vector<32x128xf32> to vector<8x128xf32>
    %73 = arith.truncf %72 : vector<8x128xf32> to vector<8x128xbf16>
    %c0_58 = arith.constant 0 : index
    %c0_59 = arith.constant 0 : index
    %74 = vector.load %arg8[%c0_58, %c0_59] : memref<512x128xbf16, #tpu.memory_space<vmem>>, vector<128x128xbf16>
    %cst_60 = arith.constant dense<0.000000e+00> : vector<8x128xf32>
    %75 = tpu.matmul %73, %74, %cst_60 {dimension_numbers = #tpu.dot_dimension_numbers<[1], [0], [0], [1], [0, 0, 1, 1], [], []>} : vector<8x128xbf16>, vector<128x128xbf16>, vector<8x128xf32> -> vector<8x128xf32>
    %76 = vector.extract_strided_slice %71 {offsets = [8, 0], sizes = [8, 128], strides = [1, 1]} : vector<32x128xf32> to vector<8x128xf32>
    %77 = arith.truncf %76 : vector<8x128xf32> to vector<8x128xbf16>
    %c128 = arith.constant 128 : index
    %c0_61 = arith.constant 0 : index
    %78 = vector.load %arg8[%c128, %c0_61] : memref<512x128xbf16, #tpu.memory_space<vmem>>, vector<128x128xbf16>
    %cst_62 = arith.constant dense<0.000000e+00> : vector<8x128xf32>
    %79 = tpu.matmul %77, %78, %cst_62 {dimension_numbers = #tpu.dot_dimension_numbers<[1], [0], [0], [1], [0, 0, 1, 1], [], []>} : vector<8x128xbf16>, vector<128x128xbf16>, vector<8x128xf32> -> vector<8x128xf32>
    %80 = vector.extract_strided_slice %71 {offsets = [16, 0], sizes = [8, 128], strides = [1, 1]} : vector<32x128xf32> to vector<8x128xf32>
    %81 = arith.truncf %80 : vector<8x128xf32> to vector<8x128xbf16>
    %c256_63 = arith.constant 256 : index
    %c0_64 = arith.constant 0 : index
    %82 = vector.load %arg8[%c256_63, %c0_64] : memref<512x128xbf16, #tpu.memory_space<vmem>>, vector<128x128xbf16>
    %cst_65 = arith.constant dense<0.000000e+00> : vector<8x128xf32>
    %83 = tpu.matmul %81, %82, %cst_65 {dimension_numbers = #tpu.dot_dimension_numbers<[1], [0], [0], [1], [0, 0, 1, 1], [], []>} : vector<8x128xbf16>, vector<128x128xbf16>, vector<8x128xf32> -> vector<8x128xf32>
    %84 = arith.addf %75, %83 : vector<8x128xf32>
    %85 = vector.extract_strided_slice %71 {offsets = [24, 0], sizes = [8, 128], strides = [1, 1]} : vector<32x128xf32> to vector<8x128xf32>
    %86 = arith.truncf %85 : vector<8x128xf32> to vector<8x128xbf16>
    %c384 = arith.constant 384 : index
    %c0_66 = arith.constant 0 : index
    %87 = vector.load %arg8[%c384, %c0_66] : memref<512x128xbf16, #tpu.memory_space<vmem>>, vector<128x128xbf16>
    %cst_67 = arith.constant dense<0.000000e+00> : vector<8x128xf32>
    %88 = tpu.matmul %86, %87, %cst_67 {dimension_numbers = #tpu.dot_dimension_numbers<[1], [0], [0], [1], [0, 0, 1, 1], [], []>} : vector<8x128xbf16>, vector<128x128xbf16>, vector<8x128xf32> -> vector<8x128xf32>
    %89 = arith.addf %79, %88 : vector<8x128xf32>
    %90 = arith.addf %84, %89 : vector<8x128xf32>
    %c0_68 = arith.constant 0 : index
    %c0_69 = arith.constant 0 : index
    %91 = vector.load %arg9[%c0_68, %c0_69] : memref<1x128xf32, #tpu.memory_space<vmem>>, vector<1x128xf32>
    %92 = vector.broadcast %91 : vector<1x128xf32> to vector<8x128xf32>
    %93 = arith.addf %90, %92 : vector<8x128xf32>
    %cst_70 = arith.constant 0.000000e+00 : f32
    %94 = vector.broadcast %cst_70 : f32 to vector<8x128xf32>
    %95 = arith.maximumf %93, %94 : vector<8x128xf32>
    %96 = arith.truncf %95 : vector<8x128xf32> to vector<8x128xbf16>
    %c0_71 = arith.constant 0 : index
    %c0_72 = arith.constant 0 : index
    %97 = vector.load %arg10[%c0_71, %c0_72] : memref<128x128xbf16, #tpu.memory_space<vmem>>, vector<128x128xbf16>
    %cst_73 = arith.constant dense<0.000000e+00> : vector<8x128xf32>
    %98 = tpu.matmul %96, %97, %cst_73 {dimension_numbers = #tpu.dot_dimension_numbers<[1], [0], [0], [1], [0, 0, 1, 1], [], []>} : vector<8x128xbf16>, vector<128x128xbf16>, vector<8x128xf32> -> vector<8x128xf32>
    %c0_74 = arith.constant 0 : index
    %c0_75 = arith.constant 0 : index
    %99 = vector.load %arg11[%c0_74, %c0_75] : memref<1x128xf32, #tpu.memory_space<vmem>>, vector<1x128xf32>
    %100 = vector.broadcast %99 : vector<1x128xf32> to vector<8x128xf32>
    %101 = arith.addf %98, %100 : vector<8x128xf32>
    %cst_76 = arith.constant 0.000000e+00 : f32
    %102 = vector.broadcast %cst_76 : f32 to vector<8x128xf32>
    %103 = arith.maximumf %101, %102 : vector<8x128xf32>
    %104 = arith.truncf %103 : vector<8x128xf32> to vector<8x128xbf16>
    %c0_77 = arith.constant 0 : index
    %c0_78 = arith.constant 0 : index
    %105 = vector.load %arg12[%c0_77, %c0_78] : memref<128x128xbf16, #tpu.memory_space<vmem>>, vector<128x128xbf16>
    %cst_79 = arith.constant dense<0.000000e+00> : vector<8x128xf32>
    %106 = tpu.matmul %104, %105, %cst_79 {dimension_numbers = #tpu.dot_dimension_numbers<[1], [0], [0], [1], [0, 0, 1, 1], [], []>} : vector<8x128xbf16>, vector<128x128xbf16>, vector<8x128xf32> -> vector<8x128xf32>
    %c0_80 = arith.constant 0 : index
    %c0_81 = arith.constant 0 : index
    %107 = vector.load %arg13[%c0_80, %c0_81] : memref<1x128xf32, #tpu.memory_space<vmem>>, vector<1x128xf32>
    %108 = vector.broadcast %107 : vector<1x128xf32> to vector<8x128xf32>
    %109 = arith.addf %106, %108 : vector<8x128xf32>
    %c0_82 = arith.constant 0 : index
    %c0_83 = arith.constant 0 : index
    %110 = vector.load %arg14[%c0_82, %c0_83] : memref<8x128xf32, #tpu.memory_space<vmem>>, vector<8x128xf32>
    tpu.vector_store %arg14[%c0_82, %c0_83], %109 {strides = array<i32>} : memref<8x128xf32, #tpu.memory_space<vmem>>, vector<8x128xf32>,
    return
  }
  func.func @transform_0(%arg0: i32) -> (i32, i32) {
    %c0_i32 = arith.constant 0 : i32
    %c0_i32_0 = arith.constant 0 : i32
    return %arg0, %c0_i32 : i32, i32
  }
  func.func @transform_1(%arg0: i32) -> (i32, i32) {
    %c0_i32 = arith.constant 0 : i32
    %c0_i32_0 = arith.constant 0 : i32
    %c0_i32_1 = arith.constant 0 : i32
    return %c0_i32, %c0_i32_0 : i32, i32
  }
  func.func @transform_2(%arg0: i32) -> (i32, i32) {
    %c0_i32 = arith.constant 0 : i32
    %c0_i32_0 = arith.constant 0 : i32
    %c0_i32_1 = arith.constant 0 : i32
    return %c0_i32, %c0_i32_0 : i32, i32
  }
  func.func @transform_3(%arg0: i32) -> (i32, i32) {
    %c0_i32 = arith.constant 0 : i32
    %c0_i32_0 = arith.constant 0 : i32
    %c0_i32_1 = arith.constant 0 : i32
    return %c0_i32, %c0_i32_0 : i32, i32
  }
  func.func @transform_4(%arg0: i32) -> (i32, i32) {
    %c0_i32 = arith.constant 0 : i32
    %c0_i32_0 = arith.constant 0 : i32
    %c0_i32_1 = arith.constant 0 : i32
    return %c0_i32, %c0_i32_0 : i32, i32
  }
  func.func @transform_5(%arg0: i32) -> (i32, i32) {
    %c0_i32 = arith.constant 0 : i32
    %c0_i32_0 = arith.constant 0 : i32
    %c0_i32_1 = arith.constant 0 : i32
    return %c0_i32, %c0_i32_0 : i32, i32
  }
  func.func @transform_6(%arg0: i32) -> (i32, i32) {
    %c0_i32 = arith.constant 0 : i32
    %c0_i32_0 = arith.constant 0 : i32
    %c0_i32_1 = arith.constant 0 : i32
    return %c0_i32, %c0_i32_0 : i32, i32
  }
  func.func @transform_7(%arg0: i32) -> (i32, i32) {
    %c0_i32 = arith.constant 0 : i32
    %c0_i32_0 = arith.constant 0 : i32
    %c0_i32_1 = arith.constant 0 : i32
    return %c0_i32, %c0_i32_0 : i32, i32
  }
  func.func @transform_8(%arg0: i32) -> (i32, i32) {
    %c0_i32 = arith.constant 0 : i32
    %c0_i32_0 = arith.constant 0 : i32
    %c0_i32_1 = arith.constant 0 : i32
    return %c0_i32, %c0_i32_0 : i32, i32
  }
  func.func @transform_9(%arg0: i32) -> (i32, i32) {
    %c0_i32 = arith.constant 0 : i32
    %c0_i32_0 = arith.constant 0 : i32
    %c0_i32_1 = arith.constant 0 : i32
    return %c0_i32, %c0_i32_0 : i32, i32
  }
  func.func @transform_10(%arg0: i32) -> (i32, i32) {
    %c0_i32 = arith.constant 0 : i32
    %c0_i32_0 = arith.constant 0 : i32
    %c0_i32_1 = arith.constant 0 : i32
    return %c0_i32, %c0_i32_0 : i32, i32
  }
  func.func @transform_11(%arg0: i32) -> (i32, i32) {
    %c0_i32 = arith.constant 0 : i32
    %c0_i32_0 = arith.constant 0 : i32
    %c0_i32_1 = arith.constant 0 : i32
    return %c0_i32, %c0_i32_0 : i32, i32
  }
  func.func @transform_12(%arg0: i32) -> (i32, i32) {
    %c0_i32 = arith.constant 0 : i32
    %c0_i32_0 = arith.constant 0 : i32
    %c0_i32_1 = arith.constant 0 : i32
    return %c0_i32, %c0_i32_0 : i32, i32
  }
  func.func @transform_13(%arg0: i32) -> (i32, i32) {
    %c0_i32 = arith.constant 0 : i32
    %c0_i32_0 = arith.constant 0 : i32
    return %arg0, %c0_i32 : i32, i32
  }
}

</mosaic_0001>

<llo_original>
// kernel: _lambda_.1
$region0: #{_lambda_.1}
  #allocation0 [shape = 'u32[]', space=smem, size = 0x4, offset = 0x4, fixed_abs, tag = 'smem constant byte address 0x4 - core index']
  #allocation1 [shape = 'u32[144,128]{1,0:T(1,128)}', space=vmem, size = 0x12000, scoped, tag = 'internal scratch']
  #allocation2 [shape = 'f32[400,128]{1,0:T(8,128)}', space=vmem, size = 0x32000, scoped, tag = 'scratch operand']
  #allocation3 [shape = 'f32[160,128]{1,0:T(8,128)}', space=vmem, size = 0x14000, scoped, tag = 'scratch operand']
  #allocation4 [shape = 'f32[144,128]{1,0:T(8,128)}', space=vmem, size = 0x12000, scoped, tag = 'scratch operand']
  %s0 = inlined_call_operand.vmem [shape: bf16[400,128], index: 0, kind: input, shape index: {}]
  %s1 = inlined_call_operand.vmem [shape: bf16[128,128], index: 1, kind: input, shape index: {}]
  %s2 = inlined_call_operand.vmem [shape: f32[1,128], index: 2, kind: input, shape index: {}]
  %s3 = inlined_call_operand.vmem [shape: bf16[160,384], index: 3, kind: input, shape index: {}]
  %s4 = inlined_call_operand.vmem [shape: bf16[1152,128], index: 4, kind: input, shape index: {}]
  %s5 = inlined_call_operand.vmem [shape: f32[1,128], index: 5, kind: input, shape index: {}]
  %s6 = inlined_call_operand.vmem [shape: bf16[32,128], index: 6, kind: input, shape index: {}]
  %s7 = inlined_call_operand.vmem [shape: bf16[512,128], index: 7, kind: input, shape index: {}]
  %s8 = inlined_call_operand.vmem [shape: f32[1,128], index: 8, kind: input, shape index: {}]
  %s9 = inlined_call_operand.vmem [shape: bf16[128,128], index: 9, kind: input, shape index: {}]
  %s10 = inlined_call_operand.vmem [shape: f32[1,128], index: 10, kind: input, shape index: {}]
  %s11 = inlined_call_operand.vmem [shape: bf16[128,128], index: 11, kind: input, shape index: {}]
  %s12 = inlined_call_operand.vmem [shape: f32[1,128], index: 12, kind: input, shape index: {}]
  %s13 = inlined_call_operand.vmem [shape: f32[8,128], index: 13, kind: output, shape index: {}]
  %s14 = sld [smem:[#allocation0]]
  $region62: #{_lambda_.1} parent=0
    _
  %s16 = ssub.s32 1, %s14
  %s17 = scalar_select 0, %s16, %s14
  // Predicated region
  $region2: #{_lambda_.1} parent=0 // pred_check
    _
  $region3: #{_lambda_.1} parent=0 // pred_check_branch
    %19 = sbr.rel (0) target = $region5
  $region4: #{_lambda_.1} parent=0 // pred_region
    _
  $region5: #{_lambda_.1} parent=0 // pred_fallthru
    _
  // Predicated region
  $region6: #{_lambda_.1} parent=0 // pred_check
    _
  $region7: #{_lambda_.1} parent=0 // pred_check_branch
    %21 = sbr.rel (0) target = $region9
  $region8: #{_lambda_.1} parent=0 // pred_region
    _
  $region9: #{_lambda_.1} parent=0 // pred_fallthru
    _
  // Predicated region
  $region10: #{_lambda_.1} parent=0 // pred_check
    _
  $region11: #{_lambda_.1} parent=0 // pred_check_branch
    %23 = sbr.rel (0) target = $region13
  $region12: #{_lambda_.1} parent=0 // pred_region
    _
  $region13: #{_lambda_.1} parent=0 // pred_fallthru
    _
  // Predicated region
  $region14: #{_lambda_.1} parent=0 // pred_check
    _
  $region15: #{_lambda_.1} parent=0 // pred_check_branch
    %25 = sbr.rel (0) target = $region17
  $region16: #{_lambda_.1} parent=0 // pred_region
    _
  $region17: #{_lambda_.1} parent=0 // pred_fallthru
    _
  // Predicated region
  $region18: #{_lambda_.1} parent=0 // pred_check
    _
  $region19: #{_lambda_.1} parent=0 // pred_check_branch
    %27 = sbr.rel (0) target = $region21
  $region20: #{_lambda_.1} parent=0 // pred_region
    _
  $region21: #{_lambda_.1} parent=0 // pred_fallthru
    _
  // Predicated region
  $region22: #{_lambda_.1} parent=0 // pred_check
    _
  $region23: #{_lambda_.1} parent=0 // pred_check_branch
    %29 = sbr.rel (0) target = $region25
  $region24: #{_lambda_.1} parent=0 // pred_region
    _
  $region25: #{_lambda_.1} parent=0 // pred_fallthru
    _
  // Predicated region
  $region26: #{_lambda_.1} parent=0 // pred_check
    _
  $region27: #{_lambda_.1} parent=0 // pred_check_branch
    %31 = sbr.rel (0) target = $region29
  $region28: #{_lambda_.1} parent=0 // pred_region
    _
  $region29: #{_lambda_.1} parent=0 // pred_fallthru
    _
  // Predicated region
  $region30: #{_lambda_.1} parent=0 // pred_check
    _
  $region31: #{_lambda_.1} parent=0 // pred_check_branch
    %33 = sbr.rel (0) target = $region33
  $region32: #{_lambda_.1} parent=0 // pred_region
    _
  $region33: #{_lambda_.1} parent=0 // pred_fallthru
    _
  // Predicated region
  $region34: #{_lambda_.1} parent=0 // pred_check
    _
  $region35: #{_lambda_.1} parent=0 // pred_check_branch
    %35 = sbr.rel (0) target = $region37
  $region36: #{_lambda_.1} parent=0 // pred_region
    _
  $region37: #{_lambda_.1} parent=0 // pred_fallthru
    _
  // Predicated region
  $region38: #{_lambda_.1} parent=0 // pred_check
    _
  $region39: #{_lambda_.1} parent=0 // pred_check_branch
    %37 = sbr.rel (0) target = $region41
  $region40: #{_lambda_.1} parent=0 // pred_region
    _
  $region41: #{_lambda_.1} parent=0 // pred_fallthru
    _
  // Predicated region
  $region42: #{_lambda_.1} parent=0 // pred_check
    _
  $region43: #{_lambda_.1} parent=0 // pred_check_branch
    %39 = sbr.rel (0) target = $region45
  $region44: #{_lambda_.1} parent=0 // pred_region
    _
  $region45: #{_lambda_.1} parent=0 // pred_fallthru
    _
  // Predicated region
  $region46: #{_lambda_.1} parent=0 // pred_check
    _
  $region47: #{_lambda_.1} parent=0 // pred_check_branch
    %41 = sbr.rel (0) target = $region49
  $region48: #{_lambda_.1} parent=0 // pred_region
    _
  $region49: #{_lambda_.1} parent=0 // pred_fallthru
    _
  // Predicated region
  $region50: #{_lambda_.1} parent=0 // pred_check
    _
  $region51: #{_lambda_.1} parent=0 // pred_check_branch
    %43 = sbr.rel (0) target = $region53
  $region52: #{_lambda_.1} parent=0 // pred_region
    _
  $region53: #{_lambda_.1} parent=0 // pred_fallthru
    _
  %v45 = vld [vmem:[%s0] sm:$0xf]
  %v46 = vld [vmem:[%s0 + $0x4] sm:$0xf]
  %v47 = vld [vmem:[%s0 + $0x8] sm:$0xf]
  %v48 = vld [vmem:[%s0 + $0xc] sm:$0xf]
  %v49 = vld [vmem:[%s0 + $0x10] sm:$0xf]
  %v50 = vld [vmem:[%s0 + $0x14] sm:$0xf]
  %v51 = vld [vmem:[%s0 + $0x18] sm:$0xf]
  %v52 = vld [vmem:[%s0 + $0x1c] sm:$0xf]
  %v53 = vld [vmem:[%s0 + $0x20] sm:$0xf]
  %v54 = vld [vmem:[%s0 + $0x24] sm:$0xf]
  %v55 = vld [vmem:[%s0 + $0x28] sm:$0xf]
  %v56 = vld [vmem:[%s0 + $0x2c] sm:$0xf]
  %v57 = vld [vmem:[%s0 + $0x30] sm:$0xf]
  %v58 = vld [vmem:[%s0 + $0x34] sm:$0xf]
  %v59 = vld [vmem:[%s0 + $0x38] sm:$0xf]
  %v60 = vld [vmem:[%s0 + $0x3c] sm:$0xf]
  %v61 = vld [vmem:[%s0 + $0x40] sm:$0xf]
  %v62 = vld [vmem:[%s0 + $0x44] sm:$0xf]
  %v63 = vld [vmem:[%s0 + $0x48] sm:$0xf]
  %v64 = vld [vmem:[%s0 + $0x4c] sm:$0xf]
  %v65 = vld [vmem:[%s0 + $0x50] sm:$0xf]
  %v66 = vld [vmem:[%s0 + $0x54] sm:$0xf]
  %v67 = vld [vmem:[%s0 + $0x58] sm:$0xf]
  %v68 = vld [vmem:[%s0 + $0x5c] sm:$0xf]
  %v69 = vld [vmem:[%s0 + $0x60] sm:$0xf]
  %v70 = vld [vmem:[%s0 + $0x64] sm:$0xf]
  %v71 = vld [vmem:[%s0 + $0x68] sm:$0xf]
  %v72 = vld [vmem:[%s0 + $0x6c] sm:$0xf]
  %v73 = vld [vmem:[%s0 + $0x70] sm:$0xf]
  %v74 = vld [vmem:[%s0 + $0x74] sm:$0xf]
  %v75 = vld [vmem:[%s0 + $0x78] sm:$0xf]
  %v76 = vld [vmem:[%s0 + $0x7c] sm:$0xf]
  %v77 = vld [vmem:[%s0 + $0x80] sm:$0xf]
  %v78 = vld [vmem:[%s0 + $0x84] sm:$0xf]
  %v79 = vld [vmem:[%s0 + $0x88] sm:$0xf]
  %v80 = vld [vmem:[%s0 + $0x8c] sm:$0xf]
  %v81 = vld [vmem:[%s0 + $0x90] sm:$0xf]
  %v82 = vld [vmem:[%s0 + $0x94] sm:$0xf]
  %v83 = vld [vmem:[%s0 + $0x98] sm:$0xf]
  %v84 = vld [vmem:[%s0 + $0x9c] sm:$0xf]
  %v85 = vld [vmem:[%s0 + $0xa0] sm:$0xf]
  %v86 = vld [vmem:[%s0 + $0xa4] sm:$0xf]
  %v87 = vld [vmem:[%s0 + $0xa8] sm:$0xf]
  %v88 = vld [vmem:[%s0 + $0xac] sm:$0xf]
  %v89 = vld [vmem:[%s0 + $0xb0] sm:$0xf]
  %v90 = vld [vmem:[%s0 + $0xb4] sm:$0xf]
  %v91 = vld [vmem:[%s0 + $0xb8] sm:$0xf]
  %v92 = vld [vmem:[%s0 + $0xbc] sm:$0xf]
  %v93 = vld [vmem:[%s0 + $0xc0] sm:$0xf]
  %v94 = vld [vmem:[%s0 + $0xc4] sm:$0xf]
  %v95 = vld [vmem:[%s1] sm:$0xf]
  %v96 = vld [vmem:[%s1 + $0x4] sm:$0xf]
  %v97 = vld [vmem:[%s1 + $0x8] sm:$0xf]
  %v98 = vld [vmem:[%s1 + $0xc] sm:$0xf]
  %v99 = vld [vmem:[%s1 + $0x10] sm:$0xf]
  %v100 = vld [vmem:[%s1 + $0x14] sm:$0xf]
  %v101 = vld [vmem:[%s1 + $0x18] sm:$0xf]
  %v102 = vld [vmem:[%s1 + $0x1c] sm:$0xf]
  %v103 = vld [vmem:[%s1 + $0x20] sm:$0xf]
  %v104 = vld [vmem:[%s1 + $0x24] sm:$0xf]
  %v105 = vld [vmem:[%s1 + $0x28] sm:$0xf]
  %v106 = vld [vmem:[%s1 + $0x2c] sm:$0xf]
  %v107 = vld [vmem:[%s1 + $0x30] sm:$0xf]
  %v108 = vld [vmem:[%s1 + $0x34] sm:$0xf]
  %v109 = vld [vmem:[%s1 + $0x38] sm:$0xf]
  %v110 = vld [vmem:[%s1 + $0x3c] sm:$0xf]
  %v111 = vld [vmem:[%s2] sm:$0x1]
  %v113 = vlaneseq
  %v114 = vshrl.u32 %v113, 7
  %v115 = vsub.s32 0, %v114
  %v116 = vrot.slane %v111, %v115
  %v168 = vunpack.c.l.b16 %v45
  %v169 = vunpack.c.l.b16 %v46
  %v170 = vunpack.c.l.b16 %v47
  %v171 = vunpack.c.l.b16 %v48
  %v172 = vunpack.c.l.b16 %v49
  %v173 = vunpack.c.l.b16 %v50
  %v174 = vunpack.c.l.b16 %v51
  %v175 = vunpack.c.l.b16 %v52
  %v176 = vunpack.c.l.b16 %v53
  %v177 = vunpack.c.l.b16 %v54
  %v178 = vunpack.c.l.b16 %v55
  %v179 = vunpack.c.l.b16 %v56
  %v180 = vunpack.c.l.b16 %v57
  %v181 = vunpack.c.l.b16 %v58
  %v182 = vunpack.c.l.b16 %v59
  %v183 = vunpack.c.l.b16 %v60
  %v184 = vunpack.c.l.b16 %v61
  %v185 = vunpack.c.l.b16 %v62
  %v186 = vunpack.c.l.b16 %v63
  %v187 = vunpack.c.l.b16 %v64
  %v188 = vunpack.c.l.b16 %v65
  %v189 = vunpack.c.l.b16 %v66
  %v190 = vunpack.c.l.b16 %v67
  %v191 = vunpack.c.l.b16 %v68
  %v192 = vunpack.c.l.b16 %v69
  %v193 = vunpack.c.l.b16 %v70
  %v194 = vunpack.c.l.b16 %v71
  %v195 = vunpack.c.l.b16 %v72
  %v196 = vunpack.c.l.b16 %v73
  %v197 = vunpack.c.l.b16 %v74
  %v198 = vunpack.c.l.b16 %v75
  %v199 = vunpack.c.l.b16 %v76
  %v200 = vunpack.c.l.b16 %v77
  %v201 = vunpack.c.l.b16 %v78
  %v202 = vunpack.c.l.b16 %v79
  %v203 = vunpack.c.l.b16 %v80
  %v204 = vunpack.c.l.b16 %v81
  %v205 = vunpack.c.l.b16 %v82
  %v206 = vunpack.c.l.b16 %v83
  %v207 = vunpack.c.l.b16 %v84
  %v208 = vunpack.c.l.b16 %v85
  %v209 = vunpack.c.l.b16 %v86
  %v210 = vunpack.c.l.b16 %v87
  %v211 = vunpack.c.l.b16 %v88
  %v212 = vunpack.c.l.b16 %v89
  %v213 = vunpack.c.l.b16 %v90
  %v214 = vunpack.c.l.b16 %v91
  %v215 = vunpack.c.l.b16 %v92
  %v216 = vunpack.c.l.b16 %v93
  %v217 = vunpack.c.l.b16 %v94
  %v218 = vpack.c.b16 %v169, %v168
  %v219 = vpack.c.b16 %v171, %v170
  %v220 = vpack.c.b16 %v173, %v172
  %v221 = vpack.c.b16 %v175, %v174
  %v222 = vpack.c.b16 %v177, %v176
  %v223 = vpack.c.b16 %v179, %v178
  %v224 = vpack.c.b16 %v181, %v180
  %v225 = vpack.c.b16 %v183, %v182
  %v226 = vpack.c.b16 %v185, %v184
  %v227 = vpack.c.b16 %v187, %v186
  %v228 = vpack.c.b16 %v189, %v188
  %v229 = vpack.c.b16 %v191, %v190
  %v230 = vpack.c.b16 %v193, %v192
  %v231 = vpack.c.b16 %v195, %v194
  %v232 = vpack.c.b16 %v197, %v196
  %v233 = vpack.c.b16 %v199, %v198
  %v234 = vpack.c.b16 %v201, %v200
  %v235 = vpack.c.b16 %v203, %v202
  %v236 = vpack.c.b16 %v205, %v204
  %v237 = vpack.c.b16 %v207, %v206
  %v238 = vpack.c.b16 %v209, %v208
  %v239 = vpack.c.b16 %v211, %v210
  %v240 = vpack.c.b16 %v213, %v212
  %v241 = vpack.c.b16 %v215, %v214
  %v242 = vpack.c.b16 %v217, %v216
  %v284 = vunpack.c.l.b16 %v95
  %v285 = vunpack.c.l.b16 %v96
  %v286 = vunpack.c.l.b16 %v97
  %v287 = vunpack.c.l.b16 %v98
  %v288 = vunpack.c.l.b16 %v99
  %v289 = vunpack.c.l.b16 %v100
  %v290 = vunpack.c.l.b16 %v101
  %v291 = vunpack.c.l.b16 %v102
  %v292 = vunpack.c.l.b16 %v103
  %v293 = vunpack.c.l.b16 %v104
  %v294 = vunpack.c.l.b16 %v105
  %v295 = vunpack.c.l.b16 %v106
  %v296 = vunpack.c.l.b16 %v107
  %v297 = vunpack.c.l.b16 %v108
  %v298 = vunpack.c.l.b16 %v109
  %v299 = vunpack.c.l.b16 %v110
  %v300 = vpack.c.b16 %v285, %v284
  %v301 = vpack.c.b16 %v287, %v286
  %v302 = vpack.c.b16 %v289, %v288
  %v303 = vpack.c.b16 %v291, %v290
  %v304 = vpack.c.b16 %v293, %v292
  %v305 = vpack.c.b16 %v295, %v294
  %v306 = vpack.c.b16 %v297, %v296
  %v307 = vpack.c.b16 %v299, %v298
  %316 = vmatprep.subr.bf16.mxu0 0
  %317 = vmatpush1.bf16.msra.mxu0 %v300
  %318 = vmatprep.subr.bf16.mxu0 0
  %319 = vmatpush1.bf16.msra.mxu0 %v301
  %320 = vmatprep.subr.bf16.mxu0 0
  %321 = vmatpush1.bf16.msra.mxu0 %v302
  %322 = vmatprep.subr.bf16.mxu0 0
  %323 = vmatpush1.bf16.msra.mxu0 %v303
  %324 = vmatprep.subr.bf16.mxu0 0
  %325 = vmatpush1.bf16.msra.mxu0 %v304
  %326 = vmatprep.subr.bf16.mxu0 0
  %327 = vmatpush1.bf16.msra.mxu0 %v305
  %328 = vmatprep.subr.bf16.mxu0 0
  %329 = vmatpush1.bf16.msra.mxu0 %v306
  %330 = vmatprep.subr.bf16.mxu0 0
  %331 = vmatpush1.bf16.msra.mxu0 %v307
  %332 = vmatprep.subr.bf16.mxu0 0
  %333 = vmatpush1.bf16.msra.mxu0 0
  %334 = vmatprep.subr.bf16.mxu0 0
  %335 = vmatpush1.bf16.msra.mxu0 0
  %336 = vmatprep.subr.bf16.mxu0 0
  %337 = vmatpush1.bf16.msra.mxu0 0
  %338 = vmatprep.subr.bf16.mxu0 0
  %339 = vmatpush1.bf16.msra.mxu0 0
  %340 = vmatprep.subr.bf16.mxu0 0
  %341 = vmatpush1.bf16.msra.mxu0 0
  %342 = vmatprep.subr.bf16.mxu0 0
  %343 = vmatpush1.bf16.msra.mxu0 0
  %344 = vmatprep.subr.bf16.mxu0 0
  %345 = vmatpush1.bf16.msra.mxu0 0
  %346 = vmatprep.subr.bf16.mxu0 0
  %347 = vmatpush1.bf16.msra.mxu0 0
  %348 = vmatprep.mubr.bf16.mxu0 0
  %349 = vmatmul.mubr.bf16.gmra.mrb[0].mxu0 %v218
  %v350 = vpop.f32.mrb[0].mxu0
  %v351 = vadd.f32 %v116, %v350
  %v352 = vpop.f32.mrb[0].mxu0
  %v353 = vpop.f32.mrb[0].mxu0
  %v354 = vadd.f32 %v116, %v353
  %v355 = vpop.f32.mrb[0].mxu0
  %356 = vmatprep.mubr.bf16.mxu0 0
  %357 = vmatmul.mubr.bf16.gmra.mrb[0].mxu0 %v219
  %v358 = vpop.f32.mrb[0].mxu0
  %v359 = vadd.f32 %v116, %v358
  %v360 = vpop.f32.mrb[0].mxu0
  %v361 = vpop.f32.mrb[0].mxu0
  %v362 = vadd.f32 %v116, %v361
  %v363 = vpop.f32.mrb[0].mxu0
  %364 = vmatprep.mubr.bf16.mxu0 0
  %365 = vmatmul.mubr.bf16.gmra.mrb[0].mxu0 %v220
  %v366 = vpop.f32.mrb[0].mxu0
  %v367 = vadd.f32 %v116, %v366
  %v368 = vpop.f32.mrb[0].mxu0
  %v369 = vpop.f32.mrb[0].mxu0
  %v370 = vadd.f32 %v116, %v369
  %v371 = vpop.f32.mrb[0].mxu0
  %372 = vmatprep.mubr.bf16.mxu0 0
  %373 = vmatmul.mubr.bf16.gmra.mrb[0].mxu0 %v221
  %v374 = vpop.f32.mrb[0].mxu0
  %v375 = vadd.f32 %v116, %v374
  %v376 = vpop.f32.mrb[0].mxu0
  %v377 = vpop.f32.mrb[0].mxu0
  %v378 = vadd.f32 %v116, %v377
  %v379 = vpop.f32.mrb[0].mxu0
  %380 = vmatprep.mubr.bf16.mxu0 0
  %381 = vmatmul.mubr.bf16.gmra.mrb[0].mxu0 %v222
  %v382 = vpop.f32.mrb[0].mxu0
  %v383 = vadd.f32 %v116, %v382
  %v384 = vpop.f32.mrb[0].mxu0
  %v385 = vpop.f32.mrb[0].mxu0
  %v386 = vadd.f32 %v116, %v385
  %v387 = vpop.f32.mrb[0].mxu0
  %388 = vmatprep.mubr.bf16.mxu0 0
  %389 = vmatmul.mubr.bf16.gmra.mrb[0].mxu0 %v223
  %v390 = vpop.f32.mrb[0].mxu0
  %v391 = vadd.f32 %v116, %v390
  %v392 = vpop.f32.mrb[0].mxu0
  %v393 = vpop.f32.mrb[0].mxu0
  %v394 = vadd.f32 %v116, %v393
  %v395 = vpop.f32.mrb[0].mxu0
  %396 = vmatprep.mubr.bf16.mxu0 0
  %397 = vmatmul.mubr.bf16.gmra.mrb[0].mxu0 %v224
  %v398 = vpop.f32.mrb[0].mxu0
  %v399 = vadd.f32 %v116, %v398
  %v400 = vpop.f32.mrb[0].mxu0
  %v401 = vpop.f32.mrb[0].mxu0
  %v402 = vadd.f32 %v116, %v401
  %v403 = vpop.f32.mrb[0].mxu0
  %404 = vmatprep.mubr.bf16.mxu0 0
  %405 = vmatmul.mubr.bf16.gmra.mrb[0].mxu0 %v225
  %v406 = vpop.f32.mrb[0].mxu0
  %v407 = vadd.f32 %v116, %v406
  %v408 = vpop.f32.mrb[0].mxu0
  %v409 = vpop.f32.mrb[0].mxu0
  %v410 = vadd.f32 %v116, %v409
  %v411 = vpop.f32.mrb[0].mxu0
  %412 = vmatprep.mubr.bf16.mxu0 0
  %413 = vmatmul.mubr.bf16.gmra.mrb[0].mxu0 %v226
  %v414 = vpop.f32.mrb[0].mxu0
  %v415 = vadd.f32 %v116, %v414
  %v416 = vpop.f32.mrb[0].mxu0
  %v417 = vpop.f32.mrb[0].mxu0
  %v418 = vadd.f32 %v116, %v417
  %v419 = vpop.f32.mrb[0].mxu0
  %420 = vmatprep.mubr.bf16.mxu0 0
  %421 = vmatmul.mubr.bf16.gmra.mrb[0].mxu0 %v227
  %v422 = vpop.f32.mrb[0].mxu0
  %v423 = vadd.f32 %v116, %v422
  %v424 = vpop.f32.mrb[0].mxu0
  %v425 = vpop.f32.mrb[0].mxu0
  %v426 = vadd.f32 %v116, %v425
  %v427 = vpop.f32.mrb[0].mxu0
  %428 = vmatprep.mubr.bf16.mxu0 0
  %429 = vmatmul.mubr.bf16.gmra.mrb[0].mxu0 %v228
  %v430 = vpop.f32.mrb[0].mxu0
  %v431 = vadd.f32 %v116, %v430
  %v432 = vpop.f32.mrb[0].mxu0
  %v433 = vpop.f32.mrb[0].mxu0
  %v434 = vadd.f32 %v116, %v433
  %v435 = vpop.f32.mrb[0].mxu0
  %436 = vmatprep.mubr.bf16.mxu0 0
  %437 = vmatmul.mubr.bf16.gmra.mrb[0].mxu0 %v229
  %v438 = vpop.f32.mrb[0].mxu0
  %v439 = vadd.f32 %v116, %v438
  %v440 = vpop.f32.mrb[0].mxu0
  %v441 = vpop.f32.mrb[0].mxu0
  %v442 = vadd.f32 %v116, %v441
  %v443 = vpop.f32.mrb[0].mxu0
  %444 = vmatprep.mubr.bf16.mxu0 0
  %445 = vmatmul.mubr.bf16.gmra.mrb[0].mxu0 %v230
  %v446 = vpop.f32.mrb[0].mxu0
  %v447 = vadd.f32 %v116, %v446
  %v448 = vpop.f32.mrb[0].mxu0
  %v449 = vpop.f32.mrb[0].mxu0
  %v450 = vadd.f32 %v116, %v449
  %v451 = vpop.f32.mrb[0].mxu0
  %452 = vmatprep.mubr.bf16.mxu0 0
  %453 = vmatmul.mubr.bf16.gmra.mrb[0].mxu0 %v231
  %v454 = vpop.f32.mrb[0].mxu0
  %v455 = vadd.f32 %v116, %v454
  %v456 = vpop.f32.mrb[0].mxu0
  %v457 = vpop.f32.mrb[0].mxu0
  %v458 = vadd.f32 %v116, %v457
  %v459 = vpop.f32.mrb[0].mxu0
  %460 = vmatprep.mubr.bf16.mxu0 0
  %461 = vmatmul.mubr.bf16.gmra.mrb[0].mxu0 %v232
  %v462 = vpop.f32.mrb[0].mxu0
  %v463 = vadd.f32 %v116, %v462
  %v464 = vpop.f32.mrb[0].mxu0
  %v465 = vpop.f32.mrb[0].mxu0
  %v466 = vadd.f32 %v116, %v465
  %v467 = vpop.f32.mrb[0].mxu0
  %468 = vmatprep.mubr.bf16.mxu0 0
  %469 = vmatmul.mubr.bf16.gmra.mrb[0].mxu0 %v233
  %v470 = vpop.f32.mrb[0].mxu0
  %v471 = vadd.f32 %v116, %v470
  %v472 = vpop.f32.mrb[0].mxu0
  %v473 = vpop.f32.mrb[0].mxu0
  %v474 = vadd.f32 %v116, %v473
  %v475 = vpop.f32.mrb[0].mxu0
  %476 = vmatprep.mubr.bf16.mxu0 0
  %477 = vmatmul.mubr.bf16.gmra.mrb[0].mxu0 %v234
  %v478 = vpop.f32.mrb[0].mxu0
  %v479 = vadd.f32 %v116, %v478
  %v480 = vpop.f32.mrb[0].mxu0
  %v481 = vpop.f32.mrb[0].mxu0
  %v482 = vadd.f32 %v116, %v481
  %v483 = vpop.f32.mrb[0].mxu0
  %484 = vmatprep.mubr.bf16.mxu0 0
  %485 = vmatmul.mubr.bf16.gmra.mrb[0].mxu0 %v235
  %v486 = vpop.f32.mrb[0].mxu0
  %v487 = vadd.f32 %v116, %v486
  %v488 = vpop.f32.mrb[0].mxu0
  %v489 = vpop.f32.mrb[0].mxu0
  %v490 = vadd.f32 %v116, %v489
  %v491 = vpop.f32.mrb[0].mxu0
  %492 = vmatprep.mubr.bf16.mxu0 0
  %493 = vmatmul.mubr.bf16.gmra.mrb[0].mxu0 %v236
  %v494 = vpop.f32.mrb[0].mxu0
  %v495 = vadd.f32 %v116, %v494
  %v496 = vpop.f32.mrb[0].mxu0
  %v497 = vpop.f32.mrb[0].mxu0
  %v498 = vadd.f32 %v116, %v497
  %v499 = vpop.f32.mrb[0].mxu0
  %500 = vmatprep.mubr.bf16.mxu0 0
  %501 = vmatmul.mubr.bf16.gmra.mrb[0].mxu0 %v237
  %v502 = vpop.f32.mrb[0].mxu0
  %v503 = vadd.f32 %v116, %v502
  %v504 = vpop.f32.mrb[0].mxu0
  %v505 = vpop.f32.mrb[0].mxu0
  %v506 = vadd.f32 %v116, %v505
  %v507 = vpop.f32.mrb[0].mxu0
  %508 = vmatprep.mubr.bf16.mxu0 0
  %509 = vmatmul.mubr.bf16.gmra.mrb[0].mxu0 %v238
  %v510 = vpop.f32.mrb[0].mxu0
  %v511 = vadd.f32 %v116, %v510
  %v512 = vpop.f32.mrb[0].mxu0
  %v513 = vpop.f32.mrb[0].mxu0
  %v514 = vadd.f32 %v116, %v513
  %v515 = vpop.f32.mrb[0].mxu0
  %516 = vmatprep.mubr.bf16.mxu0 0
  %517 = vmatmul.mubr.bf16.gmra.mrb[0].mxu0 %v239
  %v518 = vpop.f32.mrb[0].mxu0
  %v519 = vadd.f32 %v116, %v518
  %v520 = vpop.f32.mrb[0].mxu0
  %v521 = vpop.f32.mrb[0].mxu0
  %v522 = vadd.f32 %v116, %v521
  %v523 = vpop.f32.mrb[0].mxu0
  %524 = vmatprep.mubr.bf16.mxu0 0
  %525 = vmatmul.mubr.bf16.gmra.mrb[0].mxu0 %v240
  %v526 = vpop.f32.mrb[0].mxu0
  %v527 = vadd.f32 %v116, %v526
  %v528 = vpop.f32.mrb[0].mxu0
  %v529 = vpop.f32.mrb[0].mxu0
  %v530 = vadd.f32 %v116, %v529
  %v531 = vpop.f32.mrb[0].mxu0
  %532 = vmatprep.mubr.bf16.mxu0 0
  %533 = vmatmul.mubr.bf16.gmra.mrb[0].mxu0 %v241
  %v534 = vpop.f32.mrb[0].mxu0
  %v535 = vadd.f32 %v116, %v534
  %v536 = vpop.f32.mrb[0].mxu0
  %v537 = vpop.f32.mrb[0].mxu0
  %v538 = vadd.f32 %v116, %v537
  %v539 = vpop.f32.mrb[0].mxu0
  %540 = vmatprep.mubr.bf16.mxu0 0
  %541 = vmatmul.mubr.bf16.gmra.mrb[0].mxu0 %v242
  %v542 = vpop.f32.mrb[0].mxu0
  %v543 = vadd.f32 %v116, %v542
  %v544 = vpop.f32.mrb[0].mxu0
  %v545 = vpop.f32.mrb[0].mxu0
  %v546 = vadd.f32 %v116, %v545
  %v547 = vpop.f32.mrb[0].mxu0
  %548 = vdwg.mxu0
  %v549 = vmax.f32 %v351, 0.0
  %v550 = vmax.f32 %v354, 0.0
  %v551 = vmax.f32 %v359, 0.0
  %v552 = vmax.f32 %v362, 0.0
  %v553 = vmax.f32 %v367, 0.0
  %v554 = vmax.f32 %v370, 0.0
  %v555 = vmax.f32 %v375, 0.0
  %v556 = vmax.f32 %v378, 0.0
  %v557 = vmax.f32 %v383, 0.0
  %v558 = vmax.f32 %v386, 0.0
  %v559 = vmax.f32 %v391, 0.0
  %v560 = vmax.f32 %v394, 0.0
  %v561 = vmax.f32 %v399, 0.0
  %v562 = vmax.f32 %v402, 0.0
  %v563 = vmax.f32 %v407, 0.0
  %v564 = vmax.f32 %v410, 0.0
  %v565 = vmax.f32 %v415, 0.0
  %v566 = vmax.f32 %v418, 0.0
  %v567 = vmax.f32 %v423, 0.0
  %v568 = vmax.f32 %v426, 0.0
  %v569 = vmax.f32 %v431, 0.0
  %v570 = vmax.f32 %v434, 0.0
  %v571 = vmax.f32 %v439, 0.0
  %v572 = vmax.f32 %v442, 0.0
  %v573 = vmax.f32 %v447, 0.0
  %v574 = vmax.f32 %v450, 0.0
  %v575 = vmax.f32 %v455, 0.0
  %v576 = vmax.f32 %v458, 0.0
  %v577 = vmax.f32 %v463, 0.0
  %v578 = vmax.f32 %v466, 0.0
  %v579 = vmax.f32 %v471, 0.0
  %v580 = vmax.f32 %v474, 0.0
  %v581 = vmax.f32 %v479, 0.0
  %v582 = vmax.f32 %v482, 0.0
  %v583 = vmax.f32 %v487, 0.0
  %v584 = vmax.f32 %v490, 0.0
  %v585 = vmax.f32 %v495, 0.0
  %v586 = vmax.f32 %v498, 0.0
  %v587 = vmax.f32 %v503, 0.0
  %v588 = vmax.f32 %v506, 0.0
  %v589 = vmax.f32 %v511, 0.0
  %v590 = vmax.f32 %v514, 0.0
  %v591 = vmax.f32 %v519, 0.0
  %v592 = vmax.f32 %v522, 0.0
  %v593 = vmax.f32 %v527, 0.0
  %v594 = vmax.f32 %v530, 0.0
  %v595 = vmax.f32 %v535, 0.0
  %v596 = vmax.f32 %v538, 0.0
  %v597 = vmax.f32 %v543, 0.0
  %v598 = vmax.f32 %v546, 0.0
  %599 = vst [vmem:[#allocation2] sm:$0xff] %v549
  %600 = vst [vmem:[#allocation2 + $0x8] sm:$0xff] %v550
  %601 = vst [vmem:[#allocation2 + $0x10] sm:$0xff] %v551
  %602 = vst [vmem:[#allocation2 + $0x18] sm:$0xff] %v552
  %603 = vst [vmem:[#allocation2 + $0x20] sm:$0xff] %v553
  %604 = vst [vmem:[#allocation2 + $0x28] sm:$0xff] %v554
  %605 = vst [vmem:[#allocation2 + $0x30] sm:$0xff] %v555
  %606 = vst [vmem:[#allocation2 + $0x38] sm:$0xff] %v556
  %607 = vst [vmem:[#allocation2 + $0x40] sm:$0xff] %v557
  %608 = vst [vmem:[#allocation2 + $0x48] sm:$0xff] %v558
  %609 = vst [vmem:[#allocation2 + $0x50] sm:$0xff] %v559
  %610 = vst [vmem:[#allocation2 + $0x58] sm:$0xff] %v560
  %611 = vst [vmem:[#allocation2 + $0x60] sm:$0xff] %v561
  %612 = vst [vmem:[#allocation2 + $0x68] sm:$0xff] %v562
  %613 = vst [vmem:[#allocation2 + $0x70] sm:$0xff] %v563
  %614 = vst [vmem:[#allocation2 + $0x78] sm:$0xff] %v564
  %615 = vst [vmem:[#allocation2 + $0x80] sm:$0xff] %v565
  %616 = vst [vmem:[#allocation2 + $0x88] sm:$0xff] %v566
  %617 = vst [vmem:[#allocation2 + $0x90] sm:$0xff] %v567
  %618 = vst [vmem:[#allocation2 + $0x98] sm:$0xff] %v568
  %619 = vst [vmem:[#allocation2 + $0xa0] sm:$0xff] %v569
  %620 = vst [vmem:[#allocation2 + $0xa8] sm:$0xff] %v570
  %621 = vst [vmem:[#allocation2 + $0xb0] sm:$0xff] %v571
  %622 = vst [vmem:[#allocation2 + $0xb8] sm:$0xff] %v572
  %623 = vst [vmem:[#allocation2 + $0xc0] sm:$0xff] %v573
  %624 = vst [vmem:[#allocation2 + $0xc8] sm:$0xff] %v574
  %625 = vst [vmem:[#allocation2 + $0xd0] sm:$0xff] %v575
  %626 = vst [vmem:[#allocation2 + $0xd8] sm:$0xff] %v576
  %627 = vst [vmem:[#allocation2 + $0xe0] sm:$0xff] %v577
  %628 = vst [vmem:[#allocation2 + $0xe8] sm:$0xff] %v578
  %629 = vst [vmem:[#allocation2 + $0xf0] sm:$0xff] %v579
  %630 = vst [vmem:[#allocation2 + $0xf8] sm:$0xff] %v580
  %631 = vst [vmem:[#allocation2 + $0x100] sm:$0xff] %v581
  %632 = vst [vmem:[#allocation2 + $0x108] sm:$0xff] %v582
  %633 = vst [vmem:[#allocation2 + $0x110] sm:$0xff] %v583
  %634 = vst [vmem:[#allocation2 + $0x118] sm:$0xff] %v584
  %635 = vst [vmem:[#allocation2 + $0x120] sm:$0xff] %v585
  %636 = vst [vmem:[#allocation2 + $0x128] sm:$0xff] %v586
  %637 = vst [vmem:[#allocation2 + $0x130] sm:$0xff] %v587
  %638 = vst [vmem:[#allocation2 + $0x138] sm:$0xff] %v588
  %639 = vst [vmem:[#allocation2 + $0x140] sm:$0xff] %v589
  %640 = vst [vmem:[#allocation2 + $0x148] sm:$0xff] %v590
  %641 = vst [vmem:[#allocation2 + $0x150] sm:$0xff] %v591
  %642 = vst [vmem:[#allocation2 + $0x158] sm:$0xff] %v592
  %643 = vst [vmem:[#allocation2 + $0x160] sm:$0xff] %v593
  %644 = vst [vmem:[#allocation2 + $0x168] sm:$0xff] %v594
  %645 = vst [vmem:[#allocation2 + $0x170] sm:$0xff] %v595
  %646 = vst [vmem:[#allocation2 + $0x178] sm:$0xff] %v596
  %647 = vst [vmem:[#allocation2 + $0x180] sm:$0xff] %v597
  %648 = vst [vmem:[#allocation2 + $0x188] sm:$0xff] %v598
  %v649 = vld [vmem:[#allocation2] sm:$0xff]
  %v650 = vld [vmem:[#allocation2 + $0x8] sm:$0xff]
  %v651 = vld [vmem:[#allocation2 + $0x10] sm:$0xff]
  %v652 = vld [vmem:[#allocation2 + $0x18] sm:$0xff]
  %v653 = vld [vmem:[#allocation2 + $0x20] sm:$0xff]
  %v654 = vld [vmem:[#allocation2 + $0x28] sm:$0xff]
  %v655 = vld [vmem:[#allocation2 + $0x30] sm:$0xff]
  %v656 = vld [vmem:[#allocation2 + $0x38] sm:$0xff]
  %v657 = vld [vmem:[#allocation2 + $0x40] sm:$0xff]
  %v658 = vld [vmem:[#allocation2 + $0x48] sm:$0xff]
  %v659 = vld [vmem:[#allocation2 + $0x50] sm:$0xff]
  %v660 = vld [vmem:[#allocation2 + $0x58] sm:$0xff]
  %v661 = vld [vmem:[#allocation2 + $0x60] sm:$0xff]
  %v662 = vld [vmem:[#allocation2 + $0x68] sm:$0xff]
  %v663 = vld [vmem:[#allocation2 + $0x70] sm:$0xff]
  %v664 = vld [vmem:[#allocation2 + $0x78] sm:$0xff]
  %v665 = vld [vmem:[#allocation2 + $0x80] sm:$0xff]
  %v666 = vld [vmem:[#allocation2 + $0x88] sm:$0xff]
  %v667 = vld [vmem:[#allocation2 + $0x90] sm:$0xff]
  %v668 = vld [vmem:[#allocation2 + $0x98] sm:$0xff]
  %v669 = vld [vmem:[#allocation2 + $0xa0] sm:$0xff]
  %v670 = vld [vmem:[#allocation2 + $0xa8] sm:$0xff]
  %v671 = vld [vmem:[#allocation2 + $0xb0] sm:$0xff]
  %v672 = vld [vmem:[#allocation2 + $0xb8] sm:$0xff]
  %v673 = vld [vmem:[#allocation2 + $0xc0] sm:$0xff]
  %v674 = vld [vmem:[#allocation2 + $0xc8] sm:$0xff]
  %v675 = vld [vmem:[#allocation2 + $0xd0] sm:$0xff]
  %v676 = vld [vmem:[#allocation2 + $0xd8] sm:$0xff]
  %v677 = vld [vmem:[#allocation2 + $0xe0] sm:$0xff]
  %v678 = vld [vmem:[#allocation2 + $0xe8] sm:$0xff]
  %v679 = vld [vmem:[#allocation2 + $0xf0] sm:$0xff]
  %v680 = vld [vmem:[#allocation2 + $0xf8] sm:$0xff]
  %v681 = vld [vmem:[#allocation2 + $0x100] sm:$0xff]
  %v682 = vld [vmem:[#allocation2 + $0x108] sm:$0xff]
  %v683 = vld [vmem:[#allocation2 + $0x110] sm:$0xff]
  %v684 = vld [vmem:[#allocation2 + $0x118] sm:$0xff]
  %v685 = vld [vmem:[#allocation2 + $0x120] sm:$0xff]
  %v686 = vld [vmem:[#allocation2 + $0x128] sm:$0xff]
  %v687 = vld [vmem:[#allocation2 + $0x130] sm:$0xff]
  %v688 = vld [vmem:[#allocation2 + $0x138] sm:$0xff]
  %v689 = vld [vmem:[#allocation2 + $0x140] sm:$0xff]
  %v690 = vld [vmem:[#allocation2 + $0x148] sm:$0xff]
  %v691 = vld [vmem:[#allocation2 + $0x150] sm:$0xff]
  %v692 = vld [vmem:[#allocation2 + $0x158] sm:$0xff]
  %v693 = vld [vmem:[#allocation2 + $0x160] sm:$0xff]
  %v694 = vld [vmem:[#allocation2 + $0x168] sm:$0xff]
  %v695 = vld [vmem:[#allocation2 + $0x170] sm:$0xff]
  %v696 = vld [vmem:[#allocation2 + $0x178] sm:$0xff]
  %v697 = vld [vmem:[#allocation2 + $0x1] sm:$0xff]
  %v698 = vld [vmem:[#allocation2 + $0x9] sm:$0xff]
  %v699 = vld [vmem:[#allocation2 + $0x11] sm:$0xff]
  %v700 = vld [vmem:[#allocation2 + $0x19] sm:$0xff]
  %v701 = vld [vmem:[#allocation2 + $0x21] sm:$0xff]
  %v702 = vld [vmem:[#allocation2 + $0x29] sm:$0xff]
  %v703 = vld [vmem:[#allocation2 + $0x31] sm:$0xff]
  %v704 = vld [vmem:[#allocation2 + $0x39] sm:$0xff]
  %v705 = vld [vmem:[#allocation2 + $0x41] sm:$0xff]
  %v706 = vld [vmem:[#allocation2 + $0x49] sm:$0xff]
  %v707 = vld [vmem:[#allocation2 + $0x51] sm:$0xff]
  %v708 = vld [vmem:[#allocation2 + $0x59] sm:$0xff]
  %v709 = vld [vmem:[#allocation2 + $0x61] sm:$0xff]
  %v710 = vld [vmem:[#allocation2 + $0x69] sm:$0xff]
  %v711 = vld [vmem:[#allocation2 + $0x71] sm:$0xff]
  %v712 = vld [vmem:[#allocation2 + $0x79] sm:$0xff]
  %v713 = vld [vmem:[#allocation2 + $0x81] sm:$0xff]
  %v714 = vld [vmem:[#allocation2 + $0x89] sm:$0xff]
  %v715 = vld [vmem:[#allocation2 + $0x91] sm:$0xff]
  %v716 = vld [vmem:[#allocation2 + $0x99] sm:$0xff]
  %v717 = vld [vmem:[#allocation2 + $0xa1] sm:$0xff]
  %v718 = vld [vmem:[#allocation2 + $0xa9] sm:$0xff]
  %v719 = vld [vmem:[#allocation2 + $0xb1] sm:$0xff]
  %v720 = vld [vmem:[#allocation2 + $0xb9] sm:$0xff]
  %v721 = vld [vmem:[#allocation2 + $0xc1] sm:$0xff]
  %v722 = vld [vmem:[#allocation2 + $0xc9] sm:$0xff]
  %v723 = vld [vmem:[#allocation2 + $0xd1] sm:$0xff]
  %v724 = vld [vmem:[#allocation2 + $0xd9] sm:$0xff]
  %v725 = vld [vmem:[#allocation2 + $0xe1] sm:$0xff]
  %v726 = vld [vmem:[#allocation2 + $0xe9] sm:$0xff]
  %v727 = vld [vmem:[#allocation2 + $0xf1] sm:$0xff]
  %v728 = vld [vmem:[#allocation2 + $0xf9] sm:$0xff]
  %v729 = vld [vmem:[#allocation2 + $0x101] sm:$0xff]
  %v730 = vld [vmem:[#allocation2 + $0x109] sm:$0xff]
  %v731 = vld [vmem:[#allocation2 + $0x111] sm:$0xff]
  %v732 = vld [vmem:[#allocation2 + $0x119] sm:$0xff]
  %v733 = vld [vmem:[#allocation2 + $0x121] sm:$0xff]
  %v734 = vld [vmem:[#allocation2 + $0x129] sm:$0xff]
  %v735 = vld [vmem:[#allocation2 + $0x131] sm:$0xff]
  %v736 = vld [vmem:[#allocation2 + $0x139] sm:$0xff]
  %v737 = vld [vmem:[#allocation2 + $0x141] sm:$0xff]
  %v738 = vld [vmem:[#allocation2 + $0x149] sm:$0xff]
  %v739 = vld [vmem:[#allocation2 + $0x151] sm:$0xff]
  %v740 = vld [vmem:[#allocation2 + $0x159] sm:$0xff]
  %v741 = vld [vmem:[#allocation2 + $0x161] sm:$0xff]
  %v742 = vld [vmem:[#allocation2 + $0x169] sm:$0xff]
  %v743 = vld [vmem:[#allocation2 + $0x171] sm:$0xff]
  %v744 = vld [vmem:[#allocation2 + $0x179] sm:$0xff]
  %v745 = vmax.f32 %v649, %v697
  %v746 = vmax.f32 %v650, %v698
  %v747 = vmax.f32 %v651, %v699
  %v748 = vmax.f32 %v652, %v700
  %v749 = vmax.f32 %v653, %v701
  %v750 = vmax.f32 %v654, %v702
  %v751 = vmax.f32 %v655, %v703
  %v752 = vmax.f32 %v656, %v704
  %v753 = vmax.f32 %v657, %v705
  %v754 = vmax.f32 %v658, %v706
  %v755 = vmax.f32 %v659, %v707
  %v756 = vmax.f32 %v660, %v708
  %v757 = vmax.f32 %v661, %v709
  %v758 = vmax.f32 %v662, %v710
  %v759 = vmax.f32 %v663, %v711
  %v760 = vmax.f32 %v664, %v712
  %v761 = vmax.f32 %v665, %v713
  %v762 = vmax.f32 %v666, %v714
  %v763 = vmax.f32 %v667, %v715
  %v764 = vmax.f32 %v668, %v716
  %v765 = vmax.f32 %v669, %v717
  %v766 = vmax.f32 %v670, %v718
  %v767 = vmax.f32 %v671, %v719
  %v768 = vmax.f32 %v672, %v720
  %v769 = vmax.f32 %v673, %v721
  %v770 = vmax.f32 %v674, %v722
  %v771 = vmax.f32 %v675, %v723
  %v772 = vmax.f32 %v676, %v724
  %v773 = vmax.f32 %v677, %v725
  %v774 = vmax.f32 %v678, %v726
  %v775 = vmax.f32 %v679, %v727
  %v776 = vmax.f32 %v680, %v728
  %v777 = vmax.f32 %v681, %v729
  %v778 = vmax.f32 %v682, %v730
  %v779 = vmax.f32 %v683, %v731
  %v780 = vmax.f32 %v684, %v732
  %v781 = vmax.f32 %v685, %v733
  %v782 = vmax.f32 %v686, %v734
  %v783 = vmax.f32 %v687, %v735
  %v784 = vmax.f32 %v688, %v736
  %v785 = vmax.f32 %v689, %v737
  %v786 = vmax.f32 %v690, %v738
  %v787 = vmax.f32 %v691, %v739
  %v788 = vmax.f32 %v692, %v740
  %v789 = vmax.f32 %v693, %v741
  %v790 = vmax.f32 %v694, %v742
  %v791 = vmax.f32 %v695, %v743
  %v792 = vmax.f32 %v696, %v744
  %v793 = vld [vmem:[#allocation2 + $0xe] sm:$0xff]
  %v794 = vld [vmem:[#allocation2 + $0x16] sm:$0xff]
  %v795 = vld [vmem:[#allocation2 + $0x1e] sm:$0xff]
  %v796 = vld [vmem:[#allocation2 + $0x26] sm:$0xff]
  %v797 = vld [vmem:[#allocation2 + $0x2e] sm:$0xff]
  %v798 = vld [vmem:[#allocation2 + $0x36] sm:$0xff]
  %v799 = vld [vmem:[#allocation2 + $0x3e] sm:$0xff]
  %v800 = vld [vmem:[#allocation2 + $0x46] sm:$0xff]
  %v801 = vld [vmem:[#allocation2 + $0x4e] sm:$0xff]
  %v802 = vld [vmem:[#allocation2 + $0x56] sm:$0xff]
  %v803 = vld [vmem:[#allocation2 + $0x5e] sm:$0xff]
  %v804 = vld [vmem:[#allocation2 + $0x66] sm:$0xff]
  %v805 = vld [vmem:[#allocation2 + $0x6e] sm:$0xff]
  %v806 = vld [vmem:[#allocation2 + $0x76] sm:$0xff]
  %v807 = vld [vmem:[#allocation2 + $0x7e] sm:$0xff]
  %v808 = vld [vmem:[#allocation2 + $0x86] sm:$0xff]
  %v809 = vld [vmem:[#allocation2 + $0x8e] sm:$0xff]
  %v810 = vld [vmem:[#allocation2 + $0x96] sm:$0xff]
  %v811 = vld [vmem:[#allocation2 + $0x9e] sm:$0xff]
  %v812 = vld [vmem:[#allocation2 + $0xa6] sm:$0xff]
  %v813 = vld [vmem:[#allocation2 + $0xae] sm:$0xff]
  %v814 = vld [vmem:[#allocation2 + $0xb6] sm:$0xff]
  %v815 = vld [vmem:[#allocation2 + $0xbe] sm:$0xff]
  %v816 = vld [vmem:[#allocation2 + $0xc6] sm:$0xff]
  %v817 = vld [vmem:[#allocation2 + $0xce] sm:$0xff]
  %v818 = vld [vmem:[#allocation2 + $0xd6] sm:$0xff]
  %v819 = vld [vmem:[#allocation2 + $0xde] sm:$0xff]
  %v820 = vld [vmem:[#allocation2 + $0xe6] sm:$0xff]
  %v821 = vld [vmem:[#allocation2 + $0xee] sm:$0xff]
  %v822 = vld [vmem:[#allocation2 + $0xf6] sm:$0xff]
  %v823 = vld [vmem:[#allocation2 + $0xfe] sm:$0xff]
  %v824 = vld [vmem:[#allocation2 + $0x106] sm:$0xff]
  %v825 = vld [vmem:[#allocation2 + $0x10e] sm:$0xff]
  %v826 = vld [vmem:[#allocation2 + $0x116] sm:$0xff]
  %v827 = vld [vmem:[#allocation2 + $0x11e] sm:$0xff]
  %v828 = vld [vmem:[#allocation2 + $0x126] sm:$0xff]
  %v829 = vld [vmem:[#allocation2 + $0x12e] sm:$0xff]
  %v830 = vld [vmem:[#allocation2 + $0x136] sm:$0xff]
  %v831 = vld [vmem:[#allocation2 + $0x13e] sm:$0xff]
  %v832 = vld [vmem:[#allocation2 + $0x146] sm:$0xff]
  %v833 = vld [vmem:[#allocation2 + $0x14e] sm:$0xff]
  %v834 = vld [vmem:[#allocation2 + $0x156] sm:$0xff]
  %v835 = vld [vmem:[#allocation2 + $0x15e] sm:$0xff]
  %v836 = vld [vmem:[#allocation2 + $0x166] sm:$0xff]
  %v837 = vld [vmem:[#allocation2 + $0x16e] sm:$0xff]
  %v838 = vld [vmem:[#allocation2 + $0x176] sm:$0xff]
  %v839 = vld [vmem:[#allocation2 + $0x17e] sm:$0xff]
  %v840 = vld [vmem:[#allocation2 + $0x186] sm:$0xff]
  %v841 = vld [vmem:[#allocation2 + $0xf] sm:$0xff]
  %v842 = vld [vmem:[#allocation2 + $0x17] sm:$0xff]
  %v843 = vld [vmem:[#allocation2 + $0x1f] sm:$0xff]
  %v844 = vld [vmem:[#allocation2 + $0x27] sm:$0xff]
  %v845 = vld [vmem:[#allocation2 + $0x2f] sm:$0xff]
  %v846 = vld [vmem:[#allocation2 + $0x37] sm:$0xff]
  %v847 = vld [vmem:[#allocation2 + $0x3f] sm:$0xff]
  %v848 = vld [vmem:[#allocation2 + $0x47] sm:$0xff]
  %v849 = vld [vmem:[#allocation2 + $0x4f] sm:$0xff]
  %v850 = vld [vmem:[#allocation2 + $0x57] sm:$0xff]
  %v851 = vld [vmem:[#allocation2 + $0x5f] sm:$0xff]
  %v852 = vld [vmem:[#allocation2 + $0x67] sm:$0xff]
  %v853 = vld [vmem:[#allocation2 + $0x6f] sm:$0xff]
  %v854 = vld [vmem:[#allocation2 + $0x77] sm:$0xff]
  %v855 = vld [vmem:[#allocation2 + $0x7f] sm:$0xff]
  %v856 = vld [vmem:[#allocation2 + $0x87] sm:$0xff]
  %v857 = vld [vmem:[#allocation2 + $0x8f] sm:$0xff]
  %v858 = vld [vmem:[#allocation2 + $0x97] sm:$0xff]
  %v859 = vld [vmem:[#allocation2 + $0x9f] sm:$0xff]
  %v860 = vld [vmem:[#allocation2 + $0xa7] sm:$0xff]
  %v861 = vld [vmem:[#allocation2 + $0xaf] sm:$0xff]
  %v862 = vld [vmem:[#allocation2 + $0xb7] sm:$0xff]
  %v863 = vld [vmem:[#allocation2 + $0xbf] sm:$0xff]
  %v864 = vld [vmem:[#allocation2 + $0xc7] sm:$0xff]
  %v865 = vld [vmem:[#allocation2 + $0xcf] sm:$0xff]
  %v866 = vld [vmem:[#allocation2 + $0xd7] sm:$0xff]
  %v867 = vld [vmem:[#allocation2 + $0xdf] sm:$0xff]
  %v868 = vld [vmem:[#allocation2 + $0xe7] sm:$0xff]
  %v869 = vld [vmem:[#allocation2 + $0xef] sm:$0xff]
  %v870 = vld [vmem:[#allocation2 + $0xf7] sm:$0xff]
  %v871 = vld [vmem:[#allocation2 + $0xff] sm:$0xff]
  %v872 = vld [vmem:[#allocation2 + $0x107] sm:$0xff]
  %v873 = vld [vmem:[#allocation2 + $0x10f] sm:$0xff]
  %v874 = vld [vmem:[#allocation2 + $0x117] sm:$0xff]
  %v875 = vld [vmem:[#allocation2 + $0x11f] sm:$0xff]
  %v876 = vld [vmem:[#allocation2 + $0x127] sm:$0xff]
  %v877 = vld [vmem:[#allocation2 + $0x12f] sm:$0xff]
  %v878 = vld [vmem:[#allocation2 + $0x137] sm:$0xff]
  %v879 = vld [vmem:[#allocation2 + $0x13f] sm:$0xff]
  %v880 = vld [vmem:[#allocation2 + $0x147] sm:$0xff]
  %v881 = vld [vmem:[#allocation2 + $0x14f] sm:$0xff]
  %v882 = vld [vmem:[#allocation2 + $0x157] sm:$0xff]
  %v883 = vld [vmem:[#allocation2 + $0x15f] sm:$0xff]
  %v884 = vld [vmem:[#allocation2 + $0x167] sm:$0xff]
  %v885 = vld [vmem:[#allocation2 + $0x16f] sm:$0xff]
  %v886 = vld [vmem:[#allocation2 + $0x177] sm:$0xff]
  %v887 = vld [vmem:[#allocation2 + $0x17f] sm:$0xff]
  %v888 = vld [vmem:[#allocation2 + $0x187] sm:$0xff]
  %v889 = vmax.f32 %v793, %v841
  %v890 = vmax.f32 %v794, %v842
  %v891 = vmax.f32 %v795, %v843
  %v892 = vmax.f32 %v796, %v844
  %v893 = vmax.f32 %v797, %v845
  %v894 = vmax.f32 %v798, %v846
  %v895 = vmax.f32 %v799, %v847
  %v896 = vmax.f32 %v800, %v848
  %v897 = vmax.f32 %v801, %v849
  %v898 = vmax.f32 %v802, %v850
  %v899 = vmax.f32 %v803, %v851
  %v900 = vmax.f32 %v804, %v852
  %v901 = vmax.f32 %v805, %v853
  %v902 = vmax.f32 %v806, %v854
  %v903 = vmax.f32 %v807, %v855
  %v904 = vmax.f32 %v808, %v856
  %v905 = vmax.f32 %v809, %v857
  %v906 = vmax.f32 %v810, %v858
  %v907 = vmax.f32 %v811, %v859
  %v908 = vmax.f32 %v812, %v860
  %v909 = vmax.f32 %v813, %v861
  %v910 = vmax.f32 %v814, %v862
  %v911 = vmax.f32 %v815, %v863
  %v912 = vmax.f32 %v816, %v864
  %v913 = vmax.f32 %v817, %v865
  %v914 = vmax.f32 %v818, %v866
  %v915 = vmax.f32 %v819, %v867
  %v916 = vmax.f32 %v820, %v868
  %v917 = vmax.f32 %v821, %v869
  %v918 = vmax.f32 %v822, %v870
  %v919 = vmax.f32 %v823, %v871
  %v920 = vmax.f32 %v824, %v872
  %v921 = vmax.f32 %v825, %v873
  %v922 = vmax.f32 %v826, %v874
  %v923 = vmax.f32 %v827, %v875
  %v924 = vmax.f32 %v828, %v876
  %v925 = vmax.f32 %v829, %v877
  %v926 = vmax.f32 %v830, %v878
  %v927 = vmax.f32 %v831, %v879
  %v928 = vmax.f32 %v832, %v880
  %v929 = vmax.f32 %v833, %v881
  %v930 = vmax.f32 %v834, %v882
  %v931 = vmax.f32 %v835, %v883
  %v932 = vmax.f32 %v836, %v884
  %v933 = vmax.f32 %v837, %v885
  %v934 = vmax.f32 %v838, %v886
  %v935 = vmax.f32 %v839, %v887
  %v936 = vmax.f32 %v840, %v888
  %v937 = vmax.f32 %v745, %v889
  %v938 = vmax.f32 %v746, %v890
  %v939 = vmax.f32 %v747, %v891
  %v940 = vmax.f32 %v748, %v892
  %v941 = vmax.f32 %v749, %v893
  %v942 = vmax.f32 %v750, %v894
  %v943 = vmax.f32 %v751, %v895
  %v944 = vmax.f32 %v752, %v896
  %v945 = vmax.f32 %v753, %v897
  %v946 = vmax.f32 %v754, %v898
  %v947 = vmax.f32 %v755, %v899
  %v948 = vmax.f32 %v756, %v900
  %v949 = vmax.f32 %v757, %v901
  %v950 = vmax.f32 %v758, %v902
  %v951 = vmax.f32 %v759, %v903
  %v952 = vmax.f32 %v760, %v904
  %v953 = vmax.f32 %v761, %v905
  %v954 = vmax.f32 %v762, %v906
  %v955 = vmax.f32 %v763, %v907
  %v956 = vmax.f32 %v764, %v908
  %v957 = vmax.f32 %v765, %v909
  %v958 = vmax.f32 %v766, %v910
  %v959 = vmax.f32 %v767, %v911
  %v960 = vmax.f32 %v768, %v912
  %v961 = vmax.f32 %v769, %v913
  %v962 = vmax.f32 %v770, %v914
  %v963 = vmax.f32 %v771, %v915
  %v964 = vmax.f32 %v772, %v916
  %v965 = vmax.f32 %v773, %v917
  %v966 = vmax.f32 %v774, %v918
  %v967 = vmax.f32 %v775, %v919
  %v968 = vmax.f32 %v776, %v920
  %v969 = vmax.f32 %v777, %v921
  %v970 = vmax.f32 %v778, %v922
  %v971 = vmax.f32 %v779, %v923
  %v972 = vmax.f32 %v780, %v924
  %v973 = vmax.f32 %v781, %v925
  %v974 = vmax.f32 %v782, %v926
  %v975 = vmax.f32 %v783, %v927
  %v976 = vmax.f32 %v784, %v928
  %v977 = vmax.f32 %v785, %v929
  %v978 = vmax.f32 %v786, %v930
  %v979 = vmax.f32 %v787, %v931
  %v980 = vmax.f32 %v788, %v932
  %v981 = vmax.f32 %v789, %v933
  %v982 = vmax.f32 %v790, %v934
  %v983 = vmax.f32 %v791, %v935
  %v984 = vmax.f32 %v792, %v936
  %v985 = vld [vmem:[%s3] sm:$0xff]
  %v986 = vld [vmem:[%s3 + $0x8] sm:$0xf]
  %v987 = vld [vmem:[%s3 + $0xc] sm:$0xff]
  %v988 = vld [vmem:[%s3 + $0x14] sm:$0xf]
  %v989 = vld [vmem:[%s3 + $0x18] sm:$0xff]
  %v990 = vld [vmem:[%s3 + $0x20] sm:$0xf]
  %v991 = vld [vmem:[%s3 + $0x24] sm:$0xff]
  %v992 = vld [vmem:[%s3 + $0x2c] sm:$0xf]
  %v993 = vld [vmem:[%s3 + $0x30] sm:$0xff]
  %v994 = vld [vmem:[%s3 + $0x38] sm:$0xf]
  %v995 = vld [vmem:[%s3 + $0x3c] sm:$0xff]
  %v996 = vld [vmem:[%s3 + $0x44] sm:$0xf]
  %v997 = vld [vmem:[%s3 + $0x48] sm:$0xff]
  %v998 = vld [vmem:[%s3 + $0x50] sm:$0xf]
  %v999 = vld [vmem:[%s3 + $0x54] sm:$0xff]
  %v1000 = vld [vmem:[%s3 + $0x5c] sm:$0xf]
  %v1001 = vld [vmem:[%s3 + $0x60] sm:$0xff]
  %v1002 = vld [vmem:[%s3 + $0x68] sm:$0xf]
  %v1003 = vld [vmem:[%s3 + $0x6c] sm:$0xff]
  %v1004 = vld [vmem:[%s3 + $0x74] sm:$0xf]
  %v1005 = vld [vmem:[%s3 + $0x78] sm:$0xff]
  %v1006 = vld [vmem:[%s3 + $0x80] sm:$0xf]
  %v1007 = vld [vmem:[%s3 + $0x84] sm:$0xff]
  %v1008 = vld [vmem:[%s3 + $0x8c] sm:$0xf]
  %v1009 = vld [vmem:[%s3 + $0x90] sm:$0xff]
  %v1010 = vld [vmem:[%s3 + $0x98] sm:$0xf]
  %v1011 = vld [vmem:[%s3 + $0x9c] sm:$0xff]
  %v1012 = vld [vmem:[%s3 + $0xa4] sm:$0xf]
  %v1013 = vld [vmem:[%s3 + $0xa8] sm:$0xff]
  %v1014 = vld [vmem:[%s3 + $0xb0] sm:$0xf]
  %v1015 = vld [vmem:[%s3 + $0xb4] sm:$0xff]
  %v1016 = vld [vmem:[%s3 + $0xbc] sm:$0xf]
  %v1017 = vld [vmem:[%s3 + $0xc0] sm:$0xff]
  %v1018 = vld [vmem:[%s3 + $0xc8] sm:$0xf]
  %v1019 = vld [vmem:[%s3 + $0xcc] sm:$0xff]
  %v1020 = vld [vmem:[%s3 + $0xd4] sm:$0xf]
  %v1021 = vld [vmem:[%s3 + $0xd8] sm:$0xff]
  %v1022 = vld [vmem:[%s3 + $0xe0] sm:$0xf]
  %v1023 = vld [vmem:[%s3 + $0xe4] sm:$0xff]
  %v1024 = vld [vmem:[%s3 + $0xec] sm:$0xf]
  %v1025 = vpack.c.bf16 %v938, %v937
  %v1026 = vpack.c.bf16 %v940, %v939
  %v1027 = vpack.c.bf16 %v942, %v941
  %v1028 = vpack.c.bf16 %v944, %v943
  %v1029 = vpack.c.bf16 %v946, %v945
  %v1030 = vpack.c.bf16 %v948, %v947
  %v1031 = vpack.c.bf16 %v950, %v949
  %v1032 = vpack.c.bf16 %v952, %v951
  %v1033 = vpack.c.bf16 %v954, %v953
  %v1034 = vpack.c.bf16 %v956, %v955
  %v1035 = vpack.c.bf16 %v958, %v957
  %v1036 = vpack.c.bf16 %v960, %v959
  %v1037 = vpack.c.bf16 %v962, %v961
  %v1038 = vpack.c.bf16 %v964, %v963
  %v1039 = vpack.c.bf16 %v966, %v965
  %v1040 = vpack.c.bf16 %v968, %v967
  %v1041 = vpack.c.bf16 %v970, %v969
  %v1042 = vpack.c.bf16 %v972, %v971
  %v1043 = vpack.c.bf16 %v974, %v973
  %v1044 = vpack.c.bf16 %v976, %v975
  %v1045 = vpack.c.bf16 %v978, %v977
  %v1046 = vpack.c.bf16 %v980, %v979
  %v1047 = vpack.c.bf16 %v982, %v981
  %v1048 = vpack.c.bf16 %v984, %v983
  %v1089 = vunpack.c.l.b16 %v985
  %v1090 = vunpack.c.h.b16 %v985
  %v1091 = vunpack.c.l.b16 %v986
  %v1092 = vunpack.c.l.b16 %v987
  %v1093 = vunpack.c.h.b16 %v987
  %v1094 = vunpack.c.l.b16 %v988
  %v1095 = vunpack.c.l.b16 %v989
  %v1096 = vunpack.c.h.b16 %v989
  %v1097 = vunpack.c.l.b16 %v990
  %v1098 = vunpack.c.l.b16 %v991
  %v1099 = vunpack.c.h.b16 %v991
  %v1100 = vunpack.c.l.b16 %v992
  %v1101 = vunpack.c.l.b16 %v993
  %v1102 = vunpack.c.h.b16 %v993
  %v1103 = vunpack.c.l.b16 %v994
  %v1104 = vunpack.c.l.b16 %v995
  %v1105 = vunpack.c.h.b16 %v995
  %v1106 = vunpack.c.l.b16 %v996
  %v1107 = vunpack.c.l.b16 %v997
  %v1108 = vunpack.c.h.b16 %v997
  %v1109 = vunpack.c.l.b16 %v998
  %v1110 = vunpack.c.l.b16 %v999
  %v1111 = vunpack.c.h.b16 %v999
  %v1112 = vunpack.c.l.b16 %v1000
  %v1113 = vunpack.c.l.b16 %v1001
  %v1114 = vunpack.c.h.b16 %v1001
  %v1115 = vunpack.c.l.b16 %v1002
  %v1116 = vunpack.c.l.b16 %v1003
  %v1117 = vunpack.c.h.b16 %v1003
  %v1118 = vunpack.c.l.b16 %v1004
  %v1119 = vunpack.c.l.b16 %v1005
  %v1120 = vunpack.c.h.b16 %v1005
  %v1121 = vunpack.c.l.b16 %v1006
  %v1122 = vunpack.c.l.b16 %v1007
  %v1123 = vunpack.c.h.b16 %v1007
  %v1124 = vunpack.c.l.b16 %v1008
  %v1125 = vunpack.c.l.b16 %v1009
  %v1126 = vunpack.c.h.b16 %v1009
  %v1127 = vunpack.c.l.b16 %v1010
  %v1128 = vunpack.c.l.b16 %v1011
  %v1129 = vunpack.c.h.b16 %v1011
  %v1130 = vunpack.c.l.b16 %v1012
  %v1131 = vunpack.c.l.b16 %v1013
  %v1132 = vunpack.c.h.b16 %v1013
  %v1133 = vunpack.c.l.b16 %v1014
  %v1134 = vunpack.c.l.b16 %v1015
  %v1135 = vunpack.c.h.b16 %v1015
  %v1136 = vunpack.c.l.b16 %v1016
  %v1137 = vunpack.c.l.b16 %v1017
  %v1138 = vunpack.c.h.b16 %v1017
  %v1139 = vunpack.c.l.b16 %v1018
  %v1140 = vunpack.c.l.b16 %v1019
  %v1141 = vunpack.c.h.b16 %v1019
  %v1142 = vunpack.c.l.b16 %v1020
  %v1143 = vunpack.c.l.b16 %v1021
  %v1144 = vunpack.c.h.b16 %v1021
  %v1145 = vunpack.c.l.b16 %v1022
  %v1146 = vunpack.c.l.b16 %v1023
  %v1147 = vunpack.c.h.b16 %v1023
  %v1148 = vunpack.c.l.b16 %v1024
  %v1149 = vpack.c.b16 %v1092, %v1089
  %v1150 = vpack.c.b16 %v1093, %v1090
  %v1151 = vpack.c.b16 %v1094, %v1091
  %v1152 = vpack.c.b16 %v1098, %v1095
  %v1153 = vpack.c.b16 %v1099, %v1096
  %v1154 = vpack.c.b16 %v1100, %v1097
  %v1155 = vpack.c.b16 %v1104, %v1101
  %v1156 = vpack.c.b16 %v1105, %v1102
  %v1157 = vpack.c.b16 %v1106, %v1103
  %v1158 = vpack.c.b16 %v1110, %v1107
  %v1159 = vpack.c.b16 %v1111, %v1108
  %v1160 = vpack.c.b16 %v1112, %v1109
  %v1161 = vpack.c.b16 %v1116, %v1113
  %v1162 = vpack.c.b16 %v1117, %v1114
  %v1163 = vpack.c.b16 %v1118, %v1115
  %v1164 = vpack.c.b16 %v1122, %v1119
  %v1165 = vpack.c.b16 %v1123, %v1120
  %v1166 = vpack.c.b16 %v1124, %v1121
  %v1167 = vpack.c.b16 %v1128, %v1125
  %v1168 = vpack.c.b16 %v1129, %v1126
  %v1169 = vpack.c.b16 %v1130, %v1127
  %v1170 = vpack.c.b16 %v1134, %v1131
  %v1171 = vpack.c.b16 %v1135, %v1132
  %v1172 = vpack.c.b16 %v1136, %v1133
  %v1173 = vpack.c.b16 %v1140, %v1137
  %v1174 = vpack.c.b16 %v1141, %v1138
  %v1175 = vpack.c.b16 %v1142, %v1139
  %v1176 = vpack.c.b16 %v1146, %v1143
  %v1177 = vpack.c.b16 %v1147, %v1144
  %v1178 = vpack.c.b16 %v1148, %v1145
  %1209 = vmatprep.subr.bf16.mxu0 0
  %1210 = vmatpush1.bf16.msra.mxu0 %v1025
  %1211 = vmatprep.subr.bf16.mxu0 0
  %1212 = vmatpush1.bf16.msra.mxu0 %v1026
  %1213 = vmatprep.subr.bf16.mxu0 0
  %1214 = vmatpush1.bf16.msra.mxu0 %v1027
  %1215 = vmatprep.subr.bf16.mxu0 0
  %1216 = vmatpush1.bf16.msra.mxu0 %v1028
  %1217 = vmatprep.subr.bf16.mxu0 0
  %1218 = vmatpush1.bf16.msra.mxu0 %v1029
  %1219 = vmatprep.subr.bf16.mxu0 0
  %1220 = vmatpush1.bf16.msra.mxu0 %v1030
  %1221 = vmatprep.subr.bf16.mxu0 0
  %1222 = vmatpush1.bf16.msra.mxu0 %v1031
  %1223 = vmatprep.subr.bf16.mxu0 0
  %1224 = vmatpush1.bf16.msra.mxu0 %v1032
  %1225 = vmatprep.subr.bf16.mxu0 0
  %1226 = vmatpush1.bf16.msra.mxu0 %v1033
  %1227 = vmatprep.subr.bf16.mxu0 0
  %1228 = vmatpush1.bf16.msra.mxu0 %v1034
  %1229 = vmatprep.subr.bf16.mxu0 0
  %1230 = vmatpush1.bf16.msra.mxu0 %v1035
  %1231 = vmatprep.subr.bf16.mxu0 0
  %1232 = vmatpush1.bf16.msra.mxu0 %v1036
  %1233 = vmatprep.subr.bf16.mxu0 0
  %1234 = vmatpush1.bf16.msra.mxu0 %v1037
  %1235 = vmatprep.subr.bf16.mxu0 0
  %1236 = vmatpush1.bf16.msra.mxu0 %v1038
  %1237 = vmatprep.subr.bf16.mxu0 0
  %1238 = vmatpush1.bf16.msra.mxu0 %v1039
  %1239 = vmatprep.subr.bf16.mxu0 0
  %1240 = vmatpush1.bf16.msra.mxu0 %v1040
  %1241 = vmatprep.mubr.bf16.mxu0 %v1150
  %1242 = vmatmul.mubr.bf16.gmra.mrb[0].mxu0 %v1149
  %v1243 = vpop.f32.mrb[0].mxu0
  %v1244 = vadd.f32 0.0, %v1243
  %v1245 = vpop.f32.mrb[0].mxu0
  %v1246 = vpop.f32.mrb[0].mxu0
  %v1247 = vadd.f32 0.0, %v1246
  %v1248 = vpop.f32.mrb[0].mxu0
  %1249 = vmatprep.mubr.bf16.mxu0 %v1153
  %1250 = vmatmul.mubr.bf16.gmra.mrb[0].mxu0 %v1152
  %v1251 = vpop.f32.mrb[0].mxu0
  %v1252 = vadd.f32 0.0, %v1251
  %v1253 = vpop.f32.mrb[0].mxu0
  %v1254 = vpop.f32.mrb[0].mxu0
  %v1255 = vadd.f32 0.0, %v1254
  %v1256 = vpop.f32.mrb[0].mxu0
  %1257 = vmatprep.mubr.bf16.mxu0 %v1156
  %1258 = vmatmul.mubr.bf16.gmra.mrb[0].mxu0 %v1155
  %v1259 = vpop.f32.mrb[0].mxu0
  %v1260 = vadd.f32 0.0, %v1259
  %v1261 = vpop.f32.mrb[0].mxu0
  %v1262 = vpop.f32.mrb[0].mxu0
  %v1263 = vadd.f32 0.0, %v1262
  %v1264 = vpop.f32.mrb[0].mxu0
  %1265 = vmatprep.mubr.bf16.mxu0 %v1159
  %1266 = vmatmul.mubr.bf16.gmra.mrb[0].mxu0 %v1158
  %v1267 = vpop.f32.mrb[0].mxu0
  %v1268 = vadd.f32 0.0, %v1267
  %v1269 = vpop.f32.mrb[0].mxu0
  %v1270 = vpop.f32.mrb[0].mxu0
  %v1271 = vadd.f32 0.0, %v1270
  %v1272 = vpop.f32.mrb[0].mxu0
  %1273 = vmatprep.mubr.bf16.mxu0 %v1162
  %1274 = vmatmul.mubr.bf16.gmra.mrb[0].mxu0 %v1161
  %v1275 = vpop.f32.mrb[0].mxu0
  %v1276 = vadd.f32 0.0, %v1275
  %v1277 = vpop.f32.mrb[0].mxu0
  %v1278 = vpop.f32.mrb[0].mxu0
  %v1279 = vadd.f32 0.0, %v1278
  %v1280 = vpop.f32.mrb[0].mxu0
  %1281 = vmatprep.mubr.bf16.mxu0 %v1165
  %1282 = vmatmul.mubr.bf16.gmra.mrb[0].mxu0 %v1164
  %v1283 = vpop.f32.mrb[0].mxu0
  %v1284 = vadd.f32 0.0, %v1283
  %v1285 = vpop.f32.mrb[0].mxu0
  %v1286 = vpop.f32.mrb[0].mxu0
  %v1287 = vadd.f32 0.0, %v1286
  %v1288 = vpop.f32.mrb[0].mxu0
  %1289 = vmatprep.mubr.bf16.mxu0 %v1168
  %1290 = vmatmul.mubr.bf16.gmra.mrb[0].mxu0 %v1167
  %v1291 = vpop.f32.mrb[0].mxu0
  %v1292 = vadd.f32 0.0, %v1291
  %v1293 = vpop.f32.mrb[0].mxu0
  %v1294 = vpop.f32.mrb[0].mxu0
  %v1295 = vadd.f32 0.0, %v1294
  %v1296 = vpop.f32.mrb[0].mxu0
  %1297 = vmatprep.mubr.bf16.mxu0 %v1171
  %1298 = vmatmul.mubr.bf16.gmra.mrb[0].mxu0 %v1170
  %v1299 = vpop.f32.mrb[0].mxu0
  %v1300 = vadd.f32 0.0, %v1299
  %v1301 = vpop.f32.mrb[0].mxu0
  %v1302 = vpop.f32.mrb[0].mxu0
  %v1303 = vadd.f32 0.0, %v1302
  %v1304 = vpop.f32.mrb[0].mxu0
  %1305 = vmatprep.mubr.bf16.mxu0 %v1174
  %1306 = vmatmul.mubr.bf16.gmra.mrb[0].mxu0 %v1173
  %v1307 = vpop.f32.mrb[0].mxu0
  %v1308 = vadd.f32 0.0, %v1307
  %v1309 = vpop.f32.mrb[0].mxu0
  %v1310 = vpop.f32.mrb[0].mxu0
  %v1311 = vadd.f32 0.0, %v1310
  %v1312 = vpop.f32.mrb[0].mxu0
  %1313 = vmatprep.mubr.bf16.mxu0 %v1177
  %1314 = vmatmul.mubr.bf16.gmra.mrb[0].mxu0 %v1176
  %v1315 = vpop.f32.mrb[0].mxu0
  %v1316 = vadd.f32 0.0, %v1315
  %v1317 = vpop.f32.mrb[0].mxu0
  %v1318 = vpop.f32.mrb[0].mxu0
  %v1319 = vadd.f32 0.0, %v1318
  %v1320 = vpop.f32.mrb[0].mxu0
  %1321 = vdwg.mxu0
  %1322 = vmatprep.subr.bf16.mxu0 0
  %1323 = vmatpush1.bf16.msra.mxu0 %v1041
  %1324 = vmatprep.subr.bf16.mxu0 0
  %1325 = vmatpush1.bf16.msra.mxu0 %v1042
  %1326 = vmatprep.subr.bf16.mxu0 0
  %1327 = vmatpush1.bf16.msra.mxu0 %v1043
  %1328 = vmatprep.subr.bf16.mxu0 0
  %1329 = vmatpush1.bf16.msra.mxu0 %v1044
  %1330 = vmatprep.subr.bf16.mxu0 0
  %1331 = vmatpush1.bf16.msra.mxu0 %v1045
  %1332 = vmatprep.subr.bf16.mxu0 0
  %1333 = vmatpush1.bf16.msra.mxu0 %v1046
  %1334 = vmatprep.subr.bf16.mxu0 0
  %1335 = vmatpush1.bf16.msra.mxu0 %v1047
  %1336 = vmatprep.subr.bf16.mxu0 0
  %1337 = vmatpush1.bf16.msra.mxu0 %v1048
  %1338 = vmatprep.subr.bf16.mxu0 0
  %1339 = vmatpush1.bf16.msra.mxu0 0
  %1340 = vmatprep.subr.bf16.mxu0 0
  %1341 = vmatpush1.bf16.msra.mxu0 0
  %1342 = vmatprep.subr.bf16.mxu0 0
  %1343 = vmatpush1.bf16.msra.mxu0 0
  %1344 = vmatprep.subr.bf16.mxu0 0
  %1345 = vmatpush1.bf16.msra.mxu0 0
  %1346 = vmatprep.subr.bf16.mxu0 0
  %1347 = vmatpush1.bf16.msra.mxu0 0
  %1348 = vmatprep.subr.bf16.mxu0 0
  %1349 = vmatpush1.bf16.msra.mxu0 0
  %1350 = vmatprep.subr.bf16.mxu0 0
  %1351 = vmatpush1.bf16.msra.mxu0 0
  %1352 = vmatprep.subr.bf16.mxu0 0
  %1353 = vmatpush1.bf16.msra.mxu0 0
  %1354 = vmatprep.mubr.bf16.mxu0 0
  %1355 = vmatmul.mubr.bf16.gmra.mrb[0].mxu0 %v1151
  %v1356 = vpop.f32.mrb[0].mxu0
  %v1357 = vadd.f32 %v1244, %v1356
  %v1358 = vpop.f32.mrb[0].mxu0
  %v1359 = vpop.f32.mrb[0].mxu0
  %v1360 = vadd.f32 %v1247, %v1359
  %v1361 = vpop.f32.mrb[0].mxu0
  %1362 = vmatprep.mubr.bf16.mxu0 0
  %1363 = vmatmul.mubr.bf16.gmra.mrb[0].mxu0 %v1154
  %v1364 = vpop.f32.mrb[0].mxu0
  %v1365 = vadd.f32 %v1252, %v1364
  %v1366 = vpop.f32.mrb[0].mxu0
  %v1367 = vpop.f32.mrb[0].mxu0
  %v1368 = vadd.f32 %v1255, %v1367
  %v1369 = vpop.f32.mrb[0].mxu0
  %1370 = vmatprep.mubr.bf16.mxu0 0
  %1371 = vmatmul.mubr.bf16.gmra.mrb[0].mxu0 %v1157
  %v1372 = vpop.f32.mrb[0].mxu0
  %v1373 = vadd.f32 %v1260, %v1372
  %v1374 = vpop.f32.mrb[0].mxu0
  %v1375 = vpop.f32.mrb[0].mxu0
  %v1376 = vadd.f32 %v1263, %v1375
  %v1377 = vpop.f32.mrb[0].mxu0
  %1378 = vmatprep.mubr.bf16.mxu0 0
  %1379 = vmatmul.mubr.bf16.gmra.mrb[0].mxu0 %v1160
  %v1380 = vpop.f32.mrb[0].mxu0
  %v1381 = vadd.f32 %v1268, %v1380
  %v1382 = vpop.f32.mrb[0].mxu0
  %v1383 = vpop.f32.mrb[0].mxu0
  %v1384 = vadd.f32 %v1271, %v1383
  %v1385 = vpop.f32.mrb[0].mxu0
  %1386 = vmatprep.mubr.bf16.mxu0 0
  %1387 = vmatmul.mubr.bf16.gmra.mrb[0].mxu0 %v1163
  %v1388 = vpop.f32.mrb[0].mxu0
  %v1389 = vadd.f32 %v1276, %v1388
  %v1390 = vpop.f32.mrb[0].mxu0
  %v1391 = vpop.f32.mrb[0].mxu0
  %v1392 = vadd.f32 %v1279, %v1391
  %v1393 = vpop.f32.mrb[0].mxu0
  %1394 = vmatprep.mubr.bf16.mxu0 0
  %1395 = vmatmul.mubr.bf16.gmra.mrb[0].mxu0 %v1166
  %v1396 = vpop.f32.mrb[0].mxu0
  %v1397 = vadd.f32 %v1284, %v1396
  %v1398 = vpop.f32.mrb[0].mxu0
  %v1399 = vpop.f32.mrb[0].mxu0
  %v1400 = vadd.f32 %v1287, %v1399
  %v1401 = vpop.f32.mrb[0].mxu0
  %1402 = vmatprep.mubr.bf16.mxu0 0
  %1403 = vmatmul.mubr.bf16.gmra.mrb[0].mxu0 %v1169
  %v1404 = vpop.f32.mrb[0].mxu0
  %v1405 = vadd.f32 %v1292, %v1404
  %v1406 = vpop.f32.mrb[0].mxu0
  %v1407 = vpop.f32.mrb[0].mxu0
  %v1408 = vadd.f32 %v1295, %v1407
  %v1409 = vpop.f32.mrb[0].mxu0
  %1410 = vmatprep.mubr.bf16.mxu0 0
  %1411 = vmatmul.mubr.bf16.gmra.mrb[0].mxu0 %v1172
  %v1412 = vpop.f32.mrb[0].mxu0
  %v1413 = vadd.f32 %v1300, %v1412
  %v1414 = vpop.f32.mrb[0].mxu0
  %v1415 = vpop.f32.mrb[0].mxu0
  %v1416 = vadd.f32 %v1303, %v1415
  %v1417 = vpop.f32.mrb[0].mxu0
  %1418 = vmatprep.mubr.bf16.mxu0 0
  %1419 = vmatmul.mubr.bf16.gmra.mrb[0].mxu0 %v1175
  %v1420 = vpop.f32.mrb[0].mxu0
  %v1421 = vadd.f32 %v1308, %v1420
  %v1422 = vpop.f32.mrb[0].mxu0
  %v1423 = vpop.f32.mrb[0].mxu0
  %v1424 = vadd.f32 %v1311, %v1423
  %v1425 = vpop.f32.mrb[0].mxu0
  %1426 = vmatprep.mubr.bf16.mxu0 0
  %1427 = vmatmul.mubr.bf16.gmra.mrb[0].mxu0 %v1178
  %v1428 = vpop.f32.mrb[0].mxu0
  %v1429 = vadd.f32 %v1316, %v1428
  %v1430 = vpop.f32.mrb[0].mxu0
  %v1431 = vpop.f32.mrb[0].mxu0
  %v1432 = vadd.f32 %v1319, %v1431
  %v1433 = vpop.f32.mrb[0].mxu0
  %1434 = vdwg.mxu0
  %1435 = vst [vmem:[#allocation3] sm:$0xff] %v1357
  %1436 = vst [vmem:[#allocation3 + $0x8] sm:$0xff] %v1360
  %1437 = vst [vmem:[#allocation3 + $0x10] sm:$0xff] %v1365
  %1438 = vst [vmem:[#allocation3 + $0x18] sm:$0xff] %v1368
  %1439 = vst [vmem:[#allocation3 + $0x20] sm:$0xff] %v1373
  %1440 = vst [vmem:[#allocation3 + $0x28] sm:$0xff] %v1376
  %1441 = vst [vmem:[#allocation3 + $0x30] sm:$0xff] %v1381
  %1442 = vst [vmem:[#allocation3 + $0x38] sm:$0xff] %v1384
  %1443 = vst [vmem:[#allocation3 + $0x40] sm:$0xff] %v1389
  %1444 = vst [vmem:[#allocation3 + $0x48] sm:$0xff] %v1392
  %1445 = vst [vmem:[#allocation3 + $0x50] sm:$0xff] %v1397
  %1446 = vst [vmem:[#allocation3 + $0x58] sm:$0xff] %v1400
  %1447 = vst [vmem:[#allocation3 + $0x60] sm:$0xff] %v1405
  %1448 = vst [vmem:[#allocation3 + $0x68] sm:$0xff] %v1408
  %1449 = vst [vmem:[#allocation3 + $0x70] sm:$0xff] %v1413
  %1450 = vst [vmem:[#allocation3 + $0x78] sm:$0xff] %v1416
  %1451 = vst [vmem:[#allocation3 + $0x80] sm:$0xff] %v1421
  %1452 = vst [vmem:[#allocation3 + $0x88] sm:$0xff] %v1424
  %1453 = vst [vmem:[#allocation3 + $0x90] sm:$0xff] %v1429
  %1454 = vst [vmem:[#allocation3 + $0x98] sm:$0xff] %v1432
  %v1455 = vld [vmem:[#allocation3] sm:$0xff]
  %v1456 = vld [vmem:[#allocation3 + $0x8] sm:$0xff]
  %v1457 = vld [vmem:[#allocation3 + $0x10] sm:$0xff]
  %v1458 = vld [vmem:[#allocation3 + $0x18] sm:$0xff]
  %v1459 = vld [vmem:[#allocation3 + $0x20] sm:$0xff]
  %v1460 = vld [vmem:[#allocation3 + $0x28] sm:$0xff]
  %v1461 = vld [vmem:[#allocation3 + $0x30] sm:$0xff]
  %v1462 = vld [vmem:[#allocation3 + $0x38] sm:$0xff]
  %v1463 = vld [vmem:[#allocation3 + $0x40] sm:$0xff]
  %v1464 = vld [vmem:[#allocation3 + $0x48] sm:$0xff]
  %v1465 = vld [vmem:[#allocation3 + $0x50] sm:$0xff]
  %v1466 = vld [vmem:[#allocation3 + $0x58] sm:$0xff]
  %v1467 = vld [vmem:[#allocation3 + $0x60] sm:$0xff]
  %v1468 = vld [vmem:[#allocation3 + $0x68] sm:$0xff]
  %v1469 = vld [vmem:[#allocation3 + $0x70] sm:$0xff]
  %v1470 = vld [vmem:[#allocation3 + $0x78] sm:$0xff]
  %v1471 = vld [vmem:[#allocation3 + $0x80] sm:$0xff]
  %v1472 = vld [vmem:[#allocation3 + $0x88] sm:$0xff]
  %v1473 = vpack.c.bf16 %v1456, %v1455
  %v1474 = vpack.c.bf16 %v1458, %v1457
  %v1475 = vpack.c.bf16 %v1460, %v1459
  %v1476 = vpack.c.bf16 %v1462, %v1461
  %v1477 = vpack.c.bf16 %v1464, %v1463
  %v1478 = vpack.c.bf16 %v1466, %v1465
  %v1479 = vpack.c.bf16 %v1468, %v1467
  %v1480 = vpack.c.bf16 %v1470, %v1469
  %v1481 = vpack.c.bf16 %v1472, %v1471
  %v1482 = vld [vmem:[#allocation3 + $0x1] sm:$0xff]
  %v1483 = vld [vmem:[#allocation3 + $0x9] sm:$0xff]
  %v1484 = vld [vmem:[#allocation3 + $0x11] sm:$0xff]
  %v1485 = vld [vmem:[#allocation3 + $0x19] sm:$0xff]
  %v1486 = vld [vmem:[#allocation3 + $0x21] sm:$0xff]
  %v1487 = vld [vmem:[#allocation3 + $0x29] sm:$0xff]
  %v1488 = vld [vmem:[#allocation3 + $0x31] sm:$0xff]
  %v1489 = vld [vmem:[#allocation3 + $0x39] sm:$0xff]
  %v1490 = vld [vmem:[#allocation3 + $0x41] sm:$0xff]
  %v1491 = vld [vmem:[#allocation3 + $0x49] sm:$0xff]
  %v1492 = vld [vmem:[#allocation3 + $0x51] sm:$0xff]
  %v1493 = vld [vmem:[#allocation3 + $0x59] sm:$0xff]
  %v1494 = vld [vmem:[#allocation3 + $0x61] sm:$0xff]
  %v1495 = vld [vmem:[#allocation3 + $0x69] sm:$0xff]
  %v1496 = vld [vmem:[#allocation3 + $0x71] sm:$0xff]
  %v1497 = vld [vmem:[#allocation3 + $0x79] sm:$0xff]
  %v1498 = vld [vmem:[#allocation3 + $0x81] sm:$0xff]
  %v1499 = vld [vmem:[#allocation3 + $0x89] sm:$0xff]
  %v1500 = vpack.c.bf16 %v1483, %v1482
  %v1501 = vpack.c.bf16 %v1485, %v1484
  %v1502 = vpack.c.bf16 %v1487, %v1486
  %v1503 = vpack.c.bf16 %v1489, %v1488
  %v1504 = vpack.c.bf16 %v1491, %v1490
  %v1505 = vpack.c.bf16 %v1493, %v1492
  %v1506 = vpack.c.bf16 %v1495, %v1494
  %v1507 = vpack.c.bf16 %v1497, %v1496
  %v1508 = vpack.c.bf16 %v1499, %v1498
  %v1509 = vld [vmem:[%s4] sm:$0xf]
  %v1510 = vld [vmem:[%s4 + $0x4] sm:$0xf]
  %v1511 = vld [vmem:[%s4 + $0x8] sm:$0xf]
  %v1512 = vld [vmem:[%s4 + $0xc] sm:$0xf]
  %v1513 = vld [vmem:[%s4 + $0x10] sm:$0xf]
  %v1514 = vld [vmem:[%s4 + $0x14] sm:$0xf]
  %v1515 = vld [vmem:[%s4 + $0x18] sm:$0xf]
  %v1516 = vld [vmem:[%s4 + $0x1c] sm:$0xf]
  %v1517 = vld [vmem:[%s4 + $0x20] sm:$0xf]
  %v1518 = vld [vmem:[%s4 + $0x24] sm:$0xf]
  %v1519 = vld [vmem:[%s4 + $0x28] sm:$0xf]
  %v1520 = vld [vmem:[%s4 + $0x2c] sm:$0xf]
  %v1521 = vld [vmem:[%s4 + $0x30] sm:$0xf]
  %v1522 = vld [vmem:[%s4 + $0x34] sm:$0xf]
  %v1523 = vld [vmem:[%s4 + $0x38] sm:$0xf]
  %v1524 = vld [vmem:[%s4 + $0x3c] sm:$0xf]
  %v1525 = vld [vmem:[%s4 + $0x40] sm:$0xf]
  %v1526 = vld [vmem:[%s4 + $0x44] sm:$0xf]
  %v1527 = vld [vmem:[%s4 + $0x48] sm:$0xf]
  %v1528 = vld [vmem:[%s4 + $0x4c] sm:$0xf]
  %v1529 = vld [vmem:[%s4 + $0x50] sm:$0xf]
  %v1530 = vld [vmem:[%s4 + $0x54] sm:$0xf]
  %v1531 = vld [vmem:[%s4 + $0x58] sm:$0xf]
  %v1532 = vld [vmem:[%s4 + $0x5c] sm:$0xf]
  %v1533 = vld [vmem:[%s4 + $0x60] sm:$0xf]
  %v1534 = vld [vmem:[%s4 + $0x64] sm:$0xf]
  %v1535 = vld [vmem:[%s4 + $0x68] sm:$0xf]
  %v1536 = vld [vmem:[%s4 + $0x6c] sm:$0xf]
  %v1537 = vld [vmem:[%s4 + $0x70] sm:$0xf]
  %v1538 = vld [vmem:[%s4 + $0x74] sm:$0xf]
  %v1539 = vld [vmem:[%s4 + $0x78] sm:$0xf]
  %v1540 = vld [vmem:[%s4 + $0x7c] sm:$0xf]
  %v1541 = vld [vmem:[#allocation3 + $0x2] sm:$0xff]
  %v1542 = vld [vmem:[#allocation3 + $0xa] sm:$0xff]
  %v1543 = vld [vmem:[#allocation3 + $0x12] sm:$0xff]
  %v1544 = vld [vmem:[#allocation3 + $0x1a] sm:$0xff]
  %v1545 = vld [vmem:[#allocation3 + $0x22] sm:$0xff]
  %v1546 = vld [vmem:[#allocation3 + $0x2a] sm:$0xff]
  %v1547 = vld [vmem:[#allocation3 + $0x32] sm:$0xff]
  %v1548 = vld [vmem:[#allocation3 + $0x3a] sm:$0xff]
  %v1549 = vld [vmem:[#allocation3 + $0x42] sm:$0xff]
  %v1550 = vld [vmem:[#allocation3 + $0x4a] sm:$0xff]
  %v1551 = vld [vmem:[#allocation3 + $0x52] sm:$0xff]
  %v1552 = vld [vmem:[#allocation3 + $0x5a] sm:$0xff]
  %v1553 = vld [vmem:[#allocation3 + $0x62] sm:$0xff]
  %v1554 = vld [vmem:[#allocation3 + $0x6a] sm:$0xff]
  %v1555 = vld [vmem:[#allocation3 + $0x72] sm:$0xff]
  %v1556 = vld [vmem:[#allocation3 + $0x7a] sm:$0xff]
  %v1557 = vld [vmem:[#allocation3 + $0x82] sm:$0xff]
  %v1558 = vld [vmem:[#allocation3 + $0x8a] sm:$0xff]
  %v1559 = vpack.c.bf16 %v1542, %v1541
  %v1560 = vpack.c.bf16 %v1544, %v1543
  %v1561 = vpack.c.bf16 %v1546, %v1545
  %v1562 = vpack.c.bf16 %v1548, %v1547
  %v1563 = vpack.c.bf16 %v1550, %v1549
  %v1564 = vpack.c.bf16 %v1552, %v1551
  %v1565 = vpack.c.bf16 %v1554, %v1553
  %v1566 = vpack.c.bf16 %v1556, %v1555
  %v1567 = vpack.c.bf16 %v1558, %v1557
  %v1568 = vld [vmem:[#allocation3 + $0x7] sm:$0xff]
  %v1569 = vld [vmem:[#allocation3 + $0xf] sm:$0xff]
  %v1570 = vld [vmem:[#allocation3 + $0x17] sm:$0xff]
  %v1571 = vld [vmem:[#allocation3 + $0x1f] sm:$0xff]
  %v1572 = vld [vmem:[#allocation3 + $0x27] sm:$0xff]
  %v1573 = vld [vmem:[#allocation3 + $0x2f] sm:$0xff]
  %v1574 = vld [vmem:[#allocation3 + $0x37] sm:$0xff]
  %v1575 = vld [vmem:[#allocation3 + $0x3f] sm:$0xff]
  %v1576 = vld [vmem:[#allocation3 + $0x47] sm:$0xff]
  %v1577 = vld [vmem:[#allocation3 + $0x4f] sm:$0xff]
  %v1578 = vld [vmem:[#allocation3 + $0x57] sm:$0xff]
  %v1579 = vld [vmem:[#allocation3 + $0x5f] sm:$0xff]
  %v1580 = vld [vmem:[#allocation3 + $0x67] sm:$0xff]
  %v1581 = vld [vmem:[#allocation3 + $0x6f] sm:$0xff]
  %v1582 = vld [vmem:[#allocation3 + $0x77] sm:$0xff]
  %v1583 = vld [vmem:[#allocation3 + $0x7f] sm:$0xff]
  %v1584 = vld [vmem:[#allocation3 + $0x87] sm:$0xff]
  %v1585 = vld [vmem:[#allocation3 + $0x8f] sm:$0xff]
  %v1586 = vpack.c.bf16 %v1569, %v1568
  %v1587 = vpack.c.bf16 %v1571, %v1570
  %v1588 = vpack.c.bf16 %v1573, %v1572
  %v1589 = vpack.c.bf16 %v1575, %v1574
  %v1590 = vpack.c.bf16 %v1577, %v1576
  %v1591 = vpack.c.bf16 %v1579, %v1578
  %v1592 = vpack.c.bf16 %v1581, %v1580
  %v1593 = vpack.c.bf16 %v1583, %v1582
  %v1594 = vpack.c.bf16 %v1585, %v1584
  %v1595 = vld [vmem:[%s4 + $0x80] sm:$0xf]
  %v1596 = vld [vmem:[%s4 + $0x84] sm:$0xf]
  %v1597 = vld [vmem:[%s4 + $0x88] sm:$0xf]
  %v1598 = vld [vmem:[%s4 + $0x8c] sm:$0xf]
  %v1599 = vld [vmem:[%s4 + $0x90] sm:$0xf]
  %v1600 = vld [vmem:[%s4 + $0x94] sm:$0xf]
  %v1601 = vld [vmem:[%s4 + $0x98] sm:$0xf]
  %v1602 = vld [vmem:[%s4 + $0x9c] sm:$0xf]
  %v1603 = vld [vmem:[%s4 + $0xa0] sm:$0xf]
  %v1604 = vld [vmem:[%s4 + $0xa4] sm:$0xf]
  %v1605 = vld [vmem:[%s4 + $0xa8] sm:$0xf]
  %v1606 = vld [vmem:[%s4 + $0xac] sm:$0xf]
  %v1607 = vld [vmem:[%s4 + $0xb0] sm:$0xf]
  %v1608 = vld [vmem:[%s4 + $0xb4] sm:$0xf]
  %v1609 = vld [vmem:[%s4 + $0xb8] sm:$0xf]
  %v1610 = vld [vmem:[%s4 + $0xbc] sm:$0xf]
  %v1611 = vld [vmem:[%s4 + $0xc0] sm:$0xf]
  %v1612 = vld [vmem:[%s4 + $0xc4] sm:$0xf]
  %v1613 = vld [vmem:[%s4 + $0xc8] sm:$0xf]
  %v1614 = vld [vmem:[%s4 + $0xcc] sm:$0xf]
  %v1615 = vld [vmem:[%s4 + $0xd0] sm:$0xf]
  %v1616 = vld [vmem:[%s4 + $0xd4] sm:$0xf]
  %v1617 = vld [vmem:[%s4 + $0xd8] sm:$0xf]
  %v1618 = vld [vmem:[%s4 + $0xdc] sm:$0xf]
  %v1619 = vld [vmem:[%s4 + $0xe0] sm:$0xf]
  %v1620 = vld [vmem:[%s4 + $0xe4] sm:$0xf]
  %v1621 = vld [vmem:[%s4 + $0xe8] sm:$0xf]
  %v1622 = vld [vmem:[%s4 + $0xec] sm:$0xf]
  %v1623 = vld [vmem:[%s4 + $0xf0] sm:$0xf]
  %v1624 = vld [vmem:[%s4 + $0xf4] sm:$0xf]
  %v1625 = vld [vmem:[%s4 + $0xf8] sm:$0xf]
  %v1626 = vld [vmem:[%s4 + $0xfc] sm:$0xf]
  %v1627 = vld [vmem:[#allocation3 + $0x90] sm:$0xff]
  %v1628 = vpack.c.bf16 %v1457, %v1456
  %v1629 = vpack.c.bf16 %v1459, %v1458
  %v1630 = vpack.c.bf16 %v1461, %v1460
  %v1631 = vpack.c.bf16 %v1463, %v1462
  %v1632 = vpack.c.bf16 %v1465, %v1464
  %v1633 = vpack.c.bf16 %v1467, %v1466
  %v1634 = vpack.c.bf16 %v1469, %v1468
  %v1635 = vpack.c.bf16 %v1471, %v1470
  %v1636 = vpack.c.bf16 %v1627, %v1472
  %v1637 = vld [vmem:[#allocation3 + $0x91] sm:$0xff]
  %v1638 = vpack.c.bf16 %v1484, %v1483
  %v1639 = vpack.c.bf16 %v1486, %v1485
  %v1640 = vpack.c.bf16 %v1488, %v1487
  %v1641 = vpack.c.bf16 %v1490, %v1489
  %v1642 = vpack.c.bf16 %v1492, %v1491
  %v1643 = vpack.c.bf16 %v1494, %v1493
  %v1644 = vpack.c.bf16 %v1496, %v1495
  %v1645 = vpack.c.bf16 %v1498, %v1497
  %v1646 = vpack.c.bf16 %v1637, %v1499
  %v1647 = vld [vmem:[%s4 + $0x100] sm:$0xf]
  %v1648 = vld [vmem:[%s4 + $0x104] sm:$0xf]
  %v1649 = vld [vmem:[%s4 + $0x108] sm:$0xf]
  %v1650 = vld [vmem:[%s4 + $0x10c] sm:$0xf]
  %v1651 = vld [vmem:[%s4 + $0x110] sm:$0xf]
  %v1652 = vld [vmem:[%s4 + $0x114] sm:$0xf]
  %v1653 = vld [vmem:[%s4 + $0x118] sm:$0xf]
  %v1654 = vld [vmem:[%s4 + $0x11c] sm:$0xf]
  %v1655 = vld [vmem:[%s4 + $0x120] sm:$0xf]
  %v1656 = vld [vmem:[%s4 + $0x124] sm:$0xf]
  %v1657 = vld [vmem:[%s4 + $0x128] sm:$0xf]
  %v1658 = vld [vmem:[%s4 + $0x12c] sm:$0xf]
  %v1659 = vld [vmem:[%s4 + $0x130] sm:$0xf]
  %v1660 = vld [vmem:[%s4 + $0x134] sm:$0xf]
  %v1661 = vld [vmem:[%s4 + $0x138] sm:$0xf]
  %v1662 = vld [vmem:[%s4 + $0x13c] sm:$0xf]
  %v1663 = vld [vmem:[%s4 + $0x140] sm:$0xf]
  %v1664 = vld [vmem:[%s4 + $0x144] sm:$0xf]
  %v1665 = vld [vmem:[%s4 + $0x148] sm:$0xf]
  %v1666 = vld [vmem:[%s4 + $0x14c] sm:$0xf]
  %v1667 = vld [vmem:[%s4 + $0x150] sm:$0xf]
  %v1668 = vld [vmem:[%s4 + $0x154] sm:$0xf]
  %v1669 = vld [vmem:[%s4 + $0x158] sm:$0xf]
  %v1670 = vld [vmem:[%s4 + $0x15c] sm:$0xf]
  %v1671 = vld [vmem:[%s4 + $0x160] sm:$0xf]
  %v1672 = vld [vmem:[%s4 + $0x164] sm:$0xf]
  %v1673 = vld [vmem:[%s4 + $0x168] sm:$0xf]
  %v1674 = vld [vmem:[%s4 + $0x16c] sm:$0xf]
  %v1675 = vld [vmem:[%s4 + $0x170] sm:$0xf]
  %v1676 = vld [vmem:[%s4 + $0x174] sm:$0xf]
  %v1677 = vld [vmem:[%s4 + $0x178] sm:$0xf]
  %v1678 = vld [vmem:[%s4 + $0x17c] sm:$0xf]
  %v1711 = vunpack.c.l.b16 %v1647
  %v1712 = vunpack.c.l.b16 %v1648
  %v1713 = vunpack.c.l.b16 %v1649
  %v1714 = vunpack.c.l.b16 %v1650
  %v1715 = vunpack.c.l.b16 %v1651
  %v1716 = vunpack.c.l.b16 %v1652
  %v1717 = vunpack.c.l.b16 %v1653
  %v1718 = vunpack.c.l.b16 %v1654
  %v1719 = vunpack.c.l.b16 %v1655
  %v1720 = vunpack.c.l.b16 %v1656
  %v1721 = vunpack.c.l.b16 %v1657
  %v1722 = vunpack.c.l.b16 %v1658
  %v1723 = vunpack.c.l.b16 %v1659
  %v1724 = vunpack.c.l.b16 %v1660
  %v1725 = vunpack.c.l.b16 %v1661
  %v1726 = vunpack.c.l.b16 %v1662
  %v1727 = vunpack.c.l.b16 %v1663
  %v1728 = vunpack.c.l.b16 %v1664
  %v1729 = vunpack.c.l.b16 %v1665
  %v1730 = vunpack.c.l.b16 %v1666
  %v1731 = vunpack.c.l.b16 %v1667
  %v1732 = vunpack.c.l.b16 %v1668
  %v1733 = vunpack.c.l.b16 %v1669
  %v1734 = vunpack.c.l.b16 %v1670
  %v1735 = vunpack.c.l.b16 %v1671
  %v1736 = vunpack.c.l.b16 %v1672
  %v1737 = vunpack.c.l.b16 %v1673
  %v1738 = vunpack.c.l.b16 %v1674
  %v1739 = vunpack.c.l.b16 %v1675
  %v1740 = vunpack.c.l.b16 %v1676
  %v1741 = vunpack.c.l.b16 %v1677
  %v1742 = vunpack.c.l.b16 %v1678
  %v1743 = vpack.c.b16 %v1712, %v1711
  %v1744 = vpack.c.b16 %v1714, %v1713
  %v1745 = vpack.c.b16 %v1716, %v1715
  %v1746 = vpack.c.b16 %v1718, %v1717
  %v1747 = vpack.c.b16 %v1720, %v1719
  %v1748 = vpack.c.b16 %v1722, %v1721
  %v1749 = vpack.c.b16 %v1724, %v1723
  %v1750 = vpack.c.b16 %v1726, %v1725
  %v1751 = vpack.c.b16 %v1728, %v1727
  %v1752 = vpack.c.b16 %v1730, %v1729
  %v1753 = vpack.c.b16 %v1732, %v1731
  %v1754 = vpack.c.b16 %v1734, %v1733
  %v1755 = vpack.c.b16 %v1736, %v1735
  %v1756 = vpack.c.b16 %v1738, %v1737
  %v1757 = vpack.c.b16 %v1740, %v1739
  %v1758 = vpack.c.b16 %v1742, %v1741
  %1775 = vmatprep.subr.bf16.mxu0 0
  %1776 = vmatpush1.bf16.msra.mxu0 %v1743
  %1777 = vmatprep.subr.bf16.mxu0 0
  %1778 = vmatpush1.bf16.msra.mxu0 %v1744
  %1779 = vmatprep.subr.bf16.mxu0 0
  %1780 = vmatpush1.bf16.msra.mxu0 %v1745
  %1781 = vmatprep.subr.bf16.mxu0 0
  %1782 = vmatpush1.bf16.msra.mxu0 %v1746
  %1783 = vmatprep.subr.bf16.mxu0 0
  %1784 = vmatpush1.bf16.msra.mxu0 %v1747
  %1785 = vmatprep.subr.bf16.mxu0 0
  %1786 = vmatpush1.bf16.msra.mxu0 %v1748
  %1787 = vmatprep.subr.bf16.mxu0 0
  %1788 = vmatpush1.bf16.msra.mxu0 %v1749
  %1789 = vmatprep.subr.bf16.mxu0 0
  %1790 = vmatpush1.bf16.msra.mxu0 %v1750
  %1791 = vmatprep.subr.bf16.mxu0 0
  %1792 = vmatpush1.bf16.msra.mxu0 %v1751
  %1793 = vmatprep.subr.bf16.mxu0 0
  %1794 = vmatpush1.bf16.msra.mxu0 %v1752
  %1795 = vmatprep.subr.bf16.mxu0 0
  %1796 = vmatpush1.bf16.msra.mxu0 %v1753
  %1797 = vmatprep.subr.bf16.mxu0 0
  %1798 = vmatpush1.bf16.msra.mxu0 %v1754
  %1799 = vmatprep.subr.bf16.mxu0 0
  %1800 = vmatpush1.bf16.msra.mxu0 %v1755
  %1801 = vmatprep.subr.bf16.mxu0 0
  %1802 = vmatpush1.bf16.msra.mxu0 %v1756
  %1803 = vmatprep.subr.bf16.mxu0 0
  %1804 = vmatpush1.bf16.msra.mxu0 %v1757
  %1805 = vmatprep.subr.bf16.mxu0 0
  %1806 = vmatpush1.bf16.msra.mxu0 %v1758
  %1807 = vmatprep.mubr.bf16.mxu0 %v1638
  %1808 = vmatmul.mubr.bf16.gmra.mrb[0].mxu0 %v1628
  %v1809 = vpop.f32.mrb[0].mxu0
  %v1810 = vadd.f32 0.0, %v1809
  %v1811 = vpop.f32.mrb[0].mxu0
  %v1812 = vpop.f32.mrb[0].mxu0
  %v1813 = vadd.f32 0.0, %v1812
  %v1814 = vpop.f32.mrb[0].mxu0
  %1815 = vmatprep.mubr.bf16.mxu0 %v1639
  %1816 = vmatmul.mubr.bf16.gmra.mrb[0].mxu0 %v1629
  %v1817 = vpop.f32.mrb[0].mxu0
  %v1818 = vadd.f32 0.0, %v1817
  %v1819 = vpop.f32.mrb[0].mxu0
  %v1820 = vpop.f32.mrb[0].mxu0
  %v1821 = vadd.f32 0.0, %v1820
  %v1822 = vpop.f32.mrb[0].mxu0
  %1823 = vmatprep.mubr.bf16.mxu0 %v1640
  %1824 = vmatmul.mubr.bf16.gmra.mrb[0].mxu0 %v1630
  %v1825 = vpop.f32.mrb[0].mxu0
  %v1826 = vadd.f32 0.0, %v1825
  %v1827 = vpop.f32.mrb[0].mxu0
  %v1828 = vpop.f32.mrb[0].mxu0
  %v1829 = vadd.f32 0.0, %v1828
  %v1830 = vpop.f32.mrb[0].mxu0
  %1831 = vmatprep.mubr.bf16.mxu0 %v1641
  %1832 = vmatmul.mubr.bf16.gmra.mrb[0].mxu0 %v1631
  %v1833 = vpop.f32.mrb[0].mxu0
  %v1834 = vadd.f32 0.0, %v1833
  %v1835 = vpop.f32.mrb[0].mxu0
  %v1836 = vpop.f32.mrb[0].mxu0
  %v1837 = vadd.f32 0.0, %v1836
  %v1838 = vpop.f32.mrb[0].mxu0
  %1839 = vmatprep.mubr.bf16.mxu0 %v1642
  %1840 = vmatmul.mubr.bf16.gmra.mrb[0].mxu0 %v1632
  %v1841 = vpop.f32.mrb[0].mxu0
  %v1842 = vadd.f32 0.0, %v1841
  %v1843 = vpop.f32.mrb[0].mxu0
  %v1844 = vpop.f32.mrb[0].mxu0
  %v1845 = vadd.f32 0.0, %v1844
  %v1846 = vpop.f32.mrb[0].mxu0
  %1847 = vmatprep.mubr.bf16.mxu0 %v1643
  %1848 = vmatmul.mubr.bf16.gmra.mrb[0].mxu0 %v1633
  %v1849 = vpop.f32.mrb[0].mxu0
  %v1850 = vadd.f32 0.0, %v1849
  %v1851 = vpop.f32.mrb[0].mxu0
  %v1852 = vpop.f32.mrb[0].mxu0
  %v1853 = vadd.f32 0.0, %v1852
  %v1854 = vpop.f32.mrb[0].mxu0
  %1855 = vmatprep.mubr.bf16.mxu0 %v1644
  %1856 = vmatmul.mubr.bf16.gmra.mrb[0].mxu0 %v1634
  %v1857 = vpop.f32.mrb[0].mxu0
  %v1858 = vadd.f32 0.0, %v1857
  %v1859 = vpop.f32.mrb[0].mxu0
  %v1860 = vpop.f32.mrb[0].mxu0
  %v1861 = vadd.f32 0.0, %v1860
  %v1862 = vpop.f32.mrb[0].mxu0
  %1863 = vmatprep.mubr.bf16.mxu0 %v1645
  %1864 = vmatmul.mubr.bf16.gmra.mrb[0].mxu0 %v1635
  %v1865 = vpop.f32.mrb[0].mxu0
  %v1866 = vadd.f32 0.0, %v1865
  %v1867 = vpop.f32.mrb[0].mxu0
  %v1868 = vpop.f32.mrb[0].mxu0
  %v1869 = vadd.f32 0.0, %v1868
  %v1870 = vpop.f32.mrb[0].mxu0
  %1871 = vmatprep.mubr.bf16.mxu0 %v1646
  %1872 = vmatmul.mubr.bf16.gmra.mrb[0].mxu0 %v1636
  %v1873 = vpop.f32.mrb[0].mxu0
  %v1874 = vadd.f32 0.0, %v1873
  %v1875 = vpop.f32.mrb[0].mxu0
  %v1876 = vpop.f32.mrb[0].mxu0
  %v1877 = vadd.f32 0.0, %v1876
  %v1878 = vpop.f32.mrb[0].mxu0
  %1879 = vdwg.mxu0
  %v1912 = vunpack.c.l.b16 %v1509
  %v1913 = vunpack.c.l.b16 %v1510
  %v1914 = vunpack.c.l.b16 %v1511
  %v1915 = vunpack.c.l.b16 %v1512
  %v1916 = vunpack.c.l.b16 %v1513
  %v1917 = vunpack.c.l.b16 %v1514
  %v1918 = vunpack.c.l.b16 %v1515
  %v1919 = vunpack.c.l.b16 %v1516
  %v1920 = vunpack.c.l.b16 %v1517
  %v1921 = vunpack.c.l.b16 %v1518
  %v1922 = vunpack.c.l.b16 %v1519
  %v1923 = vunpack.c.l.b16 %v1520
  %v1924 = vunpack.c.l.b16 %v1521
  %v1925 = vunpack.c.l.b16 %v1522
  %v1926 = vunpack.c.l.b16 %v1523
  %v1927 = vunpack.c.l.b16 %v1524
  %v1928 = vunpack.c.l.b16 %v1525
  %v1929 = vunpack.c.l.b16 %v1526
  %v1930 = vunpack.c.l.b16 %v1527
  %v1931 = vunpack.c.l.b16 %v1528
  %v1932 = vunpack.c.l.b16 %v1529
  %v1933 = vunpack.c.l.b16 %v1530
  %v1934 = vunpack.c.l.b16 %v1531
  %v1935 = vunpack.c.l.b16 %v1532
  %v1936 = vunpack.c.l.b16 %v1533
  %v1937 = vunpack.c.l.b16 %v1534
  %v1938 = vunpack.c.l.b16 %v1535
  %v1939 = vunpack.c.l.b16 %v1536
  %v1940 = vunpack.c.l.b16 %v1537
  %v1941 = vunpack.c.l.b16 %v1538
  %v1942 = vunpack.c.l.b16 %v1539
  %v1943 = vunpack.c.l.b16 %v1540
  %v1944 = vpack.c.b16 %v1913, %v1912
  %v1945 = vpack.c.b16 %v1915, %v1914
  %v1946 = vpack.c.b16 %v1917, %v1916
  %v1947 = vpack.c.b16 %v1919, %v1918
  %v1948 = vpack.c.b16 %v1921, %v1920
  %v1949 = vpack.c.b16 %v1923, %v1922
  %v1950 = vpack.c.b16 %v1925, %v1924
  %v1951 = vpack.c.b16 %v1927, %v1926
  %v1952 = vpack.c.b16 %v1929, %v1928
  %v1953 = vpack.c.b16 %v1931, %v1930
  %v1954 = vpack.c.b16 %v1933, %v1932
  %v1955 = vpack.c.b16 %v1935, %v1934
  %v1956 = vpack.c.b16 %v1937, %v1936
  %v1957 = vpack.c.b16 %v1939, %v1938
  %v1958 = vpack.c.b16 %v1941, %v1940
  %v1959 = vpack.c.b16 %v1943, %v1942
  %1976 = vmatprep.subr.bf16.mxu0 0
  %1977 = vmatpush1.bf16.msra.mxu0 %v1944
  %1978 = vmatprep.subr.bf16.mxu0 0
  %1979 = vmatpush1.bf16.msra.mxu0 %v1945
  %1980 = vmatprep.subr.bf16.mxu0 0
  %1981 = vmatpush1.bf16.msra.mxu0 %v1946
  %1982 = vmatprep.subr.bf16.mxu0 0
  %1983 = vmatpush1.bf16.msra.mxu0 %v1947
  %1984 = vmatprep.subr.bf16.mxu0 0
  %1985 = vmatpush1.bf16.msra.mxu0 %v1948
  %1986 = vmatprep.subr.bf16.mxu0 0
  %1987 = vmatpush1.bf16.msra.mxu0 %v1949
  %1988 = vmatprep.subr.bf16.mxu0 0
  %1989 = vmatpush1.bf16.msra.mxu0 %v1950
  %1990 = vmatprep.subr.bf16.mxu0 0
  %1991 = vmatpush1.bf16.msra.mxu0 %v1951
  %1992 = vmatprep.subr.bf16.mxu0 0
  %1993 = vmatpush1.bf16.msra.mxu0 %v1952
  %1994 = vmatprep.subr.bf16.mxu0 0
  %1995 = vmatpush1.bf16.msra.mxu0 %v1953
  %1996 = vmatprep.subr.bf16.mxu0 0
  %1997 = vmatpush1.bf16.msra.mxu0 %v1954
  %1998 = vmatprep.subr.bf16.mxu0 0
  %1999 = vmatpush1.bf16.msra.mxu0 %v1955
  %2000 = vmatprep.subr.bf16.mxu0 0
  %2001 = vmatpush1.bf16.msra.mxu0 %v1956
  %2002 = vmatprep.subr.bf16.mxu0 0
  %2003 = vmatpush1.bf16.msra.mxu0 %v1957
  %2004 = vmatprep.subr.bf16.mxu0 0
  %2005 = vmatpush1.bf16.msra.mxu0 %v1958
  %2006 = vmatprep.subr.bf16.mxu0 0
  %2007 = vmatpush1.bf16.msra.mxu0 %v1959
  %2008 = vmatprep.mubr.bf16.mxu0 %v1500
  %2009 = vmatmul.mubr.bf16.gmra.mrb[0].mxu0 %v1473
  %v2010 = vpop.f32.mrb[0].mxu0
  %v2011 = vadd.f32 %v1810, %v2010
  %v2012 = vpop.f32.mrb[0].mxu0
  %v2013 = vpop.f32.mrb[0].mxu0
  %v2014 = vadd.f32 %v1813, %v2013
  %v2015 = vpop.f32.mrb[0].mxu0
  %2016 = vmatprep.mubr.bf16.mxu0 %v1501
  %2017 = vmatmul.mubr.bf16.gmra.mrb[0].mxu0 %v1474
  %v2018 = vpop.f32.mrb[0].mxu0
  %v2019 = vadd.f32 %v1818, %v2018
  %v2020 = vpop.f32.mrb[0].mxu0
  %v2021 = vpop.f32.mrb[0].mxu0
  %v2022 = vadd.f32 %v1821, %v2021
  %v2023 = vpop.f32.mrb[0].mxu0
  %2024 = vmatprep.mubr.bf16.mxu0 %v1502
  %2025 = vmatmul.mubr.bf16.gmra.mrb[0].mxu0 %v1475
  %v2026 = vpop.f32.mrb[0].mxu0
  %v2027 = vadd.f32 %v1826, %v2026
  %v2028 = vpop.f32.mrb[0].mxu0
  %v2029 = vpop.f32.mrb[0].mxu0
  %v2030 = vadd.f32 %v1829, %v2029
  %v2031 = vpop.f32.mrb[0].mxu0
  %2032 = vmatprep.mubr.bf16.mxu0 %v1503
  %2033 = vmatmul.mubr.bf16.gmra.mrb[0].mxu0 %v1476
  %v2034 = vpop.f32.mrb[0].mxu0
  %v2035 = vadd.f32 %v1834, %v2034
  %v2036 = vpop.f32.mrb[0].mxu0
  %v2037 = vpop.f32.mrb[0].mxu0
  %v2038 = vadd.f32 %v1837, %v2037
  %v2039 = vpop.f32.mrb[0].mxu0
  %2040 = vmatprep.mubr.bf16.mxu0 %v1504
  %2041 = vmatmul.mubr.bf16.gmra.mrb[0].mxu0 %v1477
  %v2042 = vpop.f32.mrb[0].mxu0
  %v2043 = vadd.f32 %v1842, %v2042
  %v2044 = vpop.f32.mrb[0].mxu0
  %v2045 = vpop.f32.mrb[0].mxu0
  %v2046 = vadd.f32 %v1845, %v2045
  %v2047 = vpop.f32.mrb[0].mxu0
  %2048 = vmatprep.mubr.bf16.mxu0 %v1505
  %2049 = vmatmul.mubr.bf16.gmra.mrb[0].mxu0 %v1478
  %v2050 = vpop.f32.mrb[0].mxu0
  %v2051 = vadd.f32 %v1850, %v2050
  %v2052 = vpop.f32.mrb[0].mxu0
  %v2053 = vpop.f32.mrb[0].mxu0
  %v2054 = vadd.f32 %v1853, %v2053
  %v2055 = vpop.f32.mrb[0].mxu0
  %2056 = vmatprep.mubr.bf16.mxu0 %v1506
  %2057 = vmatmul.mubr.bf16.gmra.mrb[0].mxu0 %v1479
  %v2058 = vpop.f32.mrb[0].mxu0
  %v2059 = vadd.f32 %v1858, %v2058
  %v2060 = vpop.f32.mrb[0].mxu0
  %v2061 = vpop.f32.mrb[0].mxu0
  %v2062 = vadd.f32 %v1861, %v2061
  %v2063 = vpop.f32.mrb[0].mxu0
  %2064 = vmatprep.mubr.bf16.mxu0 %v1507
  %2065 = vmatmul.mubr.bf16.gmra.mrb[0].mxu0 %v1480
  %v2066 = vpop.f32.mrb[0].mxu0
  %v2067 = vadd.f32 %v1866, %v2066
  %v2068 = vpop.f32.mrb[0].mxu0
  %v2069 = vpop.f32.mrb[0].mxu0
  %v2070 = vadd.f32 %v1869, %v2069
  %v2071 = vpop.f32.mrb[0].mxu0
  %2072 = vmatprep.mubr.bf16.mxu0 %v1508
  %2073 = vmatmul.mubr.bf16.gmra.mrb[0].mxu0 %v1481
  %v2074 = vpop.f32.mrb[0].mxu0
  %v2075 = vadd.f32 %v1874, %v2074
  %v2076 = vpop.f32.mrb[0].mxu0
  %v2077 = vpop.f32.mrb[0].mxu0
  %v2078 = vadd.f32 %v1877, %v2077
  %v2079 = vpop.f32.mrb[0].mxu0
  %2080 = vdwg.mxu0
  %v2081 = vld [vmem:[#allocation3 + $0xe] sm:$0xff]
  %v2082 = vld [vmem:[#allocation3 + $0x16] sm:$0xff]
  %v2083 = vld [vmem:[#allocation3 + $0x1e] sm:$0xff]
  %v2084 = vld [vmem:[#allocation3 + $0x26] sm:$0xff]
  %v2085 = vld [vmem:[#allocation3 + $0x2e] sm:$0xff]
  %v2086 = vld [vmem:[#allocation3 + $0x36] sm:$0xff]
  %v2087 = vld [vmem:[#allocation3 + $0x3e] sm:$0xff]
  %v2088 = vld [vmem:[#allocation3 + $0x46] sm:$0xff]
  %v2089 = vld [vmem:[#allocation3 + $0x4e] sm:$0xff]
  %v2090 = vld [vmem:[#allocation3 + $0x56] sm:$0xff]
  %v2091 = vld [vmem:[#allocation3 + $0x5e] sm:$0xff]
  %v2092 = vld [vmem:[#allocation3 + $0x66] sm:$0xff]
  %v2093 = vld [vmem:[#allocation3 + $0x6e] sm:$0xff]
  %v2094 = vld [vmem:[#allocation3 + $0x76] sm:$0xff]
  %v2095 = vld [vmem:[#allocation3 + $0x7e] sm:$0xff]
  %v2096 = vld [vmem:[#allocation3 + $0x86] sm:$0xff]
  %v2097 = vld [vmem:[#allocation3 + $0x8e] sm:$0xff]
  %v2098 = vld [vmem:[#allocation3 + $0x96] sm:$0xff]
  %v2099 = vpack.c.bf16 %v2082, %v2081
  %v2100 = vpack.c.bf16 %v2084, %v2083
  %v2101 = vpack.c.bf16 %v2086, %v2085
  %v2102 = vpack.c.bf16 %v2088, %v2087
  %v2103 = vpack.c.bf16 %v2090, %v2089
  %v2104 = vpack.c.bf16 %v2092, %v2091
  %v2105 = vpack.c.bf16 %v2094, %v2093
  %v2106 = vpack.c.bf16 %v2096, %v2095
  %v2107 = vpack.c.bf16 %v2098, %v2097
  %v2108 = vld [vmem:[#allocation3 + $0xf] sm:$0xff]
  %v2109 = vld [vmem:[#allocation3 + $0x17] sm:$0xff]
  %v2110 = vld [vmem:[#allocation3 + $0x1f] sm:$0xff]
  %v2111 = vld [vmem:[#allocation3 + $0x27] sm:$0xff]
  %v2112 = vld [vmem:[#allocation3 + $0x2f] sm:$0xff]
  %v2113 = vld [vmem:[#allocation3 + $0x37] sm:$0xff]
  %v2114 = vld [vmem:[#allocation3 + $0x3f] sm:$0xff]
  %v2115 = vld [vmem:[#allocation3 + $0x47] sm:$0xff]
  %v2116 = vld [vmem:[#allocation3 + $0x4f] sm:$0xff]
  %v2117 = vld [vmem:[#allocation3 + $0x57] sm:$0xff]
  %v2118 = vld [vmem:[#allocation3 + $0x5f] sm:$0xff]
  %v2119 = vld [vmem:[#allocation3 + $0x67] sm:$0xff]
  %v2120 = vld [vmem:[#allocation3 + $0x6f] sm:$0xff]
  %v2121 = vld [vmem:[#allocation3 + $0x77] sm:$0xff]
  %v2122 = vld [vmem:[#allocation3 + $0x7f] sm:$0xff]
  %v2123 = vld [vmem:[#allocation3 + $0x87] sm:$0xff]
  %v2124 = vld [vmem:[#allocation3 + $0x8f] sm:$0xff]
  %v2125 = vld [vmem:[#allocation3 + $0x97] sm:$0xff]
  %v2126 = vpack.c.bf16 %v2109, %v2108
  %v2127 = vpack.c.bf16 %v2111, %v2110
  %v2128 = vpack.c.bf16 %v2113, %v2112
  %v2129 = vpack.c.bf16 %v2115, %v2114
  %v2130 = vpack.c.bf16 %v2117, %v2116
  %v2131 = vpack.c.bf16 %v2119, %v2118
  %v2132 = vpack.c.bf16 %v2121, %v2120
  %v2133 = vpack.c.bf16 %v2123, %v2122
  %v2134 = vpack.c.bf16 %v2125, %v2124
  %v2135 = vld [vmem:[%s4 + $0x180] sm:$0xf]
  %v2136 = vld [vmem:[%s4 + $0x184] sm:$0xf]
  %v2137 = vld [vmem:[%s4 + $0x188] sm:$0xf]
  %v2138 = vld [vmem:[%s4 + $0x18c] sm:$0xf]
  %v2139 = vld [vmem:[%s4 + $0x190] sm:$0xf]
  %v2140 = vld [vmem:[%s4 + $0x194] sm:$0xf]
  %v2141 = vld [vmem:[%s4 + $0x198] sm:$0xf]
  %v2142 = vld [vmem:[%s4 + $0x19c] sm:$0xf]
  %v2143 = vld [vmem:[%s4 + $0x1a0] sm:$0xf]
  %v2144 = vld [vmem:[%s4 + $0x1a4] sm:$0xf]
  %v2145 = vld [vmem:[%s4 + $0x1a8] sm:$0xf]
  %v2146 = vld [vmem:[%s4 + $0x1ac] sm:$0xf]
  %v2147 = vld [vmem:[%s4 + $0x1b0] sm:$0xf]
  %v2148 = vld [vmem:[%s4 + $0x1b4] sm:$0xf]
  %v2149 = vld [vmem:[%s4 + $0x1b8] sm:$0xf]
  %v2150 = vld [vmem:[%s4 + $0x1bc] sm:$0xf]
  %v2151 = vld [vmem:[%s4 + $0x1c0] sm:$0xf]
  %v2152 = vld [vmem:[%s4 + $0x1c4] sm:$0xf]
  %v2153 = vld [vmem:[%s4 + $0x1c8] sm:$0xf]
  %v2154 = vld [vmem:[%s4 + $0x1cc] sm:$0xf]
  %v2155 = vld [vmem:[%s4 + $0x1d0] sm:$0xf]
  %v2156 = vld [vmem:[%s4 + $0x1d4] sm:$0xf]
  %v2157 = vld [vmem:[%s4 + $0x1d8] sm:$0xf]
  %v2158 = vld [vmem:[%s4 + $0x1dc] sm:$0xf]
  %v2159 = vld [vmem:[%s4 + $0x1e0] sm:$0xf]
  %v2160 = vld [vmem:[%s4 + $0x1e4] sm:$0xf]
  %v2161 = vld [vmem:[%s4 + $0x1e8] sm:$0xf]
  %v2162 = vld [vmem:[%s4 + $0x1ec] sm:$0xf]
  %v2163 = vld [vmem:[%s4 + $0x1f0] sm:$0xf]
  %v2164 = vld [vmem:[%s4 + $0x1f4] sm:$0xf]
  %v2165 = vld [vmem:[%s4 + $0x1f8] sm:$0xf]
  %v2166 = vld [vmem:[%s4 + $0x1fc] sm:$0xf]
  %v2199 = vunpack.c.l.b16 %v2135
  %v2200 = vunpack.c.l.b16 %v2136
  %v2201 = vunpack.c.l.b16 %v2137
  %v2202 = vunpack.c.l.b16 %v2138
  %v2203 = vunpack.c.l.b16 %v2139
  %v2204 = vunpack.c.l.b16 %v2140
  %v2205 = vunpack.c.l.b16 %v2141
  %v2206 = vunpack.c.l.b16 %v2142
  %v2207 = vunpack.c.l.b16 %v2143
  %v2208 = vunpack.c.l.b16 %v2144
  %v2209 = vunpack.c.l.b16 %v2145
  %v2210 = vunpack.c.l.b16 %v2146
  %v2211 = vunpack.c.l.b16 %v2147
  %v2212 = vunpack.c.l.b16 %v2148
  %v2213 = vunpack.c.l.b16 %v2149
  %v2214 = vunpack.c.l.b16 %v2150
  %v2215 = vunpack.c.l.b16 %v2151
  %v2216 = vunpack.c.l.b16 %v2152
  %v2217 = vunpack.c.l.b16 %v2153
  %v2218 = vunpack.c.l.b16 %v2154
  %v2219 = vunpack.c.l.b16 %v2155
  %v2220 = vunpack.c.l.b16 %v2156
  %v2221 = vunpack.c.l.b16 %v2157
  %v2222 = vunpack.c.l.b16 %v2158
  %v2223 = vunpack.c.l.b16 %v2159
  %v2224 = vunpack.c.l.b16 %v2160
  %v2225 = vunpack.c.l.b16 %v2161
  %v2226 = vunpack.c.l.b16 %v2162
  %v2227 = vunpack.c.l.b16 %v2163
  %v2228 = vunpack.c.l.b16 %v2164
  %v2229 = vunpack.c.l.b16 %v2165
  %v2230 = vunpack.c.l.b16 %v2166
  %v2231 = vpack.c.b16 %v2200, %v2199
  %v2232 = vpack.c.b16 %v2202, %v2201
  %v2233 = vpack.c.b16 %v2204, %v2203
  %v2234 = vpack.c.b16 %v2206, %v2205
  %v2235 = vpack.c.b16 %v2208, %v2207
  %v2236 = vpack.c.b16 %v2210, %v2209
  %v2237 = vpack.c.b16 %v2212, %v2211
  %v2238 = vpack.c.b16 %v2214, %v2213
  %v2239 = vpack.c.b16 %v2216, %v2215
  %v2240 = vpack.c.b16 %v2218, %v2217
  %v2241 = vpack.c.b16 %v2220, %v2219
  %v2242 = vpack.c.b16 %v2222, %v2221
  %v2243 = vpack.c.b16 %v2224, %v2223
  %v2244 = vpack.c.b16 %v2226, %v2225
  %v2245 = vpack.c.b16 %v2228, %v2227
  %v2246 = vpack.c.b16 %v2230, %v2229
  %2263 = vmatprep.subr.bf16.mxu0 0
  %2264 = vmatpush1.bf16.msra.mxu0 %v2231
  %2265 = vmatprep.subr.bf16.mxu0 0
  %2266 = vmatpush1.bf16.msra.mxu0 %v2232
  %2267 = vmatprep.subr.bf16.mxu0 0
  %2268 = vmatpush1.bf16.msra.mxu0 %v2233
  %2269 = vmatprep.subr.bf16.mxu0 0
  %2270 = vmatpush1.bf16.msra.mxu0 %v2234
  %2271 = vmatprep.subr.bf16.mxu0 0
  %2272 = vmatpush1.bf16.msra.mxu0 %v2235
  %2273 = vmatprep.subr.bf16.mxu0 0
  %2274 = vmatpush1.bf16.msra.mxu0 %v2236
  %2275 = vmatprep.subr.bf16.mxu0 0
  %2276 = vmatpush1.bf16.msra.mxu0 %v2237
  %2277 = vmatprep.subr.bf16.mxu0 0
  %2278 = vmatpush1.bf16.msra.mxu0 %v2238
  %2279 = vmatprep.subr.bf16.mxu0 0
  %2280 = vmatpush1.bf16.msra.mxu0 %v2239
  %2281 = vmatprep.subr.bf16.mxu0 0
  %2282 = vmatpush1.bf16.msra.mxu0 %v2240
  %2283 = vmatprep.subr.bf16.mxu0 0
  %2284 = vmatpush1.bf16.msra.mxu0 %v2241
  %2285 = vmatprep.subr.bf16.mxu0 0
  %2286 = vmatpush1.bf16.msra.mxu0 %v2242
  %2287 = vmatprep.subr.bf16.mxu0 0
  %2288 = vmatpush1.bf16.msra.mxu0 %v2243
  %2289 = vmatprep.subr.bf16.mxu0 0
  %2290 = vmatpush1.bf16.msra.mxu0 %v2244
  %2291 = vmatprep.subr.bf16.mxu0 0
  %2292 = vmatpush1.bf16.msra.mxu0 %v2245
  %2293 = vmatprep.subr.bf16.mxu0 0
  %2294 = vmatpush1.bf16.msra.mxu0 %v2246
  %2295 = vmatprep.mubr.bf16.mxu0 %v2126
  %2296 = vmatmul.mubr.bf16.gmra.mrb[0].mxu0 %v2099
  %v2297 = vpop.f32.mrb[0].mxu0
  %v2298 = vadd.f32 0.0, %v2297
  %v2299 = vpop.f32.mrb[0].mxu0
  %v2300 = vpop.f32.mrb[0].mxu0
  %v2301 = vadd.f32 0.0, %v2300
  %v2302 = vpop.f32.mrb[0].mxu0
  %2303 = vmatprep.mubr.bf16.mxu0 %v2127
  %2304 = vmatmul.mubr.bf16.gmra.mrb[0].mxu0 %v2100
  %v2305 = vpop.f32.mrb[0].mxu0
  %v2306 = vadd.f32 0.0, %v2305
  %v2307 = vpop.f32.mrb[0].mxu0
  %v2308 = vpop.f32.mrb[0].mxu0
  %v2309 = vadd.f32 0.0, %v2308
  %v2310 = vpop.f32.mrb[0].mxu0
  %2311 = vmatprep.mubr.bf16.mxu0 %v2128
  %2312 = vmatmul.mubr.bf16.gmra.mrb[0].mxu0 %v2101
  %v2313 = vpop.f32.mrb[0].mxu0
  %v2314 = vadd.f32 0.0, %v2313
  %v2315 = vpop.f32.mrb[0].mxu0
  %v2316 = vpop.f32.mrb[0].mxu0
  %v2317 = vadd.f32 0.0, %v2316
  %v2318 = vpop.f32.mrb[0].mxu0
  %2319 = vmatprep.mubr.bf16.mxu0 %v2129
  %2320 = vmatmul.mubr.bf16.gmra.mrb[0].mxu0 %v2102
  %v2321 = vpop.f32.mrb[0].mxu0
  %v2322 = vadd.f32 0.0, %v2321
  %v2323 = vpop.f32.mrb[0].mxu0
  %v2324 = vpop.f32.mrb[0].mxu0
  %v2325 = vadd.f32 0.0, %v2324
  %v2326 = vpop.f32.mrb[0].mxu0
  %2327 = vmatprep.mubr.bf16.mxu0 %v2130
  %2328 = vmatmul.mubr.bf16.gmra.mrb[0].mxu0 %v2103
  %v2329 = vpop.f32.mrb[0].mxu0
  %v2330 = vadd.f32 0.0, %v2329
  %v2331 = vpop.f32.mrb[0].mxu0
  %v2332 = vpop.f32.mrb[0].mxu0
  %v2333 = vadd.f32 0.0, %v2332
  %v2334 = vpop.f32.mrb[0].mxu0
  %2335 = vmatprep.mubr.bf16.mxu0 %v2131
  %2336 = vmatmul.mubr.bf16.gmra.mrb[0].mxu0 %v2104
  %v2337 = vpop.f32.mrb[0].mxu0
  %v2338 = vadd.f32 0.0, %v2337
  %v2339 = vpop.f32.mrb[0].mxu0
  %v2340 = vpop.f32.mrb[0].mxu0
  %v2341 = vadd.f32 0.0, %v2340
  %v2342 = vpop.f32.mrb[0].mxu0
  %2343 = vmatprep.mubr.bf16.mxu0 %v2132
  %2344 = vmatmul.mubr.bf16.gmra.mrb[0].mxu0 %v2105
  %v2345 = vpop.f32.mrb[0].mxu0
  %v2346 = vadd.f32 0.0, %v2345
  %v2347 = vpop.f32.mrb[0].mxu0
  %v2348 = vpop.f32.mrb[0].mxu0
  %v2349 = vadd.f32 0.0, %v2348
  %v2350 = vpop.f32.mrb[0].mxu0
  %2351 = vmatprep.mubr.bf16.mxu0 %v2133
  %2352 = vmatmul.mubr.bf16.gmra.mrb[0].mxu0 %v2106
  %v2353 = vpop.f32.mrb[0].mxu0
  %v2354 = vadd.f32 0.0, %v2353
  %v2355 = vpop.f32.mrb[0].mxu0
  %v2356 = vpop.f32.mrb[0].mxu0
  %v2357 = vadd.f32 0.0, %v2356
  %v2358 = vpop.f32.mrb[0].mxu0
  %2359 = vmatprep.mubr.bf16.mxu0 %v2134
  %2360 = vmatmul.mubr.bf16.gmra.mrb[0].mxu0 %v2107
  %v2361 = vpop.f32.mrb[0].mxu0
  %v2362 = vadd.f32 0.0, %v2361
  %v2363 = vpop.f32.mrb[0].mxu0
  %v2364 = vpop.f32.mrb[0].mxu0
  %v2365 = vadd.f32 0.0, %v2364
  %v2366 = vpop.f32.mrb[0].mxu0
  %2367 = vdwg.mxu0
  %v2400 = vunpack.c.l.b16 %v1595
  %v2401 = vunpack.c.l.b16 %v1596
  %v2402 = vunpack.c.l.b16 %v1597
  %v2403 = vunpack.c.l.b16 %v1598
  %v2404 = vunpack.c.l.b16 %v1599
  %v2405 = vunpack.c.l.b16 %v1600
  %v2406 = vunpack.c.l.b16 %v1601
  %v2407 = vunpack.c.l.b16 %v1602
  %v2408 = vunpack.c.l.b16 %v1603
  %v2409 = vunpack.c.l.b16 %v1604
  %v2410 = vunpack.c.l.b16 %v1605
  %v2411 = vunpack.c.l.b16 %v1606
  %v2412 = vunpack.c.l.b16 %v1607
  %v2413 = vunpack.c.l.b16 %v1608
  %v2414 = vunpack.c.l.b16 %v1609
  %v2415 = vunpack.c.l.b16 %v1610
  %v2416 = vunpack.c.l.b16 %v1611
  %v2417 = vunpack.c.l.b16 %v1612
  %v2418 = vunpack.c.l.b16 %v1613
  %v2419 = vunpack.c.l.b16 %v1614
  %v2420 = vunpack.c.l.b16 %v1615
  %v2421 = vunpack.c.l.b16 %v1616
  %v2422 = vunpack.c.l.b16 %v1617
  %v2423 = vunpack.c.l.b16 %v1618
  %v2424 = vunpack.c.l.b16 %v1619
  %v2425 = vunpack.c.l.b16 %v1620
  %v2426 = vunpack.c.l.b16 %v1621
  %v2427 = vunpack.c.l.b16 %v1622
  %v2428 = vunpack.c.l.b16 %v1623
  %v2429 = vunpack.c.l.b16 %v1624
  %v2430 = vunpack.c.l.b16 %v1625
  %v2431 = vunpack.c.l.b16 %v1626
  %v2432 = vpack.c.b16 %v2401, %v2400
  %v2433 = vpack.c.b16 %v2403, %v2402
  %v2434 = vpack.c.b16 %v2405, %v2404
  %v2435 = vpack.c.b16 %v2407, %v2406
  %v2436 = vpack.c.b16 %v2409, %v2408
  %v2437 = vpack.c.b16 %v2411, %v2410
  %v2438 = vpack.c.b16 %v2413, %v2412
  %v2439 = vpack.c.b16 %v2415, %v2414
  %v2440 = vpack.c.b16 %v2417, %v2416
  %v2441 = vpack.c.b16 %v2419, %v2418
  %v2442 = vpack.c.b16 %v2421, %v2420
  %v2443 = vpack.c.b16 %v2423, %v2422
  %v2444 = vpack.c.b16 %v2425, %v2424
  %v2445 = vpack.c.b16 %v2427, %v2426
  %v2446 = vpack.c.b16 %v2429, %v2428
  %v2447 = vpack.c.b16 %v2431, %v2430
  %2464 = vmatprep.subr.bf16.mxu0 0
  %2465 = vmatpush1.bf16.msra.mxu0 %v2432
  %2466 = vmatprep.subr.bf16.mxu0 0
  %2467 = vmatpush1.bf16.msra.mxu0 %v2433
  %2468 = vmatprep.subr.bf16.mxu0 0
  %2469 = vmatpush1.bf16.msra.mxu0 %v2434
  %2470 = vmatprep.subr.bf16.mxu0 0
  %2471 = vmatpush1.bf16.msra.mxu0 %v2435
  %2472 = vmatprep.subr.bf16.mxu0 0
  %2473 = vmatpush1.bf16.msra.mxu0 %v2436
  %2474 = vmatprep.subr.bf16.mxu0 0
  %2475 = vmatpush1.bf16.msra.mxu0 %v2437
  %2476 = vmatprep.subr.bf16.mxu0 0
  %2477 = vmatpush1.bf16.msra.mxu0 %v2438
  %2478 = vmatprep.subr.bf16.mxu0 0
  %2479 = vmatpush1.bf16.msra.mxu0 %v2439
  %2480 = vmatprep.subr.bf16.mxu0 0
  %2481 = vmatpush1.bf16.msra.mxu0 %v2440
  %2482 = vmatprep.subr.bf16.mxu0 0
  %2483 = vmatpush1.bf16.msra.mxu0 %v2441
  %2484 = vmatprep.subr.bf16.mxu0 0
  %2485 = vmatpush1.bf16.msra.mxu0 %v2442
  %2486 = vmatprep.subr.bf16.mxu0 0
  %2487 = vmatpush1.bf16.msra.mxu0 %v2443
  %2488 = vmatprep.subr.bf16.mxu0 0
  %2489 = vmatpush1.bf16.msra.mxu0 %v2444
  %2490 = vmatprep.subr.bf16.mxu0 0
  %2491 = vmatpush1.bf16.msra.mxu0 %v2445
  %2492 = vmatprep.subr.bf16.mxu0 0
  %2493 = vmatpush1.bf16.msra.mxu0 %v2446
  %2494 = vmatprep.subr.bf16.mxu0 0
  %2495 = vmatpush1.bf16.msra.mxu0 %v2447
  %2496 = vmatprep.mubr.bf16.mxu0 %v1586
  %2497 = vmatmul.mubr.bf16.gmra.mrb[0].mxu0 %v1559
  %v2498 = vpop.f32.mrb[0].mxu0
  %v2499 = vadd.f32 %v2298, %v2498
  %v2500 = vpop.f32.mrb[0].mxu0
  %v2501 = vpop.f32.mrb[0].mxu0
  %v2502 = vadd.f32 %v2301, %v2501
  %v2503 = vpop.f32.mrb[0].mxu0
  %2504 = vmatprep.mubr.bf16.mxu0 %v1587
  %2505 = vmatmul.mubr.bf16.gmra.mrb[0].mxu0 %v1560
  %v2506 = vpop.f32.mrb[0].mxu0
  %v2507 = vadd.f32 %v2306, %v2506
  %v2508 = vpop.f32.mrb[0].mxu0
  %v2509 = vpop.f32.mrb[0].mxu0
  %v2510 = vadd.f32 %v2309, %v2509
  %v2511 = vpop.f32.mrb[0].mxu0
  %2512 = vmatprep.mubr.bf16.mxu0 %v1588
  %2513 = vmatmul.mubr.bf16.gmra.mrb[0].mxu0 %v1561
  %v2514 = vpop.f32.mrb[0].mxu0
  %v2515 = vadd.f32 %v2314, %v2514
  %v2516 = vpop.f32.mrb[0].mxu0
  %v2517 = vpop.f32.mrb[0].mxu0
  %v2518 = vadd.f32 %v2317, %v2517
  %v2519 = vpop.f32.mrb[0].mxu0
  %2520 = vmatprep.mubr.bf16.mxu0 %v1589
  %2521 = vmatmul.mubr.bf16.gmra.mrb[0].mxu0 %v1562
  %v2522 = vpop.f32.mrb[0].mxu0
  %v2523 = vadd.f32 %v2322, %v2522
  %v2524 = vpop.f32.mrb[0].mxu0
  %v2525 = vpop.f32.mrb[0].mxu0
  %v2526 = vadd.f32 %v2325, %v2525
  %v2527 = vpop.f32.mrb[0].mxu0
  %2528 = vmatprep.mubr.bf16.mxu0 %v1590
  %2529 = vmatmul.mubr.bf16.gmra.mrb[0].mxu0 %v1563
  %v2530 = vpop.f32.mrb[0].mxu0
  %v2531 = vadd.f32 %v2330, %v2530
  %v2532 = vpop.f32.mrb[0].mxu0
  %v2533 = vpop.f32.mrb[0].mxu0
  %v2534 = vadd.f32 %v2333, %v2533
  %v2535 = vpop.f32.mrb[0].mxu0
  %2536 = vmatprep.mubr.bf16.mxu0 %v1591
  %2537 = vmatmul.mubr.bf16.gmra.mrb[0].mxu0 %v1564
  %v2538 = vpop.f32.mrb[0].mxu0
  %v2539 = vadd.f32 %v2338, %v2538
  %v2540 = vpop.f32.mrb[0].mxu0
  %v2541 = vpop.f32.mrb[0].mxu0
  %v2542 = vadd.f32 %v2341, %v2541
  %v2543 = vpop.f32.mrb[0].mxu0
  %2544 = vmatprep.mubr.bf16.mxu0 %v1592
  %2545 = vmatmul.mubr.bf16.gmra.mrb[0].mxu0 %v1565
  %v2546 = vpop.f32.mrb[0].mxu0
  %v2547 = vadd.f32 %v2346, %v2546
  %v2548 = vpop.f32.mrb[0].mxu0
  %v2549 = vpop.f32.mrb[0].mxu0
  %v2550 = vadd.f32 %v2349, %v2549
  %v2551 = vpop.f32.mrb[0].mxu0
  %2552 = vmatprep.mubr.bf16.mxu0 %v1593
  %2553 = vmatmul.mubr.bf16.gmra.mrb[0].mxu0 %v1566
  %v2554 = vpop.f32.mrb[0].mxu0
  %v2555 = vadd.f32 %v2354, %v2554
  %v2556 = vpop.f32.mrb[0].mxu0
  %v2557 = vpop.f32.mrb[0].mxu0
  %v2558 = vadd.f32 %v2357, %v2557
  %v2559 = vpop.f32.mrb[0].mxu0
  %2560 = vmatprep.mubr.bf16.mxu0 %v1594
  %2561 = vmatmul.mubr.bf16.gmra.mrb[0].mxu0 %v1567
  %v2562 = vpop.f32.mrb[0].mxu0
  %v2563 = vadd.f32 %v2362, %v2562
  %v2564 = vpop.f32.mrb[0].mxu0
  %v2565 = vpop.f32.mrb[0].mxu0
  %v2566 = vadd.f32 %v2365, %v2565
  %v2567 = vpop.f32.mrb[0].mxu0
  %2568 = vdwg.mxu0
  %v2569 = vld [vmem:[#allocation3 + $0x10] sm:$0xff]
  %v2570 = vld [vmem:[#allocation3 + $0x18] sm:$0xff]
  %v2571 = vld [vmem:[#allocation3 + $0x20] sm:$0xff]
  %v2572 = vld [vmem:[#allocation3 + $0x28] sm:$0xff]
  %v2573 = vld [vmem:[#allocation3 + $0x30] sm:$0xff]
  %v2574 = vld [vmem:[#allocation3 + $0x38] sm:$0xff]
  %v2575 = vld [vmem:[#allocation3 + $0x40] sm:$0xff]
  %v2576 = vld [vmem:[#allocation3 + $0x48] sm:$0xff]
  %v2577 = vld [vmem:[#allocation3 + $0x50] sm:$0xff]
  %v2578 = vld [vmem:[#allocation3 + $0x58] sm:$0xff]
  %v2579 = vld [vmem:[#allocation3 + $0x60] sm:$0xff]
  %v2580 = vld [vmem:[#allocation3 + $0x68] sm:$0xff]
  %v2581 = vld [vmem:[#allocation3 + $0x70] sm:$0xff]
  %v2582 = vld [vmem:[#allocation3 + $0x78] sm:$0xff]
  %v2583 = vld [vmem:[#allocation3 + $0x80] sm:$0xff]
  %v2584 = vld [vmem:[#allocation3 + $0x88] sm:$0xff]
  %v2585 = vld [vmem:[#allocation3 + $0x90] sm:$0xff]
  %v2586 = vld [vmem:[#allocation3 + $0x98] sm:$0xff]
  %v2587 = vpack.c.bf16 %v2570, %v2569
  %v2588 = vpack.c.bf16 %v2572, %v2571
  %v2589 = vpack.c.bf16 %v2574, %v2573
  %v2590 = vpack.c.bf16 %v2576, %v2575
  %v2591 = vpack.c.bf16 %v2578, %v2577
  %v2592 = vpack.c.bf16 %v2580, %v2579
  %v2593 = vpack.c.bf16 %v2582, %v2581
  %v2594 = vpack.c.bf16 %v2584, %v2583
  %v2595 = vpack.c.bf16 %v2586, %v2585
  %v2596 = vld [vmem:[%s4 + $0x200] sm:$0xf]
  %v2597 = vld [vmem:[%s4 + $0x204] sm:$0xf]
  %v2598 = vld [vmem:[%s4 + $0x208] sm:$0xf]
  %v2599 = vld [vmem:[%s4 + $0x20c] sm:$0xf]
  %v2600 = vld [vmem:[%s4 + $0x210] sm:$0xf]
  %v2601 = vld [vmem:[%s4 + $0x214] sm:$0xf]
  %v2602 = vld [vmem:[%s4 + $0x218] sm:$0xf]
  %v2603 = vld [vmem:[%s4 + $0x21c] sm:$0xf]
  %v2604 = vld [vmem:[%s4 + $0x220] sm:$0xf]
  %v2605 = vld [vmem:[%s4 + $0x224] sm:$0xf]
  %v2606 = vld [vmem:[%s4 + $0x228] sm:$0xf]
  %v2607 = vld [vmem:[%s4 + $0x22c] sm:$0xf]
  %v2608 = vld [vmem:[%s4 + $0x230] sm:$0xf]
  %v2609 = vld [vmem:[%s4 + $0x234] sm:$0xf]
  %v2610 = vld [vmem:[%s4 + $0x238] sm:$0xf]
  %v2611 = vld [vmem:[%s4 + $0x23c] sm:$0xf]
  %v2628 = vunpack.c.l.b16 %v2596
  %v2629 = vunpack.c.l.b16 %v2597
  %v2630 = vunpack.c.l.b16 %v2598
  %v2631 = vunpack.c.l.b16 %v2599
  %v2632 = vunpack.c.l.b16 %v2600
  %v2633 = vunpack.c.l.b16 %v2601
  %v2634 = vunpack.c.l.b16 %v2602
  %v2635 = vunpack.c.l.b16 %v2603
  %v2636 = vunpack.c.l.b16 %v2604
  %v2637 = vunpack.c.l.b16 %v2605
  %v2638 = vunpack.c.l.b16 %v2606
  %v2639 = vunpack.c.l.b16 %v2607
  %v2640 = vunpack.c.l.b16 %v2608
  %v2641 = vunpack.c.l.b16 %v2609
  %v2642 = vunpack.c.l.b16 %v2610
  %v2643 = vunpack.c.l.b16 %v2611
  %v2644 = vpack.c.b16 %v2629, %v2628
  %v2645 = vpack.c.b16 %v2631, %v2630
  %v2646 = vpack.c.b16 %v2633, %v2632
  %v2647 = vpack.c.b16 %v2635, %v2634
  %v2648 = vpack.c.b16 %v2637, %v2636
  %v2649 = vpack.c.b16 %v2639, %v2638
  %v2650 = vpack.c.b16 %v2641, %v2640
  %v2651 = vpack.c.b16 %v2643, %v2642
  %2660 = vmatprep.subr.bf16.mxu0 0
  %2661 = vmatpush1.bf16.msra.mxu0 %v2644
  %2662 = vmatprep.subr.bf16.mxu0 0
  %2663 = vmatpush1.bf16.msra.mxu0 %v2645
  %2664 = vmatprep.subr.bf16.mxu0 0
  %2665 = vmatpush1.bf16.msra.mxu0 %v2646
  %2666 = vmatprep.subr.bf16.mxu0 0
  %2667 = vmatpush1.bf16.msra.mxu0 %v2647
  %2668 = vmatprep.subr.bf16.mxu0 0
  %2669 = vmatpush1.bf16.msra.mxu0 %v2648
  %2670 = vmatprep.subr.bf16.mxu0 0
  %2671 = vmatpush1.bf16.msra.mxu0 %v2649
  %2672 = vmatprep.subr.bf16.mxu0 0
  %2673 = vmatpush1.bf16.msra.mxu0 %v2650
  %2674 = vmatprep.subr.bf16.mxu0 0
  %2675 = vmatpush1.bf16.msra.mxu0 %v2651
  %2676 = vmatprep.subr.bf16.mxu0 0
  %2677 = vmatpush1.bf16.msra.mxu0 0
  %2678 = vmatprep.subr.bf16.mxu0 0
  %2679 = vmatpush1.bf16.msra.mxu0 0
  %2680 = vmatprep.subr.bf16.mxu0 0
  %2681 = vmatpush1.bf16.msra.mxu0 0
  %2682 = vmatprep.subr.bf16.mxu0 0
  %2683 = vmatpush1.bf16.msra.mxu0 0
  %2684 = vmatprep.subr.bf16.mxu0 0
  %2685 = vmatpush1.bf16.msra.mxu0 0
  %2686 = vmatprep.subr.bf16.mxu0 0
  %2687 = vmatpush1.bf16.msra.mxu0 0
  %2688 = vmatprep.subr.bf16.mxu0 0
  %2689 = vmatpush1.bf16.msra.mxu0 0
  %2690 = vmatprep.subr.bf16.mxu0 0
  %2691 = vmatpush1.bf16.msra.mxu0 0
  %2692 = vmatprep.mubr.bf16.mxu0 0
  %2693 = vmatmul.mubr.bf16.gmra.mrb[0].mxu0 %v2587
  %v2694 = vpop.f32.mrb[0].mxu0
  %v2695 = vadd.f32 0.0, %v2694
  %v2696 = vpop.f32.mrb[0].mxu0
  %v2697 = vpop.f32.mrb[0].mxu0
  %v2698 = vadd.f32 0.0, %v2697
  %v2699 = vpop.f32.mrb[0].mxu0
  %2700 = vmatprep.mubr.bf16.mxu0 0
  %2701 = vmatmul.mubr.bf16.gmra.mrb[0].mxu0 %v2588
  %v2702 = vpop.f32.mrb[0].mxu0
  %v2703 = vadd.f32 0.0, %v2702
  %v2704 = vpop.f32.mrb[0].mxu0
  %v2705 = vpop.f32.mrb[0].mxu0
  %v2706 = vadd.f32 0.0, %v2705
  %v2707 = vpop.f32.mrb[0].mxu0
  %2708 = vmatprep.mubr.bf16.mxu0 0
  %2709 = vmatmul.mubr.bf16.gmra.mrb[0].mxu0 %v2589
  %v2710 = vpop.f32.mrb[0].mxu0
  %v2711 = vadd.f32 0.0, %v2710
  %v2712 = vpop.f32.mrb[0].mxu0
  %v2713 = vpop.f32.mrb[0].mxu0
  %v2714 = vadd.f32 0.0, %v2713
  %v2715 = vpop.f32.mrb[0].mxu0
  %2716 = vmatprep.mubr.bf16.mxu0 0
  %2717 = vmatmul.mubr.bf16.gmra.mrb[0].mxu0 %v2590
  %v2718 = vpop.f32.mrb[0].mxu0
  %v2719 = vadd.f32 0.0, %v2718
  %v2720 = vpop.f32.mrb[0].mxu0
  %v2721 = vpop.f32.mrb[0].mxu0
  %v2722 = vadd.f32 0.0, %v2721
  %v2723 = vpop.f32.mrb[0].mxu0
  %2724 = vmatprep.mubr.bf16.mxu0 0
  %2725 = vmatmul.mubr.bf16.gmra.mrb[0].mxu0 %v2591
  %v2726 = vpop.f32.mrb[0].mxu0
  %v2727 = vadd.f32 0.0, %v2726
  %v2728 = vpop.f32.mrb[0].mxu0
  %v2729 = vpop.f32.mrb[0].mxu0
  %v2730 = vadd.f32 0.0, %v2729
  %v2731 = vpop.f32.mrb[0].mxu0
  %2732 = vmatprep.mubr.bf16.mxu0 0
  %2733 = vmatmul.mubr.bf16.gmra.mrb[0].mxu0 %v2592
  %v2734 = vpop.f32.mrb[0].mxu0
  %v2735 = vadd.f32 0.0, %v2734
  %v2736 = vpop.f32.mrb[0].mxu0
  %v2737 = vpop.f32.mrb[0].mxu0
  %v2738 = vadd.f32 0.0, %v2737
  %v2739 = vpop.f32.mrb[0].mxu0
  %2740 = vmatprep.mubr.bf16.mxu0 0
  %2741 = vmatmul.mubr.bf16.gmra.mrb[0].mxu0 %v2593
  %v2742 = vpop.f32.mrb[0].mxu0
  %v2743 = vadd.f32 0.0, %v2742
  %v2744 = vpop.f32.mrb[0].mxu0
  %v2745 = vpop.f32.mrb[0].mxu0
  %v2746 = vadd.f32 0.0, %v2745
  %v2747 = vpop.f32.mrb[0].mxu0
  %2748 = vmatprep.mubr.bf16.mxu0 0
  %2749 = vmatmul.mubr.bf16.gmra.mrb[0].mxu0 %v2594
  %v2750 = vpop.f32.mrb[0].mxu0
  %v2751 = vadd.f32 0.0, %v2750
  %v2752 = vpop.f32.mrb[0].mxu0
  %v2753 = vpop.f32.mrb[0].mxu0
  %v2754 = vadd.f32 0.0, %v2753
  %v2755 = vpop.f32.mrb[0].mxu0
  %2756 = vmatprep.mubr.bf16.mxu0 0
  %2757 = vmatmul.mubr.bf16.gmra.mrb[0].mxu0 %v2595
  %v2758 = vpop.f32.mrb[0].mxu0
  %v2759 = vadd.f32 0.0, %v2758
  %v2760 = vpop.f32.mrb[0].mxu0
  %v2761 = vpop.f32.mrb[0].mxu0
  %v2762 = vadd.f32 0.0, %v2761
  %v2763 = vpop.f32.mrb[0].mxu0
  %2764 = vdwg.mxu0
  %v2765 = vadd.f32 %v2011, %v2695
  %v2766 = vadd.f32 %v2014, %v2698
  %v2767 = vadd.f32 %v2019, %v2703
  %v2768 = vadd.f32 %v2022, %v2706
  %v2769 = vadd.f32 %v2027, %v2711
  %v2770 = vadd.f32 %v2030, %v2714
  %v2771 = vadd.f32 %v2035, %v2719
  %v2772 = vadd.f32 %v2038, %v2722
  %v2773 = vadd.f32 %v2043, %v2727
  %v2774 = vadd.f32 %v2046, %v2730
  %v2775 = vadd.f32 %v2051, %v2735
  %v2776 = vadd.f32 %v2054, %v2738
  %v2777 = vadd.f32 %v2059, %v2743
  %v2778 = vadd.f32 %v2062, %v2746
  %v2779 = vadd.f32 %v2067, %v2751
  %v2780 = vadd.f32 %v2070, %v2754
  %v2781 = vadd.f32 %v2075, %v2759
  %v2782 = vadd.f32 %v2078, %v2762
  %v2783 = vadd.f32 %v2765, %v2499
  %v2784 = vadd.f32 %v2766, %v2502
  %v2785 = vadd.f32 %v2767, %v2507
  %v2786 = vadd.f32 %v2768, %v2510
  %v2787 = vadd.f32 %v2769, %v2515
  %v2788 = vadd.f32 %v2770, %v2518
  %v2789 = vadd.f32 %v2771, %v2523
  %v2790 = vadd.f32 %v2772, %v2526
  %v2791 = vadd.f32 %v2773, %v2531
  %v2792 = vadd.f32 %v2774, %v2534
  %v2793 = vadd.f32 %v2775, %v2539
  %v2794 = vadd.f32 %v2776, %v2542
  %v2795 = vadd.f32 %v2777, %v2547
  %v2796 = vadd.f32 %v2778, %v2550
  %v2797 = vadd.f32 %v2779, %v2555
  %v2798 = vadd.f32 %v2780, %v2558
  %v2799 = vadd.f32 %v2781, %v2563
  %v2800 = vadd.f32 %v2782, %v2566
  %v2801 = vld [vmem:[%s5] sm:$0x1]
  %v2803 = vlaneseq
  %v2804 = vshrl.u32 %v2803, 7
  %v2805 = vsub.s32 0, %v2804
  %v2806 = vrot.slane %v2801, %v2805
  %v2808 = vadd.f32 %v2783, %v2806
  %v2809 = vadd.f32 %v2784, %v2806
  %v2810 = vadd.f32 %v2785, %v2806
  %v2811 = vadd.f32 %v2786, %v2806
  %v2812 = vadd.f32 %v2787, %v2806
  %v2813 = vadd.f32 %v2788, %v2806
  %v2814 = vadd.f32 %v2789, %v2806
  %v2815 = vadd.f32 %v2790, %v2806
  %v2816 = vadd.f32 %v2791, %v2806
  %v2817 = vadd.f32 %v2792, %v2806
  %v2818 = vadd.f32 %v2793, %v2806
  %v2819 = vadd.f32 %v2794, %v2806
  %v2820 = vadd.f32 %v2795, %v2806
  %v2821 = vadd.f32 %v2796, %v2806
  %v2822 = vadd.f32 %v2797, %v2806
  %v2823 = vadd.f32 %v2798, %v2806
  %v2824 = vadd.f32 %v2799, %v2806
  %v2825 = vadd.f32 %v2800, %v2806
  %v2826 = vmax.f32 %v2808, 0.0
  %v2827 = vmax.f32 %v2809, 0.0
  %v2828 = vmax.f32 %v2810, 0.0
  %v2829 = vmax.f32 %v2811, 0.0
  %v2830 = vmax.f32 %v2812, 0.0
  %v2831 = vmax.f32 %v2813, 0.0
  %v2832 = vmax.f32 %v2814, 0.0
  %v2833 = vmax.f32 %v2815, 0.0
  %v2834 = vmax.f32 %v2816, 0.0
  %v2835 = vmax.f32 %v2817, 0.0
  %v2836 = vmax.f32 %v2818, 0.0
  %v2837 = vmax.f32 %v2819, 0.0
  %v2838 = vmax.f32 %v2820, 0.0
  %v2839 = vmax.f32 %v2821, 0.0
  %v2840 = vmax.f32 %v2822, 0.0
  %v2841 = vmax.f32 %v2823, 0.0
  %v2842 = vmax.f32 %v2824, 0.0
  %v2843 = vmax.f32 %v2825, 0.0
  %2844 = vst [vmem:[#allocation4] sm:$0xff] %v2826
  %2845 = vst [vmem:[#allocation4 + $0x8] sm:$0xff] %v2827
  %2846 = vst [vmem:[#allocation4 + $0x10] sm:$0xff] %v2828
  %2847 = vst [vmem:[#allocation4 + $0x18] sm:$0xff] %v2829
  %2848 = vst [vmem:[#allocation4 + $0x20] sm:$0xff] %v2830
  %2849 = vst [vmem:[#allocation4 + $0x28] sm:$0xff] %v2831
  %2850 = vst [vmem:[#allocation4 + $0x30] sm:$0xff] %v2832
  %2851 = vst [vmem:[#allocation4 + $0x38] sm:$0xff] %v2833
  %2852 = vst [vmem:[#allocation4 + $0x40] sm:$0xff] %v2834
  %2853 = vst [vmem:[#allocation4 + $0x48] sm:$0xff] %v2835
  %2854 = vst [vmem:[#allocation4 + $0x50] sm:$0xff] %v2836
  %2855 = vst [vmem:[#allocation4 + $0x58] sm:$0xff] %v2837
  %2856 = vst [vmem:[#allocation4 + $0x60] sm:$0xff] %v2838
  %2857 = vst [vmem:[#allocation4 + $0x68] sm:$0xff] %v2839
  %2858 = vst [vmem:[#allocation4 + $0x70] sm:$0xff] %v2840
  %2859 = vst [vmem:[#allocation4 + $0x78] sm:$0xff] %v2841
  %2860 = vst [vmem:[#allocation4 + $0x80] sm:$0xff] %v2842
  %2861 = vst [vmem:[#allocation4 + $0x88] sm:$0xff] %v2843
  %v2862 = vld [vmem:[#allocation4] sm:$0xff]
  %v2863 = vld [vmem:[#allocation4 + $0x8] sm:$0xff]
  %v2864 = vld [vmem:[#allocation4 + $0x10] sm:$0xff]
  %v2865 = vld [vmem:[#allocation4 + $0x18] sm:$0xff]
  %v2866 = vld [vmem:[#allocation4 + $0x20] sm:$0xff]
  %v2867 = vld [vmem:[#allocation4 + $0x28] sm:$0xff]
  %v2868 = vld [vmem:[#allocation4 + $0x30] sm:$0xff]
  %v2869 = vld [vmem:[#allocation4 + $0x38] sm:$0xff]
  %v2870 = vld [vmem:[#allocation4 + $0x40] sm:$0xff]
  %v2871 = vld [vmem:[#allocation4 + $0x48] sm:$0xff]
  %v2872 = vld [vmem:[#allocation4 + $0x50] sm:$0xff]
  %v2873 = vld [vmem:[#allocation4 + $0x58] sm:$0xff]
  %v2874 = vld [vmem:[#allocation4 + $0x60] sm:$0xff]
  %v2875 = vld [vmem:[#allocation4 + $0x68] sm:$0xff]
  %v2876 = vld [vmem:[#allocation4 + $0x70] sm:$0xff]
  %v2877 = vld [vmem:[#allocation4 + $0x78] sm:$0xff]
  %v2878 = vld [vmem:[#allocation4 + $0x1] sm:$0xff]
  %v2879 = vld [vmem:[#allocation4 + $0x9] sm:$0xff]
  %v2880 = vld [vmem:[#allocation4 + $0x11] sm:$0xff]
  %v2881 = vld [vmem:[#allocation4 + $0x19] sm:$0xff]
  %v2882 = vld [vmem:[#allocation4 + $0x21] sm:$0xff]
  %v2883 = vld [vmem:[#allocation4 + $0x29] sm:$0xff]
  %v2884 = vld [vmem:[#allocation4 + $0x31] sm:$0xff]
  %v2885 = vld [vmem:[#allocation4 + $0x39] sm:$0xff]
  %v2886 = vld [vmem:[#allocation4 + $0x41] sm:$0xff]
  %v2887 = vld [vmem:[#allocation4 + $0x49] sm:$0xff]
  %v2888 = vld [vmem:[#allocation4 + $0x51] sm:$0xff]
  %v2889 = vld [vmem:[#allocation4 + $0x59] sm:$0xff]
  %v2890 = vld [vmem:[#allocation4 + $0x61] sm:$0xff]
  %v2891 = vld [vmem:[#allocation4 + $0x69] sm:$0xff]
  %v2892 = vld [vmem:[#allocation4 + $0x71] sm:$0xff]
  %v2893 = vld [vmem:[#allocation4 + $0x79] sm:$0xff]
  %v2894 = vmax.f32 %v2862, %v2878
  %v2895 = vmax.f32 %v2863, %v2879
  %v2896 = vmax.f32 %v2864, %v2880
  %v2897 = vmax.f32 %v2865, %v2881
  %v2898 = vmax.f32 %v2866, %v2882
  %v2899 = vmax.f32 %v2867, %v2883
  %v2900 = vmax.f32 %v2868, %v2884
  %v2901 = vmax.f32 %v2869, %v2885
  %v2902 = vmax.f32 %v2870, %v2886
  %v2903 = vmax.f32 %v2871, %v2887
  %v2904 = vmax.f32 %v2872, %v2888
  %v2905 = vmax.f32 %v2873, %v2889
  %v2906 = vmax.f32 %v2874, %v2890
  %v2907 = vmax.f32 %v2875, %v2891
  %v2908 = vmax.f32 %v2876, %v2892
  %v2909 = vmax.f32 %v2877, %v2893
  %v2910 = vld [vmem:[#allocation4 + $0x7] sm:$0xff]
  %v2911 = vld [vmem:[#allocation4 + $0xf] sm:$0xff]
  %v2912 = vld [vmem:[#allocation4 + $0x17] sm:$0xff]
  %v2913 = vld [vmem:[#allocation4 + $0x1f] sm:$0xff]
  %v2914 = vld [vmem:[#allocation4 + $0x27] sm:$0xff]
  %v2915 = vld [vmem:[#allocation4 + $0x2f] sm:$0xff]
  %v2916 = vld [vmem:[#allocation4 + $0x37] sm:$0xff]
  %v2917 = vld [vmem:[#allocation4 + $0x3f] sm:$0xff]
  %v2918 = vld [vmem:[#allocation4 + $0x47] sm:$0xff]
  %v2919 = vld [vmem:[#allocation4 + $0x4f] sm:$0xff]
  %v2920 = vld [vmem:[#allocation4 + $0x57] sm:$0xff]
  %v2921 = vld [vmem:[#allocation4 + $0x5f] sm:$0xff]
  %v2922 = vld [vmem:[#allocation4 + $0x67] sm:$0xff]
  %v2923 = vld [vmem:[#allocation4 + $0x6f] sm:$0xff]
  %v2924 = vld [vmem:[#allocation4 + $0x77] sm:$0xff]
  %v2925 = vld [vmem:[#allocation4 + $0x7f] sm:$0xff]
  %v2926 = vld [vmem:[#allocation4 + $0x80] sm:$0xff]
  %v2927 = vmax.f32 %v2910, %v2863
  %v2928 = vmax.f32 %v2911, %v2864
  %v2929 = vmax.f32 %v2912, %v2865
  %v2930 = vmax.f32 %v2913, %v2866
  %v2931 = vmax.f32 %v2914, %v2867
  %v2932 = vmax.f32 %v2915, %v2868
  %v2933 = vmax.f32 %v2916, %v2869
  %v2934 = vmax.f32 %v2917, %v2870
  %v2935 = vmax.f32 %v2918, %v2871
  %v2936 = vmax.f32 %v2919, %v2872
  %v2937 = vmax.f32 %v2920, %v2873
  %v2938 = vmax.f32 %v2921, %v2874
  %v2939 = vmax.f32 %v2922, %v2875
  %v2940 = vmax.f32 %v2923, %v2876
  %v2941 = vmax.f32 %v2924, %v2877
  %v2942 = vmax.f32 %v2925, %v2926
  %v2943 = vmax.f32 %v2894, %v2927
  %v2944 = vmax.f32 %v2895, %v2928
  %v2945 = vmax.f32 %v2896, %v2929
  %v2946 = vmax.f32 %v2897, %v2930
  %v2947 = vmax.f32 %v2898, %v2931
  %v2948 = vmax.f32 %v2899, %v2932
  %v2949 = vmax.f32 %v2900, %v2933
  %v2950 = vmax.f32 %v2901, %v2934
  %v2951 = vmax.f32 %v2902, %v2935
  %v2952 = vmax.f32 %v2903, %v2936
  %v2953 = vmax.f32 %v2904, %v2937
  %v2954 = vmax.f32 %v2905, %v2938
  %v2955 = vmax.f32 %v2906, %v2939
  %v2956 = vmax.f32 %v2907, %v2940
  %v2957 = vmax.f32 %v2908, %v2941
  %v2958 = vmax.f32 %v2909, %v2942
  %v2959 = vld [vmem:[%s6] sm:$0xf]
  %v2960 = vld [vmem:[%s6 + $0x4] sm:$0xf]
  %v2961 = vld [vmem:[%s6 + $0x8] sm:$0xf]
  %v2962 = vld [vmem:[%s6 + $0xc] sm:$0xf]
  %v2963 = vpack.c.bf16 %v2944, %v2943
  %v2964 = vpack.c.bf16 %v2946, %v2945
  %v2965 = vpack.c.bf16 %v2948, %v2947
  %v2966 = vpack.c.bf16 %v2950, %v2949
  %v2967 = vpack.c.bf16 %v2952, %v2951
  %v2968 = vpack.c.bf16 %v2954, %v2953
  %v2969 = vpack.c.bf16 %v2956, %v2955
  %v2970 = vpack.c.bf16 %v2958, %v2957
  %v2975 = vunpack.c.l.b16 %v2959
  %v2976 = vunpack.c.l.b16 %v2960
  %v2977 = vunpack.c.l.b16 %v2961
  %v2978 = vunpack.c.l.b16 %v2962
  %v2979 = vpack.c.b16 %v2976, %v2975
  %v2980 = vpack.c.b16 %v2978, %v2977
  %2983 = vmatprep.subr.bf16.mxu0 0
  %2984 = vmatpush1.bf16.msra.mxu0 %v2963
  %2985 = vmatprep.subr.bf16.mxu0 0
  %2986 = vmatpush1.bf16.msra.mxu0 %v2964
  %2987 = vmatprep.subr.bf16.mxu0 0
  %2988 = vmatpush1.bf16.msra.mxu0 %v2965
  %2989 = vmatprep.subr.bf16.mxu0 0
  %2990 = vmatpush1.bf16.msra.mxu0 %v2966
  %2991 = vmatprep.subr.bf16.mxu0 0
  %2992 = vmatpush1.bf16.msra.mxu0 %v2967
  %2993 = vmatprep.subr.bf16.mxu0 0
  %2994 = vmatpush1.bf16.msra.mxu0 %v2968
  %2995 = vmatprep.subr.bf16.mxu0 0
  %2996 = vmatpush1.bf16.msra.mxu0 %v2969
  %2997 = vmatprep.subr.bf16.mxu0 0
  %2998 = vmatpush1.bf16.msra.mxu0 %v2970
  %2999 = vmatprep.subr.bf16.mxu0 0
  %3000 = vmatpush1.bf16.msra.mxu0 0
  %3001 = vmatprep.subr.bf16.mxu0 0
  %3002 = vmatpush1.bf16.msra.mxu0 0
  %3003 = vmatprep.subr.bf16.mxu0 0
  %3004 = vmatpush1.bf16.msra.mxu0 0
  %3005 = vmatprep.subr.bf16.mxu0 0
  %3006 = vmatpush1.bf16.msra.mxu0 0
  %3007 = vmatprep.subr.bf16.mxu0 0
  %3008 = vmatpush1.bf16.msra.mxu0 0
  %3009 = vmatprep.subr.bf16.mxu0 0
  %3010 = vmatpush1.bf16.msra.mxu0 0
  %3011 = vmatprep.subr.bf16.mxu0 0
  %3012 = vmatpush1.bf16.msra.mxu0 0
  %3013 = vmatprep.subr.bf16.mxu0 0
  %3014 = vmatpush1.bf16.msra.mxu0 0
  %3015 = vmatprep.mubr.bf16.mxu0 0
  %3016 = vmatmul.mubr.bf16.gmra.mrb[0].mxu0 %v2979
  %v3017 = vpop.f32.mrb[0].mxu0
  %v3018 = vadd.f32 0.0, %v3017
  %v3019 = vpop.f32.mrb[0].mxu0
  %v3020 = vpop.f32.mrb[0].mxu0
  %v3021 = vadd.f32 0.0, %v3020
  %v3022 = vpop.f32.mrb[0].mxu0
  %3023 = vmatprep.mubr.bf16.mxu0 0
  %3024 = vmatmul.mubr.bf16.gmra.mrb[0].mxu0 %v2980
  %v3025 = vpop.f32.mrb[0].mxu0
  %v3026 = vadd.f32 0.0, %v3025
  %v3027 = vpop.f32.mrb[0].mxu0
  %v3028 = vpop.f32.mrb[0].mxu0
  %v3029 = vadd.f32 0.0, %v3028
  %v3030 = vpop.f32.mrb[0].mxu0
  %3031 = vdwg.mxu0
  %v3032 = vpack.c.bf16 %v3018, %v3018
  %v3033 = vld [vmem:[%s7] sm:$0xf]
  %v3034 = vld [vmem:[%s7 + $0x4] sm:$0xf]
  %v3035 = vld [vmem:[%s7 + $0x8] sm:$0xf]
  %v3036 = vld [vmem:[%s7 + $0xc] sm:$0xf]
  %v3037 = vld [vmem:[%s7 + $0x10] sm:$0xf]
  %v3038 = vld [vmem:[%s7 + $0x14] sm:$0xf]
  %v3039 = vld [vmem:[%s7 + $0x18] sm:$0xf]
  %v3040 = vld [vmem:[%s7 + $0x1c] sm:$0xf]
  %v3041 = vld [vmem:[%s7 + $0x20] sm:$0xf]
  %v3042 = vld [vmem:[%s7 + $0x24] sm:$0xf]
  %v3043 = vld [vmem:[%s7 + $0x28] sm:$0xf]
  %v3044 = vld [vmem:[%s7 + $0x2c] sm:$0xf]
  %v3045 = vld [vmem:[%s7 + $0x30] sm:$0xf]
  %v3046 = vld [vmem:[%s7 + $0x34] sm:$0xf]
  %v3047 = vld [vmem:[%s7 + $0x38] sm:$0xf]
  %v3048 = vld [vmem:[%s7 + $0x3c] sm:$0xf]
  %v3049 = vpack.c.bf16 %v3021, %v3021
  %v3050 = vld [vmem:[%s7 + $0x40] sm:$0xf]
  %v3051 = vld [vmem:[%s7 + $0x44] sm:$0xf]
  %v3052 = vld [vmem:[%s7 + $0x48] sm:$0xf]
  %v3053 = vld [vmem:[%s7 + $0x4c] sm:$0xf]
  %v3054 = vld [vmem:[%s7 + $0x50] sm:$0xf]
  %v3055 = vld [vmem:[%s7 + $0x54] sm:$0xf]
  %v3056 = vld [vmem:[%s7 + $0x58] sm:$0xf]
  %v3057 = vld [vmem:[%s7 + $0x5c] sm:$0xf]
  %v3058 = vld [vmem:[%s7 + $0x60] sm:$0xf]
  %v3059 = vld [vmem:[%s7 + $0x64] sm:$0xf]
  %v3060 = vld [vmem:[%s7 + $0x68] sm:$0xf]
  %v3061 = vld [vmem:[%s7 + $0x6c] sm:$0xf]
  %v3062 = vld [vmem:[%s7 + $0x70] sm:$0xf]
  %v3063 = vld [vmem:[%s7 + $0x74] sm:$0xf]
  %v3064 = vld [vmem:[%s7 + $0x78] sm:$0xf]
  %v3065 = vld [vmem:[%s7 + $0x7c] sm:$0xf]
  %v3066 = vpack.c.bf16 %v3026, %v3026
  %v3067 = vld [vmem:[%s7 + $0x80] sm:$0xf]
  %v3068 = vld [vmem:[%s7 + $0x84] sm:$0xf]
  %v3069 = vld [vmem:[%s7 + $0x88] sm:$0xf]
  %v3070 = vld [vmem:[%s7 + $0x8c] sm:$0xf]
  %v3071 = vld [vmem:[%s7 + $0x90] sm:$0xf]
  %v3072 = vld [vmem:[%s7 + $0x94] sm:$0xf]
  %v3073 = vld [vmem:[%s7 + $0x98] sm:$0xf]
  %v3074 = vld [vmem:[%s7 + $0x9c] sm:$0xf]
  %v3075 = vld [vmem:[%s7 + $0xa0] sm:$0xf]
  %v3076 = vld [vmem:[%s7 + $0xa4] sm:$0xf]
  %v3077 = vld [vmem:[%s7 + $0xa8] sm:$0xf]
  %v3078 = vld [vmem:[%s7 + $0xac] sm:$0xf]
  %v3079 = vld [vmem:[%s7 + $0xb0] sm:$0xf]
  %v3080 = vld [vmem:[%s7 + $0xb4] sm:$0xf]
  %v3081 = vld [vmem:[%s7 + $0xb8] sm:$0xf]
  %v3082 = vld [vmem:[%s7 + $0xbc] sm:$0xf]
  %v3099 = vunpack.c.l.b16 %v3067
  %v3100 = vunpack.c.l.b16 %v3068
  %v3101 = vunpack.c.l.b16 %v3069
  %v3102 = vunpack.c.l.b16 %v3070
  %v3103 = vunpack.c.l.b16 %v3071
  %v3104 = vunpack.c.l.b16 %v3072
  %v3105 = vunpack.c.l.b16 %v3073
  %v3106 = vunpack.c.l.b16 %v3074
  %v3107 = vunpack.c.l.b16 %v3075
  %v3108 = vunpack.c.l.b16 %v3076
  %v3109 = vunpack.c.l.b16 %v3077
  %v3110 = vunpack.c.l.b16 %v3078
  %v3111 = vunpack.c.l.b16 %v3079
  %v3112 = vunpack.c.l.b16 %v3080
  %v3113 = vunpack.c.l.b16 %v3081
  %v3114 = vunpack.c.l.b16 %v3082
  %v3115 = vpack.c.b16 %v3100, %v3099
  %v3116 = vpack.c.b16 %v3102, %v3101
  %v3117 = vpack.c.b16 %v3104, %v3103
  %v3118 = vpack.c.b16 %v3106, %v3105
  %v3119 = vpack.c.b16 %v3108, %v3107
  %v3120 = vpack.c.b16 %v3110, %v3109
  %v3121 = vpack.c.b16 %v3112, %v3111
  %v3122 = vpack.c.b16 %v3114, %v3113
  %3131 = vmatprep.subr.bf16.mxu0 0
  %3132 = vmatpush1.bf16.msra.mxu0 %v3115
  %3133 = vmatprep.subr.bf16.mxu0 0
  %3134 = vmatpush1.bf16.msra.mxu0 %v3116
  %3135 = vmatprep.subr.bf16.mxu0 0
  %3136 = vmatpush1.bf16.msra.mxu0 %v3117
  %3137 = vmatprep.subr.bf16.mxu0 0
  %3138 = vmatpush1.bf16.msra.mxu0 %v3118
  %3139 = vmatprep.subr.bf16.mxu0 0
  %3140 = vmatpush1.bf16.msra.mxu0 %v3119
  %3141 = vmatprep.subr.bf16.mxu0 0
  %3142 = vmatpush1.bf16.msra.mxu0 %v3120
  %3143 = vmatprep.subr.bf16.mxu0 0
  %3144 = vmatpush1.bf16.msra.mxu0 %v3121
  %3145 = vmatprep.subr.bf16.mxu0 0
  %3146 = vmatpush1.bf16.msra.mxu0 %v3122
  %3147 = vmatprep.subr.bf16.mxu0 0
  %3148 = vmatpush1.bf16.msra.mxu0 0
  %3149 = vmatprep.subr.bf16.mxu0 0
  %3150 = vmatpush1.bf16.msra.mxu0 0
  %3151 = vmatprep.subr.bf16.mxu0 0
  %3152 = vmatpush1.bf16.msra.mxu0 0
  %3153 = vmatprep.subr.bf16.mxu0 0
  %3154 = vmatpush1.bf16.msra.mxu0 0
  %3155 = vmatprep.subr.bf16.mxu0 0
  %3156 = vmatpush1.bf16.msra.mxu0 0
  %3157 = vmatprep.subr.bf16.mxu0 0
  %3158 = vmatpush1.bf16.msra.mxu0 0
  %3159 = vmatprep.subr.bf16.mxu0 0
  %3160 = vmatpush1.bf16.msra.mxu0 0
  %3161 = vmatprep.subr.bf16.mxu0 0
  %3162 = vmatpush1.bf16.msra.mxu0 0
  %3163 = vmatprep.mubr.bf16.mxu0 0
  %3164 = vmatmul.mubr.bf16.gmra.mrb[0].mxu0 %v3066
  %v3165 = vpop.f32.mrb[0].mxu0
  %v3166 = vadd.f32 0.0, %v3165
  %v3167 = vpop.f32.mrb[0].mxu0
  %v3168 = vpop.f32.mrb[0].mxu0
  %v3169 = vpop.f32.mrb[0].mxu0
  %3170 = vdwg.mxu0
  %v3187 = vunpack.c.l.b16 %v3033
  %v3188 = vunpack.c.l.b16 %v3034
  %v3189 = vunpack.c.l.b16 %v3035
  %v3190 = vunpack.c.l.b16 %v3036
  %v3191 = vunpack.c.l.b16 %v3037
  %v3192 = vunpack.c.l.b16 %v3038
  %v3193 = vunpack.c.l.b16 %v3039
  %v3194 = vunpack.c.l.b16 %v3040
  %v3195 = vunpack.c.l.b16 %v3041
  %v3196 = vunpack.c.l.b16 %v3042
  %v3197 = vunpack.c.l.b16 %v3043
  %v3198 = vunpack.c.l.b16 %v3044
  %v3199 = vunpack.c.l.b16 %v3045
  %v3200 = vunpack.c.l.b16 %v3046
  %v3201 = vunpack.c.l.b16 %v3047
  %v3202 = vunpack.c.l.b16 %v3048
  %v3203 = vpack.c.b16 %v3188, %v3187
  %v3204 = vpack.c.b16 %v3190, %v3189
  %v3205 = vpack.c.b16 %v3192, %v3191
  %v3206 = vpack.c.b16 %v3194, %v3193
  %v3207 = vpack.c.b16 %v3196, %v3195
  %v3208 = vpack.c.b16 %v3198, %v3197
  %v3209 = vpack.c.b16 %v3200, %v3199
  %v3210 = vpack.c.b16 %v3202, %v3201
  %3219 = vmatprep.subr.bf16.mxu0 0
  %3220 = vmatpush1.bf16.msra.mxu0 %v3203
  %3221 = vmatprep.subr.bf16.mxu0 0
  %3222 = vmatpush1.bf16.msra.mxu0 %v3204
  %3223 = vmatprep.subr.bf16.mxu0 0
  %3224 = vmatpush1.bf16.msra.mxu0 %v3205
  %3225 = vmatprep.subr.bf16.mxu0 0
  %3226 = vmatpush1.bf16.msra.mxu0 %v3206
  %3227 = vmatprep.subr.bf16.mxu0 0
  %3228 = vmatpush1.bf16.msra.mxu0 %v3207
  %3229 = vmatprep.subr.bf16.mxu0 0
  %3230 = vmatpush1.bf16.msra.mxu0 %v3208
  %3231 = vmatprep.subr.bf16.mxu0 0
  %3232 = vmatpush1.bf16.msra.mxu0 %v3209
  %3233 = vmatprep.subr.bf16.mxu0 0
  %3234 = vmatpush1.bf16.msra.mxu0 %v3210
  %3235 = vmatprep.subr.bf16.mxu0 0
  %3236 = vmatpush1.bf16.msra.mxu0 0
  %3237 = vmatprep.subr.bf16.mxu0 0
  %3238 = vmatpush1.bf16.msra.mxu0 0
  %3239 = vmatprep.subr.bf16.mxu0 0
  %3240 = vmatpush1.bf16.msra.mxu0 0
  %3241 = vmatprep.subr.bf16.mxu0 0
  %3242 = vmatpush1.bf16.msra.mxu0 0
  %3243 = vmatprep.subr.bf16.mxu0 0
  %3244 = vmatpush1.bf16.msra.mxu0 0
  %3245 = vmatprep.subr.bf16.mxu0 0
  %3246 = vmatpush1.bf16.msra.mxu0 0
  %3247 = vmatprep.subr.bf16.mxu0 0
  %3248 = vmatpush1.bf16.msra.mxu0 0
  %3249 = vmatprep.subr.bf16.mxu0 0
  %3250 = vmatpush1.bf16.msra.mxu0 0
  %3251 = vmatprep.mubr.bf16.mxu0 0
  %3252 = vmatmul.mubr.bf16.gmra.mrb[0].mxu0 %v3032
  %v3253 = vpop.f32.mrb[0].mxu0
  %v3254 = vadd.f32 %v3166, %v3253
  %v3255 = vpop.f32.mrb[0].mxu0
  %v3256 = vpop.f32.mrb[0].mxu0
  %v3257 = vpop.f32.mrb[0].mxu0
  %3258 = vdwg.mxu0
  %v3259 = vpack.c.bf16 %v3029, %v3029
  %v3260 = vld [vmem:[%s7 + $0xc0] sm:$0xf]
  %v3261 = vld [vmem:[%s7 + $0xc4] sm:$0xf]
  %v3262 = vld [vmem:[%s7 + $0xc8] sm:$0xf]
  %v3263 = vld [vmem:[%s7 + $0xcc] sm:$0xf]
  %v3264 = vld [vmem:[%s7 + $0xd0] sm:$0xf]
  %v3265 = vld [vmem:[%s7 + $0xd4] sm:$0xf]
  %v3266 = vld [vmem:[%s7 + $0xd8] sm:$0xf]
  %v3267 = vld [vmem:[%s7 + $0xdc] sm:$0xf]
  %v3268 = vld [vmem:[%s7 + $0xe0] sm:$0xf]
  %v3269 = vld [vmem:[%s7 + $0xe4] sm:$0xf]
  %v3270 = vld [vmem:[%s7 + $0xe8] sm:$0xf]
  %v3271 = vld [vmem:[%s7 + $0xec] sm:$0xf]
  %v3272 = vld [vmem:[%s7 + $0xf0] sm:$0xf]
  %v3273 = vld [vmem:[%s7 + $0xf4] sm:$0xf]
  %v3274 = vld [vmem:[%s7 + $0xf8] sm:$0xf]
  %v3275 = vld [vmem:[%s7 + $0xfc] sm:$0xf]
  %v3292 = vunpack.c.l.b16 %v3260
  %v3293 = vunpack.c.l.b16 %v3261
  %v3294 = vunpack.c.l.b16 %v3262
  %v3295 = vunpack.c.l.b16 %v3263
  %v3296 = vunpack.c.l.b16 %v3264
  %v3297 = vunpack.c.l.b16 %v3265
  %v3298 = vunpack.c.l.b16 %v3266
  %v3299 = vunpack.c.l.b16 %v3267
  %v3300 = vunpack.c.l.b16 %v3268
  %v3301 = vunpack.c.l.b16 %v3269
  %v3302 = vunpack.c.l.b16 %v3270
  %v3303 = vunpack.c.l.b16 %v3271
  %v3304 = vunpack.c.l.b16 %v3272
  %v3305 = vunpack.c.l.b16 %v3273
  %v3306 = vunpack.c.l.b16 %v3274
  %v3307 = vunpack.c.l.b16 %v3275
  %v3308 = vpack.c.b16 %v3293, %v3292
  %v3309 = vpack.c.b16 %v3295, %v3294
  %v3310 = vpack.c.b16 %v3297, %v3296
  %v3311 = vpack.c.b16 %v3299, %v3298
  %v3312 = vpack.c.b16 %v3301, %v3300
  %v3313 = vpack.c.b16 %v3303, %v3302
  %v3314 = vpack.c.b16 %v3305, %v3304
  %v3315 = vpack.c.b16 %v3307, %v3306
  %3324 = vmatprep.subr.bf16.mxu0 0
  %3325 = vmatpush1.bf16.msra.mxu0 %v3308
  %3326 = vmatprep.subr.bf16.mxu0 0
  %3327 = vmatpush1.bf16.msra.mxu0 %v3309
  %3328 = vmatprep.subr.bf16.mxu0 0
  %3329 = vmatpush1.bf16.msra.mxu0 %v3310
  %3330 = vmatprep.subr.bf16.mxu0 0
  %3331 = vmatpush1.bf16.msra.mxu0 %v3311
  %3332 = vmatprep.subr.bf16.mxu0 0
  %3333 = vmatpush1.bf16.msra.mxu0 %v3312
  %3334 = vmatprep.subr.bf16.mxu0 0
  %3335 = vmatpush1.bf16.msra.mxu0 %v3313
  %3336 = vmatprep.subr.bf16.mxu0 0
  %3337 = vmatpush1.bf16.msra.mxu0 %v3314
  %3338 = vmatprep.subr.bf16.mxu0 0
  %3339 = vmatpush1.bf16.msra.mxu0 %v3315
  %3340 = vmatprep.subr.bf16.mxu0 0
  %3341 = vmatpush1.bf16.msra.mxu0 0
  %3342 = vmatprep.subr.bf16.mxu0 0
  %3343 = vmatpush1.bf16.msra.mxu0 0
  %3344 = vmatprep.subr.bf16.mxu0 0
  %3345 = vmatpush1.bf16.msra.mxu0 0
  %3346 = vmatprep.subr.bf16.mxu0 0
  %3347 = vmatpush1.bf16.msra.mxu0 0
  %3348 = vmatprep.subr.bf16.mxu0 0
  %3349 = vmatpush1.bf16.msra.mxu0 0
  %3350 = vmatprep.subr.bf16.mxu0 0
  %3351 = vmatpush1.bf16.msra.mxu0 0
  %3352 = vmatprep.subr.bf16.mxu0 0
  %3353 = vmatpush1.bf16.msra.mxu0 0
  %3354 = vmatprep.subr.bf16.mxu0 0
  %3355 = vmatpush1.bf16.msra.mxu0 0
  %3356 = vmatprep.mubr.bf16.mxu0 0
  %3357 = vmatmul.mubr.bf16.gmra.mrb[0].mxu0 %v3259
  %v3358 = vpop.f32.mrb[0].mxu0
  %v3359 = vadd.f32 0.0, %v3358
  %v3360 = vpop.f32.mrb[0].mxu0
  %v3361 = vpop.f32.mrb[0].mxu0
  %v3362 = vpop.f32.mrb[0].mxu0
  %3363 = vdwg.mxu0
  %v3380 = vunpack.c.l.b16 %v3050
  %v3381 = vunpack.c.l.b16 %v3051
  %v3382 = vunpack.c.l.b16 %v3052
  %v3383 = vunpack.c.l.b16 %v3053
  %v3384 = vunpack.c.l.b16 %v3054
  %v3385 = vunpack.c.l.b16 %v3055
  %v3386 = vunpack.c.l.b16 %v3056
  %v3387 = vunpack.c.l.b16 %v3057
  %v3388 = vunpack.c.l.b16 %v3058
  %v3389 = vunpack.c.l.b16 %v3059
  %v3390 = vunpack.c.l.b16 %v3060
  %v3391 = vunpack.c.l.b16 %v3061
  %v3392 = vunpack.c.l.b16 %v3062
  %v3393 = vunpack.c.l.b16 %v3063
  %v3394 = vunpack.c.l.b16 %v3064
  %v3395 = vunpack.c.l.b16 %v3065
  %v3396 = vpack.c.b16 %v3381, %v3380
  %v3397 = vpack.c.b16 %v3383, %v3382
  %v3398 = vpack.c.b16 %v3385, %v3384
  %v3399 = vpack.c.b16 %v3387, %v3386
  %v3400 = vpack.c.b16 %v3389, %v3388
  %v3401 = vpack.c.b16 %v3391, %v3390
  %v3402 = vpack.c.b16 %v3393, %v3392
  %v3403 = vpack.c.b16 %v3395, %v3394
  %3412 = vmatprep.subr.bf16.mxu0 0
  %3413 = vmatpush1.bf16.msra.mxu0 %v3396
  %3414 = vmatprep.subr.bf16.mxu0 0
  %3415 = vmatpush1.bf16.msra.mxu0 %v3397
  %3416 = vmatprep.subr.bf16.mxu0 0
  %3417 = vmatpush1.bf16.msra.mxu0 %v3398
  %3418 = vmatprep.subr.bf16.mxu0 0
  %3419 = vmatpush1.bf16.msra.mxu0 %v3399
  %3420 = vmatprep.subr.bf16.mxu0 0
  %3421 = vmatpush1.bf16.msra.mxu0 %v3400
  %3422 = vmatprep.subr.bf16.mxu0 0
  %3423 = vmatpush1.bf16.msra.mxu0 %v3401
  %3424 = vmatprep.subr.bf16.mxu0 0
  %3425 = vmatpush1.bf16.msra.mxu0 %v3402
  %3426 = vmatprep.subr.bf16.mxu0 0
  %3427 = vmatpush1.bf16.msra.mxu0 %v3403
  %3428 = vmatprep.subr.bf16.mxu0 0
  %3429 = vmatpush1.bf16.msra.mxu0 0
  %3430 = vmatprep.subr.bf16.mxu0 0
  %3431 = vmatpush1.bf16.msra.mxu0 0
  %3432 = vmatprep.subr.bf16.mxu0 0
  %3433 = vmatpush1.bf16.msra.mxu0 0
  %3434 = vmatprep.subr.bf16.mxu0 0
  %3435 = vmatpush1.bf16.msra.mxu0 0
  %3436 = vmatprep.subr.bf16.mxu0 0
  %3437 = vmatpush1.bf16.msra.mxu0 0
  %3438 = vmatprep.subr.bf16.mxu0 0
  %3439 = vmatpush1.bf16.msra.mxu0 0
  %3440 = vmatprep.subr.bf16.mxu0 0
  %3441 = vmatpush1.bf16.msra.mxu0 0
  %3442 = vmatprep.subr.bf16.mxu0 0
  %3443 = vmatpush1.bf16.msra.mxu0 0
  %3444 = vmatprep.mubr.bf16.mxu0 0
  %3445 = vmatmul.mubr.bf16.gmra.mrb[0].mxu0 %v3049
  %v3446 = vpop.f32.mrb[0].mxu0
  %v3447 = vadd.f32 %v3359, %v3446
  %v3448 = vpop.f32.mrb[0].mxu0
  %v3449 = vpop.f32.mrb[0].mxu0
  %v3450 = vpop.f32.mrb[0].mxu0
  %3451 = vdwg.mxu0
  %v3452 = vadd.f32 %v3254, %v3447
  %v3453 = vld [vmem:[%s8] sm:$0x1]
  %v3455 = vlaneseq
  %v3456 = vshrl.u32 %v3455, 7
  %v3457 = vsub.s32 0, %v3456
  %v3458 = vrot.slane %v3453, %v3457
  %v3460 = vadd.f32 %v3452, %v3458
  %v3461 = vmax.f32 %v3460, 0.0
  %v3462 = vpack.c.bf16 %v3461, %v3461
  %v3463 = vld [vmem:[%s9] sm:$0xf]
  %v3464 = vld [vmem:[%s9 + $0x4] sm:$0xf]
  %v3465 = vld [vmem:[%s9 + $0x8] sm:$0xf]
  %v3466 = vld [vmem:[%s9 + $0xc] sm:$0xf]
  %v3467 = vld [vmem:[%s9 + $0x10] sm:$0xf]
  %v3468 = vld [vmem:[%s9 + $0x14] sm:$0xf]
  %v3469 = vld [vmem:[%s9 + $0x18] sm:$0xf]
  %v3470 = vld [vmem:[%s9 + $0x1c] sm:$0xf]
  %v3471 = vld [vmem:[%s9 + $0x20] sm:$0xf]
  %v3472 = vld [vmem:[%s9 + $0x24] sm:$0xf]
  %v3473 = vld [vmem:[%s9 + $0x28] sm:$0xf]
  %v3474 = vld [vmem:[%s9 + $0x2c] sm:$0xf]
  %v3475 = vld [vmem:[%s9 + $0x30] sm:$0xf]
  %v3476 = vld [vmem:[%s9 + $0x34] sm:$0xf]
  %v3477 = vld [vmem:[%s9 + $0x38] sm:$0xf]
  %v3478 = vld [vmem:[%s9 + $0x3c] sm:$0xf]
  %v3479 = vld [vmem:[%s10] sm:$0x1]
  %v3481 = vlaneseq
  %v3482 = vshrl.u32 %v3481, 7
  %v3483 = vsub.s32 0, %v3482
  %v3484 = vrot.slane %v3479, %v3483
  %v3502 = vunpack.c.l.b16 %v3463
  %v3503 = vunpack.c.l.b16 %v3464
  %v3504 = vunpack.c.l.b16 %v3465
  %v3505 = vunpack.c.l.b16 %v3466
  %v3506 = vunpack.c.l.b16 %v3467
  %v3507 = vunpack.c.l.b16 %v3468
  %v3508 = vunpack.c.l.b16 %v3469
  %v3509 = vunpack.c.l.b16 %v3470
  %v3510 = vunpack.c.l.b16 %v3471
  %v3511 = vunpack.c.l.b16 %v3472
  %v3512 = vunpack.c.l.b16 %v3473
  %v3513 = vunpack.c.l.b16 %v3474
  %v3514 = vunpack.c.l.b16 %v3475
  %v3515 = vunpack.c.l.b16 %v3476
  %v3516 = vunpack.c.l.b16 %v3477
  %v3517 = vunpack.c.l.b16 %v3478
  %v3518 = vpack.c.b16 %v3503, %v3502
  %v3519 = vpack.c.b16 %v3505, %v3504
  %v3520 = vpack.c.b16 %v3507, %v3506
  %v3521 = vpack.c.b16 %v3509, %v3508
  %v3522 = vpack.c.b16 %v3511, %v3510
  %v3523 = vpack.c.b16 %v3513, %v3512
  %v3524 = vpack.c.b16 %v3515, %v3514
  %v3525 = vpack.c.b16 %v3517, %v3516
  %3534 = vmatprep.subr.bf16.mxu0 0
  %3535 = vmatpush1.bf16.msra.mxu0 %v3518
  %3536 = vmatprep.subr.bf16.mxu0 0
  %3537 = vmatpush1.bf16.msra.mxu0 %v3519
  %3538 = vmatprep.subr.bf16.mxu0 0
  %3539 = vmatpush1.bf16.msra.mxu0 %v3520
  %3540 = vmatprep.subr.bf16.mxu0 0
  %3541 = vmatpush1.bf16.msra.mxu0 %v3521
  %3542 = vmatprep.subr.bf16.mxu0 0
  %3543 = vmatpush1.bf16.msra.mxu0 %v3522
  %3544 = vmatprep.subr.bf16.mxu0 0
  %3545 = vmatpush1.bf16.msra.mxu0 %v3523
  %3546 = vmatprep.subr.bf16.mxu0 0
  %3547 = vmatpush1.bf16.msra.mxu0 %v3524
  %3548 = vmatprep.subr.bf16.mxu0 0
  %3549 = vmatpush1.bf16.msra.mxu0 %v3525
  %3550 = vmatprep.subr.bf16.mxu0 0
  %3551 = vmatpush1.bf16.msra.mxu0 0
  %3552 = vmatprep.subr.bf16.mxu0 0
  %3553 = vmatpush1.bf16.msra.mxu0 0
  %3554 = vmatprep.subr.bf16.mxu0 0
  %3555 = vmatpush1.bf16.msra.mxu0 0
  %3556 = vmatprep.subr.bf16.mxu0 0
  %3557 = vmatpush1.bf16.msra.mxu0 0
  %3558 = vmatprep.subr.bf16.mxu0 0
  %3559 = vmatpush1.bf16.msra.mxu0 0
  %3560 = vmatprep.subr.bf16.mxu0 0
  %3561 = vmatpush1.bf16.msra.mxu0 0
  %3562 = vmatprep.subr.bf16.mxu0 0
  %3563 = vmatpush1.bf16.msra.mxu0 0
  %3564 = vmatprep.subr.bf16.mxu0 0
  %3565 = vmatpush1.bf16.msra.mxu0 0
  %3566 = vmatprep.mubr.bf16.mxu0 0
  %3567 = vmatmul.mubr.bf16.gmra.mrb[0].mxu0 %v3462
  %v3568 = vpop.f32.mrb[0].mxu0
  %v3569 = vadd.f32 %v3484, %v3568
  %v3570 = vpop.f32.mrb[0].mxu0
  %v3571 = vpop.f32.mrb[0].mxu0
  %v3572 = vpop.f32.mrb[0].mxu0
  %3573 = vdwg.mxu0
  %v3574 = vmax.f32 %v3569, 0.0
  %v3575 = vpack.c.bf16 %v3574, %v3574
  %v3576 = vld [vmem:[%s11] sm:$0xf]
  %v3577 = vld [vmem:[%s11 + $0x4] sm:$0xf]
  %v3578 = vld [vmem:[%s11 + $0x8] sm:$0xf]
  %v3579 = vld [vmem:[%s11 + $0xc] sm:$0xf]
  %v3580 = vld [vmem:[%s11 + $0x10] sm:$0xf]
  %v3581 = vld [vmem:[%s11 + $0x14] sm:$0xf]
  %v3582 = vld [vmem:[%s11 + $0x18] sm:$0xf]
  %v3583 = vld [vmem:[%s11 + $0x1c] sm:$0xf]
  %v3584 = vld [vmem:[%s11 + $0x20] sm:$0xf]
  %v3585 = vld [vmem:[%s11 + $0x24] sm:$0xf]
  %v3586 = vld [vmem:[%s11 + $0x28] sm:$0xf]
  %v3587 = vld [vmem:[%s11 + $0x2c] sm:$0xf]
  %v3588 = vld [vmem:[%s11 + $0x30] sm:$0xf]
  %v3589 = vld [vmem:[%s11 + $0x34] sm:$0xf]
  %v3590 = vld [vmem:[%s11 + $0x38] sm:$0xf]
  %v3591 = vld [vmem:[%s11 + $0x3c] sm:$0xf]
  %v3592 = vld [vmem:[%s12] sm:$0x1]
  %v3594 = vlaneseq
  %v3595 = vshrl.u32 %v3594, 7
  %v3596 = vsub.s32 0, %v3595
  %v3597 = vrot.slane %v3592, %v3596
  %v3615 = vunpack.c.l.b16 %v3576
  %v3616 = vunpack.c.l.b16 %v3577
  %v3617 = vunpack.c.l.b16 %v3578
  %v3618 = vunpack.c.l.b16 %v3579
  %v3619 = vunpack.c.l.b16 %v3580
  %v3620 = vunpack.c.l.b16 %v3581
  %v3621 = vunpack.c.l.b16 %v3582
  %v3622 = vunpack.c.l.b16 %v3583
  %v3623 = vunpack.c.l.b16 %v3584
  %v3624 = vunpack.c.l.b16 %v3585
  %v3625 = vunpack.c.l.b16 %v3586
  %v3626 = vunpack.c.l.b16 %v3587
  %v3627 = vunpack.c.l.b16 %v3588
  %v3628 = vunpack.c.l.b16 %v3589
  %v3629 = vunpack.c.l.b16 %v3590
  %v3630 = vunpack.c.l.b16 %v3591
  %v3631 = vpack.c.b16 %v3616, %v3615
  %v3632 = vpack.c.b16 %v3618, %v3617
  %v3633 = vpack.c.b16 %v3620, %v3619
  %v3634 = vpack.c.b16 %v3622, %v3621
  %v3635 = vpack.c.b16 %v3624, %v3623
  %v3636 = vpack.c.b16 %v3626, %v3625
  %v3637 = vpack.c.b16 %v3628, %v3627
  %v3638 = vpack.c.b16 %v3630, %v3629
  %3647 = vmatprep.subr.bf16.mxu0 0
  %3648 = vmatpush1.bf16.msra.mxu0 %v3631
  %3649 = vmatprep.subr.bf16.mxu0 0
  %3650 = vmatpush1.bf16.msra.mxu0 %v3632
  %3651 = vmatprep.subr.bf16.mxu0 0
  %3652 = vmatpush1.bf16.msra.mxu0 %v3633
  %3653 = vmatprep.subr.bf16.mxu0 0
  %3654 = vmatpush1.bf16.msra.mxu0 %v3634
  %3655 = vmatprep.subr.bf16.mxu0 0
  %3656 = vmatpush1.bf16.msra.mxu0 %v3635
  %3657 = vmatprep.subr.bf16.mxu0 0
  %3658 = vmatpush1.bf16.msra.mxu0 %v3636
  %3659 = vmatprep.subr.bf16.mxu0 0
  %3660 = vmatpush1.bf16.msra.mxu0 %v3637
  %3661 = vmatprep.subr.bf16.mxu0 0
  %3662 = vmatpush1.bf16.msra.mxu0 %v3638
  %3663 = vmatprep.subr.bf16.mxu0 0
  %3664 = vmatpush1.bf16.msra.mxu0 0
  %3665 = vmatprep.subr.bf16.mxu0 0
  %3666 = vmatpush1.bf16.msra.mxu0 0
  %3667 = vmatprep.subr.bf16.mxu0 0
  %3668 = vmatpush1.bf16.msra.mxu0 0
  %3669 = vmatprep.subr.bf16.mxu0 0
  %3670 = vmatpush1.bf16.msra.mxu0 0
  %3671 = vmatprep.subr.bf16.mxu0 0
  %3672 = vmatpush1.bf16.msra.mxu0 0
  %3673 = vmatprep.subr.bf16.mxu0 0
  %3674 = vmatpush1.bf16.msra.mxu0 0
  %3675 = vmatprep.subr.bf16.mxu0 0
  %3676 = vmatpush1.bf16.msra.mxu0 0
  %3677 = vmatprep.subr.bf16.mxu0 0
  %3678 = vmatpush1.bf16.msra.mxu0 0
  %3679 = vmatprep.mubr.bf16.mxu0 0
  %3680 = vmatmul.mubr.bf16.gmra.mrb[0].mxu0 %v3575
  %v3681 = vpop.f32.mrb[0].mxu0
  %v3682 = vadd.f32 %v3597, %v3681
  %v3683 = vpop.f32.mrb[0].mxu0
  %v3684 = vpop.f32.mrb[0].mxu0
  %v3685 = vpop.f32.mrb[0].mxu0
  %3686 = vdwg.mxu0
  %3687 = vst [vmem:[%s13] sm:$0xff] %v3682
  // Predicated region
  $region54: #{_lambda_.1} parent=0 // pred_check
    _
  $region55: #{_lambda_.1} parent=0 // pred_check_branch
    %3689 = sbr.rel (0) target = $region57
  $region56: #{_lambda_.1} parent=0 // pred_region
    _
  $region57: #{_lambda_.1} parent=0 // pred_fallthru
    _
  // Predicated region
  $region58: #{_lambda_.1} parent=0 // pred_check
    _
  $region59: #{_lambda_.1} parent=0 // pred_check_branch
    %3691 = sbr.rel (0) target = $region61
  $region60: #{_lambda_.1} parent=0 // pred_region
    _
  $region61: #{_lambda_.1} parent=0 // pred_fallthru
    _

</llo_original>
